<compile_context>
chip_gen: v7x
topology: tpu7x:2x2x1
jax: 0.10.0
libtpu: 0.0.40
codegen_flags: <defaults>
</compile_context>

<pallas_src>
import math

import numpy as np
import jax
import jax.numpy as jnp
from jax import lax
from jax.experimental import pallas as pl
from jax.experimental.pallas import tpu as pltpu


# ---------------------------------------------------------------------------
# Host-side helpers
# ---------------------------------------------------------------------------
def _bilinear_matrix(in_size, out_size):
    """(out_size, in_size) sampling matrix matching PyTorch
    F.interpolate(mode='bilinear', align_corners=False, antialias=False)."""
    scale = in_size / out_size
    dst = np.arange(out_size, dtype=np.float64)
    src = np.maximum((dst + 0.5) * scale - 0.5, 0.0)
    x0 = np.clip(np.floor(src).astype(np.int64), 0, in_size - 1)
    x1 = np.minimum(x0 + 1, in_size - 1)
    lam = src - x0
    m = np.zeros((out_size, in_size), np.float64)
    m[np.arange(out_size), x0] += 1.0 - lam
    m[np.arange(out_size), x1] += lam
    return jnp.asarray(m, jnp.float32)


def _resize_matrix_flat(in_res, out_res, batch_group):
    """(G*in_res^2, G*out_res^2) matrix K so that x_flat @ K bilinearly resizes
    a (C, G*in_res^2) packed image stack (G images side by side on lanes)."""
    m = _bilinear_matrix(in_res, out_res)            # (out, in)
    k = jnp.kron(m, m).T                             # (in^2, out^2)
    if batch_group > 1:
        # Block-diagonal over the packed batch group.
        # TODO(synk): switch to a separable two-pass resize before scaling
        # input_res beyond ~32 (this kron matrix grows as res^4).
        k = jnp.kron(jnp.eye(batch_group, dtype=k.dtype), k)
    return k


def _choose_batch_group(n, l_min):
    """Pack G batch items onto the lane axis (lane density for low-res blocks)
    while keeping >= 2 grid steps when possible (both v7x TensorCores)."""
    if n <= 1:
        return 1
    target = max(1, min(n // 2, -(-128 // l_min)))   # ceil(128 / l_min)
    for g in range(target, 0, -1):
        if n % g == 0:
            return g
    return 1


# ---------------------------------------------------------------------------
# In-kernel conv: one im2col MXU matmul per Conv2d (zero padding in-register)
# ---------------------------------------------------------------------------
def _conv_im2col(parts, w_ref, b_ref, row, col, res, kh_sz, kw_sz, relu,
                 mm_dtype):
    """parts: list of (C_i, GL) f32 values (logical channel concat, kept apart)
       w_ref: (Cout, K2*sum(C_i)) VMEM ref, part-major / tap-major / ch-minor
       b_ref: (Cout, 1) f32 VMEM ref
       row/col: (1, GL) int32 per-pixel row / col index (host precomputed)."""
    ph, pw = (kh_sz - 1) // 2, (kw_sz - 1) // 2
    gl = parts[0].shape[1]
    pieces = []
    for p in parts:
        for kh in range(kh_sz):
            for kw in range(kw_sz):
                dy, dx = kh - ph, kw - pw
                sh = (-(dy * res + dx)) % gl
                if sh == 0:
                    s = p
                elif gl % 128 == 0:
                    s = pltpu.roll(p, shift=sh, axis=1)   # XLU lane rotate
                else:
                    s = jnp.roll(p, sh, axis=1)           # tiny tiles: slices
                conds = []
                if dy > 0:
                    conds.append(row < res - dy)
                elif dy < 0:
                    conds.append(row >= -dy)
                if dx > 0:
                    conds.append(col < res - dx)
                elif dx < 0:
                    conds.append(col >= -dx)
                if conds:
                    valid = conds[0]
                    for cnd in conds[1:]:
                        valid = jnp.logical_and(valid, cnd)
                    s = jnp.where(valid, s, 0.0)          # Conv2d zero padding
                pieces.append(s.astype(mm_dtype))
    patches = jnp.concatenate(pieces, axis=0)             # (K2*sumC, GL)
    acc = jnp.dot(w_ref[...], patches, preferred_element_type=jnp.float32)
    acc = acc + b_ref[...]                                 # f32 bias
    if relu:
        acc = jnp.maximum(acc, 0.0)
    return acc


# ---------------------------------------------------------------------------
# MSNet: parameters + fully fused forward
# ---------------------------------------------------------------------------
class MSNetPallas:
    def __init__(self, scales, kernel_sizes, input_res, key):
        self.scales = scales
        self.n_scales = len(scales)
        self.max_scale = self.n_scales - 1
        self.input_res = input_res
        self.list_res = [int(input_res / 2 ** i) for i in range(self.n_scales)]
        if isinstance(kernel_sizes, int):
            self.kernel_sizes = [(kernel_sizes, kernel_sizes)] * len(scales)
        else:
            self.kernel_sizes = [tuple(ks) for ks in kernel_sizes]
        for kh, kw in self.kernel_sizes:
            assert kh == kw and kh % 2 == 1, "odd square kernels only"

        middle_blocks = [scales[self.max_scale - d] for d in range(self.n_scales)]
        out_fmaps = scales[0]

        self.blocks = []
        for imiddle, fmaps in enumerate(middle_blocks):
            ks = self.kernel_sizes[-1 - imiddle]
            params, key = self._init_block(key, fmaps, ks)
            self.blocks.append(dict(params=params, block_type='middle',
                                    out_size=self.list_res[-1 - imiddle],
                                    kernel_size=ks))
        ks = self.kernel_sizes[0]
        params, key = self._init_block(key, out_fmaps, ks)
        self.blocks.append(dict(params=params, block_type='out',
                                out_size=None, kernel_size=ks))

    @staticmethod
    def _init_block(key, fmaps, kernel_size):
        kh, kw = kernel_size
        params = []
        for i in range(len(fmaps) - 1):
            key, k_w, k_b = jax.random.split(key, 3)
            fan_in = fmaps[i] * kh * kw
            bound = 1.0 / math.sqrt(fan_in)       # PyTorch Conv2d default init
            w = jax.random.uniform(k_w, (fmaps[i + 1], fmaps[i], kh, kw),
                                   jnp.float32, -bound, bound)
            b = jax.random.uniform(k_b, (fmaps[i + 1],), jnp.float32,
                                   -bound, bound)
            params.append((w, b))
        return params, key

    def __call__(self, x, use_bf16=True):
        assert x.ndim == 4
        n, c0, r, _ = x.shape
        assert r == self.input_res
        assert c0 == self.scales[self.max_scale][0], "scales[-1][0] == C_in"
        mm_dtype = jnp.bfloat16 if use_bf16 else jnp.float32

        l_min = min(rr * rr for rr in self.list_res)
        g = _choose_batch_group(n, l_min)
        steps = n // g
        l_full = r * r
        gl_full = g * l_full

        # Pack G batch items side by side on the lane axis: (steps, C, G*L).
        x_packed = (x.reshape(steps, g, c0, l_full)
                      .transpose(0, 2, 1, 3)
                      .reshape(steps, c0, gl_full))

        inputs = [x_packed]
        in_specs = [pl.BlockSpec((1, c0, gl_full), lambda i: (i, 0, 0))]

        def add_input(arr):
            idx = len(inputs)
            inputs.append(arr)
            in_specs.append(
                pl.BlockSpec(arr.shape, lambda i, nd=arr.ndim: (0,) * nd))
            return idx

        resize_cache = {}

        def get_resize(rin, rout):
            if (rin, rout) not in resize_cache:
                k = _resize_matrix_flat(rin, rout, g).astype(mm_dtype)
                resize_cache[(rin, rout)] = add_input(k)
            return resize_cache[(rin, rout)]

        rowcol_cache = {}

        def get_rowcol(res):
            if res not in rowcol_cache:
                ll = res * res
                pos = np.arange(g * ll, dtype=np.int32) % ll
                row = jnp.asarray((pos // res)[None, :], jnp.int32)
                col = jnp.asarray((pos % res)[None, :], jnp.int32)
                rowcol_cache[res] = (add_input(row), add_input(col))
            return rowcol_cache[res]

        # ---- static execution plan (indices into `inputs`) ----
        plan = []
        res = r
        prev_c = c0
        for iconv, blk in enumerate(self.blocks):
            kh, kw = blk['kernel_size']
            concat_init = iconv > 0
            init_resize = get_resize(r, res) if (concat_init and res != r) else None
            part_channels = [prev_c, c0] if concat_init else [prev_c]
            row_i, col_i = get_rowcol(res)
            layers = []
            params = blk['params']
            for li, (w, b) in enumerate(params):
                cout, cin = int(w.shape[0]), int(w.shape[1])
                if li == 0:
                    assert cin == sum(part_channels), (cin, part_channels)
                    off, chunks = 0, []
                    for c in part_channels:   # split -> no activation concat
                        wp = w[:, off:off + c]
                        chunks.append(jnp.transpose(wp, (0, 2, 3, 1))
                                        .reshape(cout, kh * kw * c))
                        off += c
                    w2d = jnp.concatenate(chunks, axis=1)
                else:
                    w2d = (jnp.transpose(w, (0, 2, 3, 1))
                              .reshape(cout, kh * kw * cin))
                relu = not (li == len(params) - 1
                            and blk['block_type'] == 'out')
                layers.append((add_input(w2d.astype(mm_dtype)),
                               add_input(b.reshape(cout, 1)), relu))
                prev_c = cout
            out_resize = None
            new_res = res
            if blk['block_type'] == 'middle' and blk['out_size'] != res:
                out_resize = get_resize(res, blk['out_size'])
                new_res = blk['out_size']
            plan.append(dict(res=res, kh=kh, kw=kw, concat_init=concat_init,
                             init_resize=init_resize, layers=layers,
                             row=row_i, col=col_i, out_resize=out_resize))
            res = new_res

        out_res, out_c = res, prev_c
        gl_out = g * out_res * out_res

        # ---- the single fused kernel ----
        def kernel(*refs):
            o_ref = refs[-1]
            refs = refs[:-1]
            x0 = refs[0][0]                        # (C_in, G*L_full) f32
            h = x0
            for bp in plan:
                row = refs[bp['row']][...]
                col = refs[bp['col']][...]
                parts = [h]
                if bp['concat_init']:
                    ri = x0
                    if bp['init_resize'] is not None:
                        ri = jnp.dot(ri.astype(mm_dtype),
                                     refs[bp['init_resize']][...],
                                     preferred_element_type=jnp.float32)
                    parts = [h, ri]
                for li, (w_i, b_i, relu) in enumerate(bp['layers']):
                    h = _conv_im2col(parts if li == 0 else [h],
                                     refs[w_i], refs[b_i], row, col,
                                     bp['res'], bp['kh'], bp['kw'],
                                     relu, mm_dtype)
                if bp['out_resize'] is not None:   # trailing Upsample
                    h = jnp.dot(h.astype(mm_dtype),
                                refs[bp['out_resize']][...],
                                preferred_element_type=jnp.float32)
            o_ref[0] = h.astype(o_ref.dtype)

        out = pl.pallas_call(
            kernel,
            out_shape=jax.ShapeDtypeStruct((steps, out_c, gl_out), jnp.float32),
            grid=(steps,),
            in_specs=in_specs,
            out_specs=pl.BlockSpec((1, out_c, gl_out), lambda i: (i, 0, 0)),
            compiler_params=pltpu.CompilerParams(
                dimension_semantics=("parallel",),
                vmem_limit_bytes=64 * 1024 * 1024),
        )(*inputs)

        return (out.reshape(steps, out_c, g, out_res * out_res)
                   .transpose(0, 2, 1, 3)
                   .reshape(n, out_c, out_res, out_res))


# ---------------------------------------------------------------------------
# Pure-JAX reference of the PyTorch forward (for correctness checking)
# ---------------------------------------------------------------------------
def msnet_reference(net, x):
    hi = lax.Precision.HIGHEST
    initial = x
    h = x
    res = net.input_res
    for iconv, blk in enumerate(net.blocks):
        if iconv > 0:
            m = _bilinear_matrix(net.input_res, res)
            tmp = jnp.einsum('nchw,ph,qw->ncpq', initial, m, m, precision=hi)
            h = jnp.concatenate([h, tmp], axis=1)
        kh, kw = blk['kernel_size']
        pad = (kh - 1) // 2
        params = blk['params']
        for li, (w, b) in enumerate(params):
            h = lax.conv_general_dilated(
                h, w, (1, 1), [(pad, pad), (pad, pad)],
                dimension_numbers=('NCHW', 'OIHW', 'NCHW'), precision=hi)
            h = h + b[None, :, None, None]
            if not (li == len(params) - 1 and blk['block_type'] == 'out'):
                h = jnp.maximum(h, 0.0)
        if blk['block_type'] == 'middle':
            m = _bilinear_matrix(res, blk['out_size'])
            h = jnp.einsum('nchw,ph,qw->ncpq', h, m, m, precision=hi)
            res = blk['out_size']
    return h


if __name__ == "__main__":
    key = jax.random.PRNGKey(0)
    key, k_x, k_x2, k_p = jax.random.split(key, 4)

    # MSNet channel constraints:
    #   scales[-1][0] == C_in
    #   scales[i][0]  == scales[i+1][-1] + C_in
    #   scales[0][0]  == scales[0][-1]  + C_in
    scales = [[8, 16, 4], [8, 16, 4], [4, 16, 4]]
    input_res = 16
    c_in = 4

    net = MSNetPallas(scales, kernel_sizes=3, input_res=input_res, key=k_p)

    def check(x, use_bf16, tol):
        y = jax.block_until_ready(
            jax.jit(lambda v: net(v, use_bf16=use_bf16))(x))
        ref = msnet_reference(net, x)
        assert y.shape == ref.shape == (x.shape[0], scales[0][-1],
                                        input_res, input_res), y.shape
        assert bool(jnp.all(jnp.isfinite(y)))
        err = float(jnp.max(jnp.abs(y - ref)))
        assert err <= tol, (use_bf16, x.shape, err)
        return y

    x2 = jax.random.normal(k_x, (2, c_in, input_res, input_res), jnp.float32)
    check(x2, use_bf16=False, tol=3e-2)   # f32-operand path
    check(x2, use_bf16=True, tol=1e-1)    # perf path: bf16 operands, f32 accum

    # Larger batch exercises the batch->lane packing (G>1) path.
    x8 = jax.random.normal(k_x2, (8, c_in, input_res, input_res), jnp.float32)
    check(x8, use_bf16=False, tol=3e-2)
    check(x8, use_bf16=True, tol=1e-1)

    print("KERNEL_OK")
</pallas_src>

<mosaic_0001>
module attributes {stable_mosaic.version = 11 : i64} {
  func.func @kernel(%arg0: i32, %arg1: memref<1x4x256xf32, #tpu.memory_space<vmem>>, %arg2: memref<1x256xi32, #tpu.memory_space<vmem>>, %arg3: memref<1x256xi32, #tpu.memory_space<vmem>>, %arg4: memref<16x36xf32, #tpu.memory_space<vmem>>, %arg5: memref<16x1xf32, #tpu.memory_space<vmem>>, %arg6: memref<4x144xf32, #tpu.memory_space<vmem>>, %arg7: memref<4x1xf32, #tpu.memory_space<vmem>>, %arg8: memref<256x16xf32, #tpu.memory_space<vmem>>, %arg9: memref<1x16xi32, #tpu.memory_space<vmem>>, %arg10: memref<1x16xi32, #tpu.memory_space<vmem>>, %arg11: memref<16x72xf32, #tpu.memory_space<vmem>>, %arg12: memref<16x1xf32, #tpu.memory_space<vmem>>, %arg13: memref<4x144xf32, #tpu.memory_space<vmem>>, %arg14: memref<4x1xf32, #tpu.memory_space<vmem>>, %arg15: memref<16x64xf32, #tpu.memory_space<vmem>>, %arg16: memref<256x64xf32, #tpu.memory_space<vmem>>, %arg17: memref<1x64xi32, #tpu.memory_space<vmem>>, %arg18: memref<1x64xi32, #tpu.memory_space<vmem>>, %arg19: memref<16x72xf32, #tpu.memory_space<vmem>>, %arg20: memref<16x1xf32, #tpu.memory_space<vmem>>, %arg21: memref<4x144xf32, #tpu.memory_space<vmem>>, %arg22: memref<4x1xf32, #tpu.memory_space<vmem>>, %arg23: memref<64x256xf32, #tpu.memory_space<vmem>>, %arg24: memref<16x72xf32, #tpu.memory_space<vmem>>, %arg25: memref<16x1xf32, #tpu.memory_space<vmem>>, %arg26: memref<4x144xf32, #tpu.memory_space<vmem>>, %arg27: memref<4x1xf32, #tpu.memory_space<vmem>>, %arg28: memref<1x4x256xf32, #tpu.memory_space<vmem>>) attributes {dimension_semantics = [#tpu.dimension_semantics<parallel>], iteration_bounds = array<i64: 2>, scalar_prefetch = 0 : i64, scratch_operands = 0 : i64, tpu.core_type = #tpu.core_type<tc>, window_params = [{transform_indices = @transform_0, window_bounds = array<i64: 1, 4, 256>}, {pipeline_mode = #tpu.pipeline_mode<synchronous>, transform_indices = @transform_1, window_bounds = array<i64: 1, 256>}, {pipeline_mode = #tpu.pipeline_mode<synchronous>, transform_indices = @transform_2, window_bounds = array<i64: 1, 256>}, {pipeline_mode = #tpu.pipeline_mode<synchronous>, transform_indices = @transform_3, window_bounds = array<i64: 16, 36>}, {pipeline_mode = #tpu.pipeline_mode<synchronous>, transform_indices = @transform_4, window_bounds = array<i64: 16, 1>}, {pipeline_mode = #tpu.pipeline_mode<synchronous>, transform_indices = @transform_5, window_bounds = array<i64: 4, 144>}, {pipeline_mode = #tpu.pipeline_mode<synchronous>, transform_indices = @transform_6, window_bounds = array<i64: 4, 1>}, {pipeline_mode = #tpu.pipeline_mode<synchronous>, transform_indices = @transform_7, window_bounds = array<i64: 256, 16>}, {pipeline_mode = #tpu.pipeline_mode<synchronous>, transform_indices = @transform_8, window_bounds = array<i64: 1, 16>}, {pipeline_mode = #tpu.pipeline_mode<synchronous>, transform_indices = @transform_9, window_bounds = array<i64: 1, 16>}, {pipeline_mode = #tpu.pipeline_mode<synchronous>, transform_indices = @transform_10, window_bounds = array<i64: 16, 72>}, {pipeline_mode = #tpu.pipeline_mode<synchronous>, transform_indices = @transform_11, window_bounds = array<i64: 16, 1>}, {pipeline_mode = #tpu.pipeline_mode<synchronous>, transform_indices = @transform_12, window_bounds = array<i64: 4, 144>}, {pipeline_mode = #tpu.pipeline_mode<synchronous>, transform_indices = @transform_13, window_bounds = array<i64: 4, 1>}, {pipeline_mode = #tpu.pipeline_mode<synchronous>, transform_indices = @transform_14, window_bounds = array<i64: 16, 64>}, {pipeline_mode = #tpu.pipeline_mode<synchronous>, transform_indices = @transform_15, window_bounds = array<i64: 256, 64>}, {pipeline_mode = #tpu.pipeline_mode<synchronous>, transform_indices = @transform_16, window_bounds = array<i64: 1, 64>}, {pipeline_mode = #tpu.pipeline_mode<synchronous>, transform_indices = @transform_17, window_bounds = array<i64: 1, 64>}, {pipeline_mode = #tpu.pipeline_mode<synchronous>, transform_indices = @transform_18, window_bounds = array<i64: 16, 72>}, {pipeline_mode = #tpu.pipeline_mode<synchronous>, transform_indices = @transform_19, window_bounds = array<i64: 16, 1>}, {pipeline_mode = #tpu.pipeline_mode<synchronous>, transform_indices = @transform_20, window_bounds = array<i64: 4, 144>}, {pipeline_mode = #tpu.pipeline_mode<synchronous>, transform_indices = @transform_21, window_bounds = array<i64: 4, 1>}, {pipeline_mode = #tpu.pipeline_mode<synchronous>, transform_indices = @transform_22, window_bounds = array<i64: 64, 256>}, {pipeline_mode = #tpu.pipeline_mode<synchronous>, transform_indices = @transform_23, window_bounds = array<i64: 16, 72>}, {pipeline_mode = #tpu.pipeline_mode<synchronous>, transform_indices = @transform_24, window_bounds = array<i64: 16, 1>}, {pipeline_mode = #tpu.pipeline_mode<synchronous>, transform_indices = @transform_25, window_bounds = array<i64: 4, 144>}, {pipeline_mode = #tpu.pipeline_mode<synchronous>, transform_indices = @transform_26, window_bounds = array<i64: 4, 1>}, {transform_indices = @transform_27, window_bounds = array<i64: 1, 4, 256>}]} {
    %c0 = arith.constant 0 : index
    %c0_0 = arith.constant 0 : index
    %c0_1 = arith.constant 0 : index
    %0 = vector.load %arg1[%c0, %c0_0, %c0_1] : memref<1x4x256xf32, #tpu.memory_space<vmem>>, vector<1x4x256xf32>
    %1 = vector.shape_cast %0 : vector<1x4x256xf32> to vector<4x256xf32>
    %c0_2 = arith.constant 0 : index
    %c0_3 = arith.constant 0 : index
    %2 = vector.load %arg2[%c0_2, %c0_3] : memref<1x256xi32, #tpu.memory_space<vmem>>, vector<1x256xi32>
    %c0_4 = arith.constant 0 : index
    %c0_5 = arith.constant 0 : index
    %3 = vector.load %arg3[%c0_4, %c0_5] : memref<1x256xi32, #tpu.memory_space<vmem>>, vector<1x256xi32>
    %c17_i32 = arith.constant 17 : i32
    %4 = tpu.dynamic_rotate %1 by %c17_i32 dim 1 : vector<4x256xf32>, i32 -> vector<4x256xf32>
    %c1_i32 = arith.constant 1 : i32
    %5 = vector.broadcast %c1_i32 : i32 to vector<1x256xi32>
    %6 = arith.cmpi sge, %2, %5 : vector<1x256xi32>
    %c1_i32_6 = arith.constant 1 : i32
    %7 = vector.broadcast %c1_i32_6 : i32 to vector<1x256xi32>
    %8 = arith.cmpi sge, %3, %7 : vector<1x256xi32>
    %9 = arith.andi %6, %8 : vector<1x256xi1>
    %cst = arith.constant 0.000000e+00 : f32
    %10 = vector.shape_cast %9 : vector<1x256xi1> to vector<1x256xi1>
    %11 = vector.broadcast %10 : vector<1x256xi1> to vector<4x256xi1>
    %12 = vector.broadcast %cst : f32 to vector<4x256xf32>
    %13 = arith.select %11, %4, %12 : vector<4x256xi1>, vector<4x256xf32>
    %c16_i32 = arith.constant 16 : i32
    %14 = tpu.dynamic_rotate %1 by %c16_i32 dim 1 : vector<4x256xf32>, i32 -> vector<4x256xf32>
    %c1_i32_7 = arith.constant 1 : i32
    %15 = vector.broadcast %c1_i32_7 : i32 to vector<1x256xi32>
    %16 = arith.cmpi sge, %2, %15 : vector<1x256xi32>
    %cst_8 = arith.constant 0.000000e+00 : f32
    %17 = vector.shape_cast %16 : vector<1x256xi1> to vector<1x256xi1>
    %18 = vector.broadcast %17 : vector<1x256xi1> to vector<4x256xi1>
    %19 = vector.broadcast %cst_8 : f32 to vector<4x256xf32>
    %20 = arith.select %18, %14, %19 : vector<4x256xi1>, vector<4x256xf32>
    %c15_i32 = arith.constant 15 : i32
    %21 = tpu.dynamic_rotate %1 by %c15_i32 dim 1 : vector<4x256xf32>, i32 -> vector<4x256xf32>
    %c1_i32_9 = arith.constant 1 : i32
    %22 = vector.broadcast %c1_i32_9 : i32 to vector<1x256xi32>
    %23 = arith.cmpi sge, %2, %22 : vector<1x256xi32>
    %c15_i32_10 = arith.constant 15 : i32
    %24 = vector.broadcast %c15_i32_10 : i32 to vector<1x256xi32>
    %25 = arith.cmpi slt, %3, %24 : vector<1x256xi32>
    %26 = arith.andi %23, %25 : vector<1x256xi1>
    %cst_11 = arith.constant 0.000000e+00 : f32
    %27 = vector.shape_cast %26 : vector<1x256xi1> to vector<1x256xi1>
    %28 = vector.broadcast %27 : vector<1x256xi1> to vector<4x256xi1>
    %29 = vector.broadcast %cst_11 : f32 to vector<4x256xf32>
    %30 = arith.select %28, %21, %29 : vector<4x256xi1>, vector<4x256xf32>
    %c1_i32_12 = arith.constant 1 : i32
    %31 = tpu.dynamic_rotate %1 by %c1_i32_12 dim 1 : vector<4x256xf32>, i32 -> vector<4x256xf32>
    %c1_i32_13 = arith.constant 1 : i32
    %32 = vector.broadcast %c1_i32_13 : i32 to vector<1x256xi32>
    %33 = arith.cmpi sge, %3, %32 : vector<1x256xi32>
    %cst_14 = arith.constant 0.000000e+00 : f32
    %34 = vector.shape_cast %33 : vector<1x256xi1> to vector<1x256xi1>
    %35 = vector.broadcast %34 : vector<1x256xi1> to vector<4x256xi1>
    %36 = vector.broadcast %cst_14 : f32 to vector<4x256xf32>
    %37 = arith.select %35, %31, %36 : vector<4x256xi1>, vector<4x256xf32>
    %c255_i32 = arith.constant 255 : i32
    %38 = tpu.dynamic_rotate %1 by %c255_i32 dim 1 : vector<4x256xf32>, i32 -> vector<4x256xf32>
    %c15_i32_15 = arith.constant 15 : i32
    %39 = vector.broadcast %c15_i32_15 : i32 to vector<1x256xi32>
    %40 = arith.cmpi slt, %3, %39 : vector<1x256xi32>
    %cst_16 = arith.constant 0.000000e+00 : f32
    %41 = vector.shape_cast %40 : vector<1x256xi1> to vector<1x256xi1>
    %42 = vector.broadcast %41 : vector<1x256xi1> to vector<4x256xi1>
    %43 = vector.broadcast %cst_16 : f32 to vector<4x256xf32>
    %44 = arith.select %42, %38, %43 : vector<4x256xi1>, vector<4x256xf32>
    %c241_i32 = arith.constant 241 : i32
    %45 = tpu.dynamic_rotate %1 by %c241_i32 dim 1 : vector<4x256xf32>, i32 -> vector<4x256xf32>
    %c15_i32_17 = arith.constant 15 : i32
    %46 = vector.broadcast %c15_i32_17 : i32 to vector<1x256xi32>
    %47 = arith.cmpi slt, %2, %46 : vector<1x256xi32>
    %c1_i32_18 = arith.constant 1 : i32
    %48 = vector.broadcast %c1_i32_18 : i32 to vector<1x256xi32>
    %49 = arith.cmpi sge, %3, %48 : vector<1x256xi32>
    %50 = arith.andi %47, %49 : vector<1x256xi1>
    %cst_19 = arith.constant 0.000000e+00 : f32
    %51 = vector.shape_cast %50 : vector<1x256xi1> to vector<1x256xi1>
    %52 = vector.broadcast %51 : vector<1x256xi1> to vector<4x256xi1>
    %53 = vector.broadcast %cst_19 : f32 to vector<4x256xf32>
    %54 = arith.select %52, %45, %53 : vector<4x256xi1>, vector<4x256xf32>
    %c240_i32 = arith.constant 240 : i32
    %55 = tpu.dynamic_rotate %1 by %c240_i32 dim 1 : vector<4x256xf32>, i32 -> vector<4x256xf32>
    %c15_i32_20 = arith.constant 15 : i32
    %56 = vector.broadcast %c15_i32_20 : i32 to vector<1x256xi32>
    %57 = arith.cmpi slt, %2, %56 : vector<1x256xi32>
    %cst_21 = arith.constant 0.000000e+00 : f32
    %58 = vector.shape_cast %57 : vector<1x256xi1> to vector<1x256xi1>
    %59 = vector.broadcast %58 : vector<1x256xi1> to vector<4x256xi1>
    %60 = vector.broadcast %cst_21 : f32 to vector<4x256xf32>
    %61 = arith.select %59, %55, %60 : vector<4x256xi1>, vector<4x256xf32>
    %c239_i32 = arith.constant 239 : i32
    %62 = tpu.dynamic_rotate %1 by %c239_i32 dim 1 : vector<4x256xf32>, i32 -> vector<4x256xf32>
    %c15_i32_22 = arith.constant 15 : i32
    %63 = vector.broadcast %c15_i32_22 : i32 to vector<1x256xi32>
    %64 = arith.cmpi slt, %2, %63 : vector<1x256xi32>
    %c15_i32_23 = arith.constant 15 : i32
    %65 = vector.broadcast %c15_i32_23 : i32 to vector<1x256xi32>
    %66 = arith.cmpi slt, %3, %65 : vector<1x256xi32>
    %67 = arith.andi %64, %66 : vector<1x256xi1>
    %cst_24 = arith.constant 0.000000e+00 : f32
    %68 = vector.shape_cast %67 : vector<1x256xi1> to vector<1x256xi1>
    %69 = vector.broadcast %68 : vector<1x256xi1> to vector<4x256xi1>
    %70 = vector.broadcast %cst_24 : f32 to vector<4x256xf32>
    %71 = arith.select %69, %62, %70 : vector<4x256xi1>, vector<4x256xf32>
    %72 = tpu.concatenate %13, %20, %30, %37, %1, %44, %54, %61, %71 in 0 : vector<4x256xf32>, vector<4x256xf32>, vector<4x256xf32>, vector<4x256xf32>, vector<4x256xf32>, vector<4x256xf32>, vector<4x256xf32>, vector<4x256xf32>, vector<4x256xf32> -> vector<36x256xf32>
    %c0_25 = arith.constant 0 : index
    %c0_26 = arith.constant 0 : index
    %73 = vector.load %arg4[%c0_25, %c0_26] : memref<16x36xf32, #tpu.memory_space<vmem>>, vector<16x36xf32>
    %cst_27 = arith.constant dense<0.000000e+00> : vector<16x256xf32>
    %74 = tpu.matmul %73, %72, %cst_27 {dimension_numbers = #tpu.dot_dimension_numbers<[1], [0], [0], [1], [0, 0, 1, 1], [], []>} : vector<16x36xf32>, vector<36x256xf32>, vector<16x256xf32> -> vector<16x256xf32>
    %c0_28 = arith.constant 0 : index
    %c0_29 = arith.constant 0 : index
    %75 = vector.load %arg5[%c0_28, %c0_29] : memref<16x1xf32, #tpu.memory_space<vmem>>, vector<16x1xf32>
    %76 = vector.broadcast %75 : vector<16x1xf32> to vector<16x256xf32>
    %77 = arith.addf %74, %76 : vector<16x256xf32>
    %cst_30 = arith.constant 0.000000e+00 : f32
    %78 = vector.broadcast %cst_30 : f32 to vector<16x256xf32>
    %79 = arith.maximumf %77, %78 : vector<16x256xf32>
    %c17_i32_31 = arith.constant 17 : i32
    %80 = tpu.dynamic_rotate %79 by %c17_i32_31 dim 1 : vector<16x256xf32>, i32 -> vector<16x256xf32>
    %c1_i32_32 = arith.constant 1 : i32
    %81 = vector.broadcast %c1_i32_32 : i32 to vector<1x256xi32>
    %82 = arith.cmpi sge, %2, %81 : vector<1x256xi32>
    %c1_i32_33 = arith.constant 1 : i32
    %83 = vector.broadcast %c1_i32_33 : i32 to vector<1x256xi32>
    %84 = arith.cmpi sge, %3, %83 : vector<1x256xi32>
    %85 = arith.andi %82, %84 : vector<1x256xi1>
    %cst_34 = arith.constant 0.000000e+00 : f32
    %86 = vector.shape_cast %85 : vector<1x256xi1> to vector<1x256xi1>
    %87 = vector.broadcast %86 : vector<1x256xi1> to vector<16x256xi1>
    %88 = vector.broadcast %cst_34 : f32 to vector<16x256xf32>
    %89 = arith.select %87, %80, %88 : vector<16x256xi1>, vector<16x256xf32>
    %c16_i32_35 = arith.constant 16 : i32
    %90 = tpu.dynamic_rotate %79 by %c16_i32_35 dim 1 : vector<16x256xf32>, i32 -> vector<16x256xf32>
    %c1_i32_36 = arith.constant 1 : i32
    %91 = vector.broadcast %c1_i32_36 : i32 to vector<1x256xi32>
    %92 = arith.cmpi sge, %2, %91 : vector<1x256xi32>
    %cst_37 = arith.constant 0.000000e+00 : f32
    %93 = vector.shape_cast %92 : vector<1x256xi1> to vector<1x256xi1>
    %94 = vector.broadcast %93 : vector<1x256xi1> to vector<16x256xi1>
    %95 = vector.broadcast %cst_37 : f32 to vector<16x256xf32>
    %96 = arith.select %94, %90, %95 : vector<16x256xi1>, vector<16x256xf32>
    %c15_i32_38 = arith.constant 15 : i32
    %97 = tpu.dynamic_rotate %79 by %c15_i32_38 dim 1 : vector<16x256xf32>, i32 -> vector<16x256xf32>
    %c1_i32_39 = arith.constant 1 : i32
    %98 = vector.broadcast %c1_i32_39 : i32 to vector<1x256xi32>
    %99 = arith.cmpi sge, %2, %98 : vector<1x256xi32>
    %c15_i32_40 = arith.constant 15 : i32
    %100 = vector.broadcast %c15_i32_40 : i32 to vector<1x256xi32>
    %101 = arith.cmpi slt, %3, %100 : vector<1x256xi32>
    %102 = arith.andi %99, %101 : vector<1x256xi1>
    %cst_41 = arith.constant 0.000000e+00 : f32
    %103 = vector.shape_cast %102 : vector<1x256xi1> to vector<1x256xi1>
    %104 = vector.broadcast %103 : vector<1x256xi1> to vector<16x256xi1>
    %105 = vector.broadcast %cst_41 : f32 to vector<16x256xf32>
    %106 = arith.select %104, %97, %105 : vector<16x256xi1>, vector<16x256xf32>
    %c1_i32_42 = arith.constant 1 : i32
    %107 = tpu.dynamic_rotate %79 by %c1_i32_42 dim 1 : vector<16x256xf32>, i32 -> vector<16x256xf32>
    %c1_i32_43 = arith.constant 1 : i32
    %108 = vector.broadcast %c1_i32_43 : i32 to vector<1x256xi32>
    %109 = arith.cmpi sge, %3, %108 : vector<1x256xi32>
    %cst_44 = arith.constant 0.000000e+00 : f32
    %110 = vector.shape_cast %109 : vector<1x256xi1> to vector<1x256xi1>
    %111 = vector.broadcast %110 : vector<1x256xi1> to vector<16x256xi1>
    %112 = vector.broadcast %cst_44 : f32 to vector<16x256xf32>
    %113 = arith.select %111, %107, %112 : vector<16x256xi1>, vector<16x256xf32>
    %c255_i32_45 = arith.constant 255 : i32
    %114 = tpu.dynamic_rotate %79 by %c255_i32_45 dim 1 : vector<16x256xf32>, i32 -> vector<16x256xf32>
    %c15_i32_46 = arith.constant 15 : i32
    %115 = vector.broadcast %c15_i32_46 : i32 to vector<1x256xi32>
    %116 = arith.cmpi slt, %3, %115 : vector<1x256xi32>
    %cst_47 = arith.constant 0.000000e+00 : f32
    %117 = vector.shape_cast %116 : vector<1x256xi1> to vector<1x256xi1>
    %118 = vector.broadcast %117 : vector<1x256xi1> to vector<16x256xi1>
    %119 = vector.broadcast %cst_47 : f32 to vector<16x256xf32>
    %120 = arith.select %118, %114, %119 : vector<16x256xi1>, vector<16x256xf32>
    %c241_i32_48 = arith.constant 241 : i32
    %121 = tpu.dynamic_rotate %79 by %c241_i32_48 dim 1 : vector<16x256xf32>, i32 -> vector<16x256xf32>
    %c15_i32_49 = arith.constant 15 : i32
    %122 = vector.broadcast %c15_i32_49 : i32 to vector<1x256xi32>
    %123 = arith.cmpi slt, %2, %122 : vector<1x256xi32>
    %c1_i32_50 = arith.constant 1 : i32
    %124 = vector.broadcast %c1_i32_50 : i32 to vector<1x256xi32>
    %125 = arith.cmpi sge, %3, %124 : vector<1x256xi32>
    %126 = arith.andi %123, %125 : vector<1x256xi1>
    %cst_51 = arith.constant 0.000000e+00 : f32
    %127 = vector.shape_cast %126 : vector<1x256xi1> to vector<1x256xi1>
    %128 = vector.broadcast %127 : vector<1x256xi1> to vector<16x256xi1>
    %129 = vector.broadcast %cst_51 : f32 to vector<16x256xf32>
    %130 = arith.select %128, %121, %129 : vector<16x256xi1>, vector<16x256xf32>
    %c240_i32_52 = arith.constant 240 : i32
    %131 = tpu.dynamic_rotate %79 by %c240_i32_52 dim 1 : vector<16x256xf32>, i32 -> vector<16x256xf32>
    %c15_i32_53 = arith.constant 15 : i32
    %132 = vector.broadcast %c15_i32_53 : i32 to vector<1x256xi32>
    %133 = arith.cmpi slt, %2, %132 : vector<1x256xi32>
    %cst_54 = arith.constant 0.000000e+00 : f32
    %134 = vector.shape_cast %133 : vector<1x256xi1> to vector<1x256xi1>
    %135 = vector.broadcast %134 : vector<1x256xi1> to vector<16x256xi1>
    %136 = vector.broadcast %cst_54 : f32 to vector<16x256xf32>
    %137 = arith.select %135, %131, %136 : vector<16x256xi1>, vector<16x256xf32>
    %c239_i32_55 = arith.constant 239 : i32
    %138 = tpu.dynamic_rotate %79 by %c239_i32_55 dim 1 : vector<16x256xf32>, i32 -> vector<16x256xf32>
    %c15_i32_56 = arith.constant 15 : i32
    %139 = vector.broadcast %c15_i32_56 : i32 to vector<1x256xi32>
    %140 = arith.cmpi slt, %2, %139 : vector<1x256xi32>
    %c15_i32_57 = arith.constant 15 : i32
    %141 = vector.broadcast %c15_i32_57 : i32 to vector<1x256xi32>
    %142 = arith.cmpi slt, %3, %141 : vector<1x256xi32>
    %143 = arith.andi %140, %142 : vector<1x256xi1>
    %cst_58 = arith.constant 0.000000e+00 : f32
    %144 = vector.shape_cast %143 : vector<1x256xi1> to vector<1x256xi1>
    %145 = vector.broadcast %144 : vector<1x256xi1> to vector<16x256xi1>
    %146 = vector.broadcast %cst_58 : f32 to vector<16x256xf32>
    %147 = arith.select %145, %138, %146 : vector<16x256xi1>, vector<16x256xf32>
    %148 = tpu.concatenate %89, %96, %106, %113, %79, %120, %130, %137, %147 in 0 : vector<16x256xf32>, vector<16x256xf32>, vector<16x256xf32>, vector<16x256xf32>, vector<16x256xf32>, vector<16x256xf32>, vector<16x256xf32>, vector<16x256xf32>, vector<16x256xf32> -> vector<144x256xf32>
    %c0_59 = arith.constant 0 : index
    %c0_60 = arith.constant 0 : index
    %149 = vector.load %arg6[%c0_59, %c0_60] : memref<4x144xf32, #tpu.memory_space<vmem>>, vector<4x144xf32>
    %cst_61 = arith.constant dense<0.000000e+00> : vector<4x256xf32>
    %150 = tpu.matmul %149, %148, %cst_61 {dimension_numbers = #tpu.dot_dimension_numbers<[1], [0], [0], [1], [0, 0, 1, 1], [], []>} : vector<4x144xf32>, vector<144x256xf32>, vector<4x256xf32> -> vector<4x256xf32>
    %c0_62 = arith.constant 0 : index
    %c0_63 = arith.constant 0 : index
    %151 = vector.load %arg7[%c0_62, %c0_63] : memref<4x1xf32, #tpu.memory_space<vmem>>, vector<4x1xf32>
    %152 = vector.broadcast %151 : vector<4x1xf32> to vector<4x256xf32>
    %153 = arith.addf %150, %152 : vector<4x256xf32>
    %cst_64 = arith.constant 0.000000e+00 : f32
    %154 = vector.broadcast %cst_64 : f32 to vector<4x256xf32>
    %155 = arith.maximumf %153, %154 : vector<4x256xf32>
    %c0_65 = arith.constant 0 : index
    %c0_66 = arith.constant 0 : index
    %156 = vector.load %arg8[%c0_65, %c0_66] : memref<256x16xf32, #tpu.memory_space<vmem>>, vector<256x16xf32>
    %cst_67 = arith.constant dense<0.000000e+00> : vector<4x16xf32>
    %157 = tpu.matmul %155, %156, %cst_67 {dimension_numbers = #tpu.dot_dimension_numbers<[1], [0], [0], [1], [0, 0, 1, 1], [], []>} : vector<4x256xf32>, vector<256x16xf32>, vector<4x16xf32> -> vector<4x16xf32>
    %c0_68 = arith.constant 0 : index
    %c0_69 = arith.constant 0 : index
    %158 = vector.load %arg9[%c0_68, %c0_69] : memref<1x16xi32, #tpu.memory_space<vmem>>, vector<1x16xi32>
    %c0_70 = arith.constant 0 : index
    %c0_71 = arith.constant 0 : index
    %159 = vector.load %arg10[%c0_70, %c0_71] : memref<1x16xi32, #tpu.memory_space<vmem>>, vector<1x16xi32>
    %c0_72 = arith.constant 0 : index
    %c0_73 = arith.constant 0 : index
    %160 = vector.load %arg8[%c0_72, %c0_73] : memref<256x16xf32, #tpu.memory_space<vmem>>, vector<256x16xf32>
    %cst_74 = arith.constant dense<0.000000e+00> : vector<4x16xf32>
    %161 = tpu.matmul %1, %160, %cst_74 {dimension_numbers = #tpu.dot_dimension_numbers<[1], [0], [0], [1], [0, 0, 1, 1], [], []>} : vector<4x256xf32>, vector<256x16xf32>, vector<4x16xf32> -> vector<4x16xf32>
    %162 = vector.extract_strided_slice %157 {offsets = [0, 11], sizes = [4, 5], strides = [1, 1]} : vector<4x16xf32> to vector<4x5xf32>
    %163 = vector.extract_strided_slice %157 {offsets = [0, 0], sizes = [4, 11], strides = [1, 1]} : vector<4x16xf32> to vector<4x11xf32>
    %164 = tpu.concatenate %162, %163 in 1 : vector<4x5xf32>, vector<4x11xf32> -> vector<4x16xf32>
    %c1_i32_75 = arith.constant 1 : i32
    %165 = vector.broadcast %c1_i32_75 : i32 to vector<1x16xi32>
    %166 = arith.cmpi sge, %158, %165 : vector<1x16xi32>
    %c1_i32_76 = arith.constant 1 : i32
    %167 = vector.broadcast %c1_i32_76 : i32 to vector<1x16xi32>
    %168 = arith.cmpi sge, %159, %167 : vector<1x16xi32>
    %169 = arith.andi %166, %168 : vector<1x16xi1>
    %cst_77 = arith.constant 0.000000e+00 : f32
    %170 = vector.shape_cast %169 : vector<1x16xi1> to vector<1x16xi1>
    %171 = vector.broadcast %170 : vector<1x16xi1> to vector<4x16xi1>
    %172 = vector.broadcast %cst_77 : f32 to vector<4x16xf32>
    %173 = arith.select %171, %164, %172 : vector<4x16xi1>, vector<4x16xf32>
    %174 = vector.extract_strided_slice %157 {offsets = [0, 12], sizes = [4, 4], strides = [1, 1]} : vector<4x16xf32> to vector<4x4xf32>
    %175 = vector.extract_strided_slice %157 {offsets = [0, 0], sizes = [4, 12], strides = [1, 1]} : vector<4x16xf32> to vector<4x12xf32>
    %176 = tpu.concatenate %174, %175 in 1 : vector<4x4xf32>, vector<4x12xf32> -> vector<4x16xf32>
    %c1_i32_78 = arith.constant 1 : i32
    %177 = vector.broadcast %c1_i32_78 : i32 to vector<1x16xi32>
    %178 = arith.cmpi sge, %158, %177 : vector<1x16xi32>
    %cst_79 = arith.constant 0.000000e+00 : f32
    %179 = vector.shape_cast %178 : vector<1x16xi1> to vector<1x16xi1>
    %180 = vector.broadcast %179 : vector<1x16xi1> to vector<4x16xi1>
    %181 = vector.broadcast %cst_79 : f32 to vector<4x16xf32>
    %182 = arith.select %180, %176, %181 : vector<4x16xi1>, vector<4x16xf32>
    %183 = vector.extract_strided_slice %157 {offsets = [0, 13], sizes = [4, 3], strides = [1, 1]} : vector<4x16xf32> to vector<4x3xf32>
    %184 = vector.extract_strided_slice %157 {offsets = [0, 0], sizes = [4, 13], strides = [1, 1]} : vector<4x16xf32> to vector<4x13xf32>
    %185 = tpu.concatenate %183, %184 in 1 : vector<4x3xf32>, vector<4x13xf32> -> vector<4x16xf32>
    %c1_i32_80 = arith.constant 1 : i32
    %186 = vector.broadcast %c1_i32_80 : i32 to vector<1x16xi32>
    %187 = arith.cmpi sge, %158, %186 : vector<1x16xi32>
    %c3_i32 = arith.constant 3 : i32
    %188 = vector.broadcast %c3_i32 : i32 to vector<1x16xi32>
    %189 = arith.cmpi slt, %159, %188 : vector<1x16xi32>
    %190 = arith.andi %187, %189 : vector<1x16xi1>
    %cst_81 = arith.constant 0.000000e+00 : f32
    %191 = vector.shape_cast %190 : vector<1x16xi1> to vector<1x16xi1>
    %192 = vector.broadcast %191 : vector<1x16xi1> to vector<4x16xi1>
    %193 = vector.broadcast %cst_81 : f32 to vector<4x16xf32>
    %194 = arith.select %192, %185, %193 : vector<4x16xi1>, vector<4x16xf32>
    %195 = vector.extract_strided_slice %157 {offsets = [0, 15], sizes = [4, 1], strides = [1, 1]} : vector<4x16xf32> to vector<4x1xf32>
    %196 = vector.extract_strided_slice %157 {offsets = [0, 0], sizes = [4, 15], strides = [1, 1]} : vector<4x16xf32> to vector<4x15xf32>
    %197 = tpu.concatenate %195, %196 in 1 : vector<4x1xf32>, vector<4x15xf32> -> vector<4x16xf32>
    %c1_i32_82 = arith.constant 1 : i32
    %198 = vector.broadcast %c1_i32_82 : i32 to vector<1x16xi32>
    %199 = arith.cmpi sge, %159, %198 : vector<1x16xi32>
    %cst_83 = arith.constant 0.000000e+00 : f32
    %200 = vector.shape_cast %199 : vector<1x16xi1> to vector<1x16xi1>
    %201 = vector.broadcast %200 : vector<1x16xi1> to vector<4x16xi1>
    %202 = vector.broadcast %cst_83 : f32 to vector<4x16xf32>
    %203 = arith.select %201, %197, %202 : vector<4x16xi1>, vector<4x16xf32>
    %204 = vector.extract_strided_slice %157 {offsets = [0, 1], sizes = [4, 15], strides = [1, 1]} : vector<4x16xf32> to vector<4x15xf32>
    %205 = vector.extract_strided_slice %157 {offsets = [0, 0], sizes = [4, 1], strides = [1, 1]} : vector<4x16xf32> to vector<4x1xf32>
    %206 = tpu.concatenate %204, %205 in 1 : vector<4x15xf32>, vector<4x1xf32> -> vector<4x16xf32>
    %c3_i32_84 = arith.constant 3 : i32
    %207 = vector.broadcast %c3_i32_84 : i32 to vector<1x16xi32>
    %208 = arith.cmpi slt, %159, %207 : vector<1x16xi32>
    %cst_85 = arith.constant 0.000000e+00 : f32
    %209 = vector.shape_cast %208 : vector<1x16xi1> to vector<1x16xi1>
    %210 = vector.broadcast %209 : vector<1x16xi1> to vector<4x16xi1>
    %211 = vector.broadcast %cst_85 : f32 to vector<4x16xf32>
    %212 = arith.select %210, %206, %211 : vector<4x16xi1>, vector<4x16xf32>
    %213 = vector.extract_strided_slice %157 {offsets = [0, 3], sizes = [4, 13], strides = [1, 1]} : vector<4x16xf32> to vector<4x13xf32>
    %214 = vector.extract_strided_slice %157 {offsets = [0, 0], sizes = [4, 3], strides = [1, 1]} : vector<4x16xf32> to vector<4x3xf32>
    %215 = tpu.concatenate %213, %214 in 1 : vector<4x13xf32>, vector<4x3xf32> -> vector<4x16xf32>
    %c3_i32_86 = arith.constant 3 : i32
    %216 = vector.broadcast %c3_i32_86 : i32 to vector<1x16xi32>
    %217 = arith.cmpi slt, %158, %216 : vector<1x16xi32>
    %c1_i32_87 = arith.constant 1 : i32
    %218 = vector.broadcast %c1_i32_87 : i32 to vector<1x16xi32>
    %219 = arith.cmpi sge, %159, %218 : vector<1x16xi32>
    %220 = arith.andi %217, %219 : vector<1x16xi1>
    %cst_88 = arith.constant 0.000000e+00 : f32
    %221 = vector.shape_cast %220 : vector<1x16xi1> to vector<1x16xi1>
    %222 = vector.broadcast %221 : vector<1x16xi1> to vector<4x16xi1>
    %223 = vector.broadcast %cst_88 : f32 to vector<4x16xf32>
    %224 = arith.select %222, %215, %223 : vector<4x16xi1>, vector<4x16xf32>
    %225 = vector.extract_strided_slice %157 {offsets = [0, 4], sizes = [4, 12], strides = [1, 1]} : vector<4x16xf32> to vector<4x12xf32>
    %226 = vector.extract_strided_slice %157 {offsets = [0, 0], sizes = [4, 4], strides = [1, 1]} : vector<4x16xf32> to vector<4x4xf32>
    %227 = tpu.concatenate %225, %226 in 1 : vector<4x12xf32>, vector<4x4xf32> -> vector<4x16xf32>
    %c3_i32_89 = arith.constant 3 : i32
    %228 = vector.broadcast %c3_i32_89 : i32 to vector<1x16xi32>
    %229 = arith.cmpi slt, %158, %228 : vector<1x16xi32>
    %cst_90 = arith.constant 0.000000e+00 : f32
    %230 = vector.shape_cast %229 : vector<1x16xi1> to vector<1x16xi1>
    %231 = vector.broadcast %230 : vector<1x16xi1> to vector<4x16xi1>
    %232 = vector.broadcast %cst_90 : f32 to vector<4x16xf32>
    %233 = arith.select %231, %227, %232 : vector<4x16xi1>, vector<4x16xf32>
    %234 = vector.extract_strided_slice %157 {offsets = [0, 5], sizes = [4, 11], strides = [1, 1]} : vector<4x16xf32> to vector<4x11xf32>
    %235 = vector.extract_strided_slice %157 {offsets = [0, 0], sizes = [4, 5], strides = [1, 1]} : vector<4x16xf32> to vector<4x5xf32>
    %236 = tpu.concatenate %234, %235 in 1 : vector<4x11xf32>, vector<4x5xf32> -> vector<4x16xf32>
    %c3_i32_91 = arith.constant 3 : i32
    %237 = vector.broadcast %c3_i32_91 : i32 to vector<1x16xi32>
    %238 = arith.cmpi slt, %158, %237 : vector<1x16xi32>
    %c3_i32_92 = arith.constant 3 : i32
    %239 = vector.broadcast %c3_i32_92 : i32 to vector<1x16xi32>
    %240 = arith.cmpi slt, %159, %239 : vector<1x16xi32>
    %241 = arith.andi %238, %240 : vector<1x16xi1>
    %cst_93 = arith.constant 0.000000e+00 : f32
    %242 = vector.shape_cast %241 : vector<1x16xi1> to vector<1x16xi1>
    %243 = vector.broadcast %242 : vector<1x16xi1> to vector<4x16xi1>
    %244 = vector.broadcast %cst_93 : f32 to vector<4x16xf32>
    %245 = arith.select %243, %236, %244 : vector<4x16xi1>, vector<4x16xf32>
    %246 = vector.extract_strided_slice %161 {offsets = [0, 11], sizes = [4, 5], strides = [1, 1]} : vector<4x16xf32> to vector<4x5xf32>
    %247 = vector.extract_strided_slice %161 {offsets = [0, 0], sizes = [4, 11], strides = [1, 1]} : vector<4x16xf32> to vector<4x11xf32>
    %248 = tpu.concatenate %246, %247 in 1 : vector<4x5xf32>, vector<4x11xf32> -> vector<4x16xf32>
    %c1_i32_94 = arith.constant 1 : i32
    %249 = vector.broadcast %c1_i32_94 : i32 to vector<1x16xi32>
    %250 = arith.cmpi sge, %158, %249 : vector<1x16xi32>
    %c1_i32_95 = arith.constant 1 : i32
    %251 = vector.broadcast %c1_i32_95 : i32 to vector<1x16xi32>
    %252 = arith.cmpi sge, %159, %251 : vector<1x16xi32>
    %253 = arith.andi %250, %252 : vector<1x16xi1>
    %cst_96 = arith.constant 0.000000e+00 : f32
    %254 = vector.shape_cast %253 : vector<1x16xi1> to vector<1x16xi1>
    %255 = vector.broadcast %254 : vector<1x16xi1> to vector<4x16xi1>
    %256 = vector.broadcast %cst_96 : f32 to vector<4x16xf32>
    %257 = arith.select %255, %248, %256 : vector<4x16xi1>, vector<4x16xf32>
    %258 = vector.extract_strided_slice %161 {offsets = [0, 12], sizes = [4, 4], strides = [1, 1]} : vector<4x16xf32> to vector<4x4xf32>
    %259 = vector.extract_strided_slice %161 {offsets = [0, 0], sizes = [4, 12], strides = [1, 1]} : vector<4x16xf32> to vector<4x12xf32>
    %260 = tpu.concatenate %258, %259 in 1 : vector<4x4xf32>, vector<4x12xf32> -> vector<4x16xf32>
    %c1_i32_97 = arith.constant 1 : i32
    %261 = vector.broadcast %c1_i32_97 : i32 to vector<1x16xi32>
    %262 = arith.cmpi sge, %158, %261 : vector<1x16xi32>
    %cst_98 = arith.constant 0.000000e+00 : f32
    %263 = vector.shape_cast %262 : vector<1x16xi1> to vector<1x16xi1>
    %264 = vector.broadcast %263 : vector<1x16xi1> to vector<4x16xi1>
    %265 = vector.broadcast %cst_98 : f32 to vector<4x16xf32>
    %266 = arith.select %264, %260, %265 : vector<4x16xi1>, vector<4x16xf32>
    %267 = vector.extract_strided_slice %161 {offsets = [0, 13], sizes = [4, 3], strides = [1, 1]} : vector<4x16xf32> to vector<4x3xf32>
    %268 = vector.extract_strided_slice %161 {offsets = [0, 0], sizes = [4, 13], strides = [1, 1]} : vector<4x16xf32> to vector<4x13xf32>
    %269 = tpu.concatenate %267, %268 in 1 : vector<4x3xf32>, vector<4x13xf32> -> vector<4x16xf32>
    %c1_i32_99 = arith.constant 1 : i32
    %270 = vector.broadcast %c1_i32_99 : i32 to vector<1x16xi32>
    %271 = arith.cmpi sge, %158, %270 : vector<1x16xi32>
    %c3_i32_100 = arith.constant 3 : i32
    %272 = vector.broadcast %c3_i32_100 : i32 to vector<1x16xi32>
    %273 = arith.cmpi slt, %159, %272 : vector<1x16xi32>
    %274 = arith.andi %271, %273 : vector<1x16xi1>
    %cst_101 = arith.constant 0.000000e+00 : f32
    %275 = vector.shape_cast %274 : vector<1x16xi1> to vector<1x16xi1>
    %276 = vector.broadcast %275 : vector<1x16xi1> to vector<4x16xi1>
    %277 = vector.broadcast %cst_101 : f32 to vector<4x16xf32>
    %278 = arith.select %276, %269, %277 : vector<4x16xi1>, vector<4x16xf32>
    %279 = vector.extract_strided_slice %161 {offsets = [0, 15], sizes = [4, 1], strides = [1, 1]} : vector<4x16xf32> to vector<4x1xf32>
    %280 = vector.extract_strided_slice %161 {offsets = [0, 0], sizes = [4, 15], strides = [1, 1]} : vector<4x16xf32> to vector<4x15xf32>
    %281 = tpu.concatenate %279, %280 in 1 : vector<4x1xf32>, vector<4x15xf32> -> vector<4x16xf32>
    %c1_i32_102 = arith.constant 1 : i32
    %282 = vector.broadcast %c1_i32_102 : i32 to vector<1x16xi32>
    %283 = arith.cmpi sge, %159, %282 : vector<1x16xi32>
    %cst_103 = arith.constant 0.000000e+00 : f32
    %284 = vector.shape_cast %283 : vector<1x16xi1> to vector<1x16xi1>
    %285 = vector.broadcast %284 : vector<1x16xi1> to vector<4x16xi1>
    %286 = vector.broadcast %cst_103 : f32 to vector<4x16xf32>
    %287 = arith.select %285, %281, %286 : vector<4x16xi1>, vector<4x16xf32>
    %288 = vector.extract_strided_slice %161 {offsets = [0, 1], sizes = [4, 15], strides = [1, 1]} : vector<4x16xf32> to vector<4x15xf32>
    %289 = vector.extract_strided_slice %161 {offsets = [0, 0], sizes = [4, 1], strides = [1, 1]} : vector<4x16xf32> to vector<4x1xf32>
    %290 = tpu.concatenate %288, %289 in 1 : vector<4x15xf32>, vector<4x1xf32> -> vector<4x16xf32>
    %c3_i32_104 = arith.constant 3 : i32
    %291 = vector.broadcast %c3_i32_104 : i32 to vector<1x16xi32>
    %292 = arith.cmpi slt, %159, %291 : vector<1x16xi32>
    %cst_105 = arith.constant 0.000000e+00 : f32
    %293 = vector.shape_cast %292 : vector<1x16xi1> to vector<1x16xi1>
    %294 = vector.broadcast %293 : vector<1x16xi1> to vector<4x16xi1>
    %295 = vector.broadcast %cst_105 : f32 to vector<4x16xf32>
    %296 = arith.select %294, %290, %295 : vector<4x16xi1>, vector<4x16xf32>
    %297 = vector.extract_strided_slice %161 {offsets = [0, 3], sizes = [4, 13], strides = [1, 1]} : vector<4x16xf32> to vector<4x13xf32>
    %298 = vector.extract_strided_slice %161 {offsets = [0, 0], sizes = [4, 3], strides = [1, 1]} : vector<4x16xf32> to vector<4x3xf32>
    %299 = tpu.concatenate %297, %298 in 1 : vector<4x13xf32>, vector<4x3xf32> -> vector<4x16xf32>
    %c3_i32_106 = arith.constant 3 : i32
    %300 = vector.broadcast %c3_i32_106 : i32 to vector<1x16xi32>
    %301 = arith.cmpi slt, %158, %300 : vector<1x16xi32>
    %c1_i32_107 = arith.constant 1 : i32
    %302 = vector.broadcast %c1_i32_107 : i32 to vector<1x16xi32>
    %303 = arith.cmpi sge, %159, %302 : vector<1x16xi32>
    %304 = arith.andi %301, %303 : vector<1x16xi1>
    %cst_108 = arith.constant 0.000000e+00 : f32
    %305 = vector.shape_cast %304 : vector<1x16xi1> to vector<1x16xi1>
    %306 = vector.broadcast %305 : vector<1x16xi1> to vector<4x16xi1>
    %307 = vector.broadcast %cst_108 : f32 to vector<4x16xf32>
    %308 = arith.select %306, %299, %307 : vector<4x16xi1>, vector<4x16xf32>
    %309 = vector.extract_strided_slice %161 {offsets = [0, 4], sizes = [4, 12], strides = [1, 1]} : vector<4x16xf32> to vector<4x12xf32>
    %310 = vector.extract_strided_slice %161 {offsets = [0, 0], sizes = [4, 4], strides = [1, 1]} : vector<4x16xf32> to vector<4x4xf32>
    %311 = tpu.concatenate %309, %310 in 1 : vector<4x12xf32>, vector<4x4xf32> -> vector<4x16xf32>
    %c3_i32_109 = arith.constant 3 : i32
    %312 = vector.broadcast %c3_i32_109 : i32 to vector<1x16xi32>
    %313 = arith.cmpi slt, %158, %312 : vector<1x16xi32>
    %cst_110 = arith.constant 0.000000e+00 : f32
    %314 = vector.shape_cast %313 : vector<1x16xi1> to vector<1x16xi1>
    %315 = vector.broadcast %314 : vector<1x16xi1> to vector<4x16xi1>
    %316 = vector.broadcast %cst_110 : f32 to vector<4x16xf32>
    %317 = arith.select %315, %311, %316 : vector<4x16xi1>, vector<4x16xf32>
    %318 = vector.extract_strided_slice %161 {offsets = [0, 5], sizes = [4, 11], strides = [1, 1]} : vector<4x16xf32> to vector<4x11xf32>
    %319 = vector.extract_strided_slice %161 {offsets = [0, 0], sizes = [4, 5], strides = [1, 1]} : vector<4x16xf32> to vector<4x5xf32>
    %320 = tpu.concatenate %318, %319 in 1 : vector<4x11xf32>, vector<4x5xf32> -> vector<4x16xf32>
    %c3_i32_111 = arith.constant 3 : i32
    %321 = vector.broadcast %c3_i32_111 : i32 to vector<1x16xi32>
    %322 = arith.cmpi slt, %158, %321 : vector<1x16xi32>
    %c3_i32_112 = arith.constant 3 : i32
    %323 = vector.broadcast %c3_i32_112 : i32 to vector<1x16xi32>
    %324 = arith.cmpi slt, %159, %323 : vector<1x16xi32>
    %325 = arith.andi %322, %324 : vector<1x16xi1>
    %cst_113 = arith.constant 0.000000e+00 : f32
    %326 = vector.shape_cast %325 : vector<1x16xi1> to vector<1x16xi1>
    %327 = vector.broadcast %326 : vector<1x16xi1> to vector<4x16xi1>
    %328 = vector.broadcast %cst_113 : f32 to vector<4x16xf32>
    %329 = arith.select %327, %320, %328 : vector<4x16xi1>, vector<4x16xf32>
    %330 = tpu.concatenate %173, %182, %194, %203, %157, %212, %224, %233, %245, %257, %266, %278, %287, %161, %296, %308 in 0 : vector<4x16xf32>, vector<4x16xf32>, vector<4x16xf32>, vector<4x16xf32>, vector<4x16xf32>, vector<4x16xf32>, vector<4x16xf32>, vector<4x16xf32>, vector<4x16xf32>, vector<4x16xf32>, vector<4x16xf32>, vector<4x16xf32>, vector<4x16xf32>, vector<4x16xf32>, vector<4x16xf32>, vector<4x16xf32> -> vector<64x16xf32>
    %331 = tpu.concatenate %317, %329 in 0 : vector<4x16xf32>, vector<4x16xf32> -> vector<8x16xf32>
    %332 = tpu.concatenate %330, %331 in 0 : vector<64x16xf32>, vector<8x16xf32> -> vector<72x16xf32>
    %c0_114 = arith.constant 0 : index
    %c0_115 = arith.constant 0 : index
    %333 = vector.load %arg11[%c0_114, %c0_115] : memref<16x72xf32, #tpu.memory_space<vmem>>, vector<16x72xf32>
    %cst_116 = arith.constant dense<0.000000e+00> : vector<16x16xf32>
    %334 = tpu.matmul %333, %332, %cst_116 {dimension_numbers = #tpu.dot_dimension_numbers<[1], [0], [0], [1], [0, 0, 1, 1], [], []>} : vector<16x72xf32>, vector<72x16xf32>, vector<16x16xf32> -> vector<16x16xf32>
    %c0_117 = arith.constant 0 : index
    %c0_118 = arith.constant 0 : index
    %335 = vector.load %arg12[%c0_117, %c0_118] : memref<16x1xf32, #tpu.memory_space<vmem>>, vector<16x1xf32>
    %336 = vector.broadcast %335 : vector<16x1xf32> to vector<16x16xf32>
    %337 = arith.addf %334, %336 : vector<16x16xf32>
    %cst_119 = arith.constant 0.000000e+00 : f32
    %338 = vector.broadcast %cst_119 : f32 to vector<16x16xf32>
    %339 = arith.maximumf %337, %338 : vector<16x16xf32>
    %340 = vector.extract_strided_slice %339 {offsets = [0, 11], sizes = [16, 5], strides = [1, 1]} : vector<16x16xf32> to vector<16x5xf32>
    %341 = vector.extract_strided_slice %339 {offsets = [0, 0], sizes = [16, 11], strides = [1, 1]} : vector<16x16xf32> to vector<16x11xf32>
    %342 = tpu.concatenate %340, %341 in 1 : vector<16x5xf32>, vector<16x11xf32> -> vector<16x16xf32>
    %c1_i32_120 = arith.constant 1 : i32
    %343 = vector.broadcast %c1_i32_120 : i32 to vector<1x16xi32>
    %344 = arith.cmpi sge, %158, %343 : vector<1x16xi32>
    %c1_i32_121 = arith.constant 1 : i32
    %345 = vector.broadcast %c1_i32_121 : i32 to vector<1x16xi32>
    %346 = arith.cmpi sge, %159, %345 : vector<1x16xi32>
    %347 = arith.andi %344, %346 : vector<1x16xi1>
    %cst_122 = arith.constant 0.000000e+00 : f32
    %348 = vector.shape_cast %347 : vector<1x16xi1> to vector<1x16xi1>
    %349 = vector.broadcast %348 : vector<1x16xi1> to vector<16x16xi1>
    %350 = vector.broadcast %cst_122 : f32 to vector<16x16xf32>
    %351 = arith.select %349, %342, %350 : vector<16x16xi1>, vector<16x16xf32>
    %352 = vector.extract_strided_slice %339 {offsets = [0, 12], sizes = [16, 4], strides = [1, 1]} : vector<16x16xf32> to vector<16x4xf32>
    %353 = vector.extract_strided_slice %339 {offsets = [0, 0], sizes = [16, 12], strides = [1, 1]} : vector<16x16xf32> to vector<16x12xf32>
    %354 = tpu.concatenate %352, %353 in 1 : vector<16x4xf32>, vector<16x12xf32> -> vector<16x16xf32>
    %c1_i32_123 = arith.constant 1 : i32
    %355 = vector.broadcast %c1_i32_123 : i32 to vector<1x16xi32>
    %356 = arith.cmpi sge, %158, %355 : vector<1x16xi32>
    %cst_124 = arith.constant 0.000000e+00 : f32
    %357 = vector.shape_cast %356 : vector<1x16xi1> to vector<1x16xi1>
    %358 = vector.broadcast %357 : vector<1x16xi1> to vector<16x16xi1>
    %359 = vector.broadcast %cst_124 : f32 to vector<16x16xf32>
    %360 = arith.select %358, %354, %359 : vector<16x16xi1>, vector<16x16xf32>
    %361 = vector.extract_strided_slice %339 {offsets = [0, 13], sizes = [16, 3], strides = [1, 1]} : vector<16x16xf32> to vector<16x3xf32>
    %362 = vector.extract_strided_slice %339 {offsets = [0, 0], sizes = [16, 13], strides = [1, 1]} : vector<16x16xf32> to vector<16x13xf32>
    %363 = tpu.concatenate %361, %362 in 1 : vector<16x3xf32>, vector<16x13xf32> -> vector<16x16xf32>
    %c1_i32_125 = arith.constant 1 : i32
    %364 = vector.broadcast %c1_i32_125 : i32 to vector<1x16xi32>
    %365 = arith.cmpi sge, %158, %364 : vector<1x16xi32>
    %c3_i32_126 = arith.constant 3 : i32
    %366 = vector.broadcast %c3_i32_126 : i32 to vector<1x16xi32>
    %367 = arith.cmpi slt, %159, %366 : vector<1x16xi32>
    %368 = arith.andi %365, %367 : vector<1x16xi1>
    %cst_127 = arith.constant 0.000000e+00 : f32
    %369 = vector.shape_cast %368 : vector<1x16xi1> to vector<1x16xi1>
    %370 = vector.broadcast %369 : vector<1x16xi1> to vector<16x16xi1>
    %371 = vector.broadcast %cst_127 : f32 to vector<16x16xf32>
    %372 = arith.select %370, %363, %371 : vector<16x16xi1>, vector<16x16xf32>
    %373 = vector.extract_strided_slice %339 {offsets = [0, 15], sizes = [16, 1], strides = [1, 1]} : vector<16x16xf32> to vector<16x1xf32>
    %374 = vector.extract_strided_slice %339 {offsets = [0, 0], sizes = [16, 15], strides = [1, 1]} : vector<16x16xf32> to vector<16x15xf32>
    %375 = tpu.concatenate %373, %374 in 1 : vector<16x1xf32>, vector<16x15xf32> -> vector<16x16xf32>
    %c1_i32_128 = arith.constant 1 : i32
    %376 = vector.broadcast %c1_i32_128 : i32 to vector<1x16xi32>
    %377 = arith.cmpi sge, %159, %376 : vector<1x16xi32>
    %cst_129 = arith.constant 0.000000e+00 : f32
    %378 = vector.shape_cast %377 : vector<1x16xi1> to vector<1x16xi1>
    %379 = vector.broadcast %378 : vector<1x16xi1> to vector<16x16xi1>
    %380 = vector.broadcast %cst_129 : f32 to vector<16x16xf32>
    %381 = arith.select %379, %375, %380 : vector<16x16xi1>, vector<16x16xf32>
    %382 = vector.extract_strided_slice %339 {offsets = [0, 1], sizes = [16, 15], strides = [1, 1]} : vector<16x16xf32> to vector<16x15xf32>
    %383 = vector.extract_strided_slice %339 {offsets = [0, 0], sizes = [16, 1], strides = [1, 1]} : vector<16x16xf32> to vector<16x1xf32>
    %384 = tpu.concatenate %382, %383 in 1 : vector<16x15xf32>, vector<16x1xf32> -> vector<16x16xf32>
    %c3_i32_130 = arith.constant 3 : i32
    %385 = vector.broadcast %c3_i32_130 : i32 to vector<1x16xi32>
    %386 = arith.cmpi slt, %159, %385 : vector<1x16xi32>
    %cst_131 = arith.constant 0.000000e+00 : f32
    %387 = vector.shape_cast %386 : vector<1x16xi1> to vector<1x16xi1>
    %388 = vector.broadcast %387 : vector<1x16xi1> to vector<16x16xi1>
    %389 = vector.broadcast %cst_131 : f32 to vector<16x16xf32>
    %390 = arith.select %388, %384, %389 : vector<16x16xi1>, vector<16x16xf32>
    %391 = vector.extract_strided_slice %339 {offsets = [0, 3], sizes = [16, 13], strides = [1, 1]} : vector<16x16xf32> to vector<16x13xf32>
    %392 = vector.extract_strided_slice %339 {offsets = [0, 0], sizes = [16, 3], strides = [1, 1]} : vector<16x16xf32> to vector<16x3xf32>
    %393 = tpu.concatenate %391, %392 in 1 : vector<16x13xf32>, vector<16x3xf32> -> vector<16x16xf32>
    %c3_i32_132 = arith.constant 3 : i32
    %394 = vector.broadcast %c3_i32_132 : i32 to vector<1x16xi32>
    %395 = arith.cmpi slt, %158, %394 : vector<1x16xi32>
    %c1_i32_133 = arith.constant 1 : i32
    %396 = vector.broadcast %c1_i32_133 : i32 to vector<1x16xi32>
    %397 = arith.cmpi sge, %159, %396 : vector<1x16xi32>
    %398 = arith.andi %395, %397 : vector<1x16xi1>
    %cst_134 = arith.constant 0.000000e+00 : f32
    %399 = vector.shape_cast %398 : vector<1x16xi1> to vector<1x16xi1>
    %400 = vector.broadcast %399 : vector<1x16xi1> to vector<16x16xi1>
    %401 = vector.broadcast %cst_134 : f32 to vector<16x16xf32>
    %402 = arith.select %400, %393, %401 : vector<16x16xi1>, vector<16x16xf32>
    %403 = vector.extract_strided_slice %339 {offsets = [0, 4], sizes = [16, 12], strides = [1, 1]} : vector<16x16xf32> to vector<16x12xf32>
    %404 = vector.extract_strided_slice %339 {offsets = [0, 0], sizes = [16, 4], strides = [1, 1]} : vector<16x16xf32> to vector<16x4xf32>
    %405 = tpu.concatenate %403, %404 in 1 : vector<16x12xf32>, vector<16x4xf32> -> vector<16x16xf32>
    %c3_i32_135 = arith.constant 3 : i32
    %406 = vector.broadcast %c3_i32_135 : i32 to vector<1x16xi32>
    %407 = arith.cmpi slt, %158, %406 : vector<1x16xi32>
    %cst_136 = arith.constant 0.000000e+00 : f32
    %408 = vector.shape_cast %407 : vector<1x16xi1> to vector<1x16xi1>
    %409 = vector.broadcast %408 : vector<1x16xi1> to vector<16x16xi1>
    %410 = vector.broadcast %cst_136 : f32 to vector<16x16xf32>
    %411 = arith.select %409, %405, %410 : vector<16x16xi1>, vector<16x16xf32>
    %412 = vector.extract_strided_slice %339 {offsets = [0, 5], sizes = [16, 11], strides = [1, 1]} : vector<16x16xf32> to vector<16x11xf32>
    %413 = vector.extract_strided_slice %339 {offsets = [0, 0], sizes = [16, 5], strides = [1, 1]} : vector<16x16xf32> to vector<16x5xf32>
    %414 = tpu.concatenate %412, %413 in 1 : vector<16x11xf32>, vector<16x5xf32> -> vector<16x16xf32>
    %c3_i32_137 = arith.constant 3 : i32
    %415 = vector.broadcast %c3_i32_137 : i32 to vector<1x16xi32>
    %416 = arith.cmpi slt, %158, %415 : vector<1x16xi32>
    %c3_i32_138 = arith.constant 3 : i32
    %417 = vector.broadcast %c3_i32_138 : i32 to vector<1x16xi32>
    %418 = arith.cmpi slt, %159, %417 : vector<1x16xi32>
    %419 = arith.andi %416, %418 : vector<1x16xi1>
    %cst_139 = arith.constant 0.000000e+00 : f32
    %420 = vector.shape_cast %419 : vector<1x16xi1> to vector<1x16xi1>
    %421 = vector.broadcast %420 : vector<1x16xi1> to vector<16x16xi1>
    %422 = vector.broadcast %cst_139 : f32 to vector<16x16xf32>
    %423 = arith.select %421, %414, %422 : vector<16x16xi1>, vector<16x16xf32>
    %424 = tpu.concatenate %351, %360, %372, %381, %339, %390, %402, %411, %423 in 0 : vector<16x16xf32>, vector<16x16xf32>, vector<16x16xf32>, vector<16x16xf32>, vector<16x16xf32>, vector<16x16xf32>, vector<16x16xf32>, vector<16x16xf32>, vector<16x16xf32> -> vector<144x16xf32>
    %c0_140 = arith.constant 0 : index
    %c0_141 = arith.constant 0 : index
    %425 = vector.load %arg13[%c0_140, %c0_141] : memref<4x144xf32, #tpu.memory_space<vmem>>, vector<4x144xf32>
    %cst_142 = arith.constant dense<0.000000e+00> : vector<4x16xf32>
    %426 = tpu.matmul %425, %424, %cst_142 {dimension_numbers = #tpu.dot_dimension_numbers<[1], [0], [0], [1], [0, 0, 1, 1], [], []>} : vector<4x144xf32>, vector<144x16xf32>, vector<4x16xf32> -> vector<4x16xf32>
    %c0_143 = arith.constant 0 : index
    %c0_144 = arith.constant 0 : index
    %427 = vector.load %arg14[%c0_143, %c0_144] : memref<4x1xf32, #tpu.memory_space<vmem>>, vector<4x1xf32>
    %428 = vector.broadcast %427 : vector<4x1xf32> to vector<4x16xf32>
    %429 = arith.addf %426, %428 : vector<4x16xf32>
    %cst_145 = arith.constant 0.000000e+00 : f32
    %430 = vector.broadcast %cst_145 : f32 to vector<4x16xf32>
    %431 = arith.maximumf %429, %430 : vector<4x16xf32>
    %c0_146 = arith.constant 0 : index
    %c0_147 = arith.constant 0 : index
    %432 = vector.load %arg15[%c0_146, %c0_147] : memref<16x64xf32, #tpu.memory_space<vmem>>, vector<16x64xf32>
    %cst_148 = arith.constant dense<0.000000e+00> : vector<4x64xf32>
    %433 = tpu.matmul %431, %432, %cst_148 {dimension_numbers = #tpu.dot_dimension_numbers<[1], [0], [0], [1], [0, 0, 1, 1], [], []>} : vector<4x16xf32>, vector<16x64xf32>, vector<4x64xf32> -> vector<4x64xf32>
    %c0_149 = arith.constant 0 : index
    %c0_150 = arith.constant 0 : index
    %434 = vector.load %arg17[%c0_149, %c0_150] : memref<1x64xi32, #tpu.memory_space<vmem>>, vector<1x64xi32>
    %c0_151 = arith.constant 0 : index
    %c0_152 = arith.constant 0 : index
    %435 = vector.load %arg18[%c0_151, %c0_152] : memref<1x64xi32, #tpu.memory_space<vmem>>, vector<1x64xi32>
    %c0_153 = arith.constant 0 : index
    %c0_154 = arith.constant 0 : index
    %436 = vector.load %arg16[%c0_153, %c0_154] : memref<256x64xf32, #tpu.memory_space<vmem>>, vector<256x64xf32>
    %cst_155 = arith.constant dense<0.000000e+00> : vector<4x64xf32>
    %437 = tpu.matmul %1, %436, %cst_155 {dimension_numbers = #tpu.dot_dimension_numbers<[1], [0], [0], [1], [0, 0, 1, 1], [], []>} : vector<4x256xf32>, vector<256x64xf32>, vector<4x64xf32> -> vector<4x64xf32>
    %438 = vector.extract_strided_slice %433 {offsets = [0, 55], sizes = [4, 9], strides = [1, 1]} : vector<4x64xf32> to vector<4x9xf32>
    %439 = vector.extract_strided_slice %433 {offsets = [0, 0], sizes = [4, 55], strides = [1, 1]} : vector<4x64xf32> to vector<4x55xf32>
    %440 = tpu.concatenate %438, %439 in 1 : vector<4x9xf32>, vector<4x55xf32> -> vector<4x64xf32>
    %c1_i32_156 = arith.constant 1 : i32
    %441 = vector.broadcast %c1_i32_156 : i32 to vector<1x64xi32>
    %442 = arith.cmpi sge, %434, %441 : vector<1x64xi32>
    %c1_i32_157 = arith.constant 1 : i32
    %443 = vector.broadcast %c1_i32_157 : i32 to vector<1x64xi32>
    %444 = arith.cmpi sge, %435, %443 : vector<1x64xi32>
    %445 = arith.andi %442, %444 : vector<1x64xi1>
    %cst_158 = arith.constant 0.000000e+00 : f32
    %446 = vector.shape_cast %445 : vector<1x64xi1> to vector<1x64xi1>
    %447 = vector.broadcast %446 : vector<1x64xi1> to vector<4x64xi1>
    %448 = vector.broadcast %cst_158 : f32 to vector<4x64xf32>
    %449 = arith.select %447, %440, %448 : vector<4x64xi1>, vector<4x64xf32>
    %450 = vector.extract_strided_slice %433 {offsets = [0, 56], sizes = [4, 8], strides = [1, 1]} : vector<4x64xf32> to vector<4x8xf32>
    %451 = vector.extract_strided_slice %433 {offsets = [0, 0], sizes = [4, 56], strides = [1, 1]} : vector<4x64xf32> to vector<4x56xf32>
    %452 = tpu.concatenate %450, %451 in 1 : vector<4x8xf32>, vector<4x56xf32> -> vector<4x64xf32>
    %c1_i32_159 = arith.constant 1 : i32
    %453 = vector.broadcast %c1_i32_159 : i32 to vector<1x64xi32>
    %454 = arith.cmpi sge, %434, %453 : vector<1x64xi32>
    %cst_160 = arith.constant 0.000000e+00 : f32
    %455 = vector.shape_cast %454 : vector<1x64xi1> to vector<1x64xi1>
    %456 = vector.broadcast %455 : vector<1x64xi1> to vector<4x64xi1>
    %457 = vector.broadcast %cst_160 : f32 to vector<4x64xf32>
    %458 = arith.select %456, %452, %457 : vector<4x64xi1>, vector<4x64xf32>
    %459 = vector.extract_strided_slice %433 {offsets = [0, 57], sizes = [4, 7], strides = [1, 1]} : vector<4x64xf32> to vector<4x7xf32>
    %460 = vector.extract_strided_slice %433 {offsets = [0, 0], sizes = [4, 57], strides = [1, 1]} : vector<4x64xf32> to vector<4x57xf32>
    %461 = tpu.concatenate %459, %460 in 1 : vector<4x7xf32>, vector<4x57xf32> -> vector<4x64xf32>
    %c1_i32_161 = arith.constant 1 : i32
    %462 = vector.broadcast %c1_i32_161 : i32 to vector<1x64xi32>
    %463 = arith.cmpi sge, %434, %462 : vector<1x64xi32>
    %c7_i32 = arith.constant 7 : i32
    %464 = vector.broadcast %c7_i32 : i32 to vector<1x64xi32>
    %465 = arith.cmpi slt, %435, %464 : vector<1x64xi32>
    %466 = arith.andi %463, %465 : vector<1x64xi1>
    %cst_162 = arith.constant 0.000000e+00 : f32
    %467 = vector.shape_cast %466 : vector<1x64xi1> to vector<1x64xi1>
    %468 = vector.broadcast %467 : vector<1x64xi1> to vector<4x64xi1>
    %469 = vector.broadcast %cst_162 : f32 to vector<4x64xf32>
    %470 = arith.select %468, %461, %469 : vector<4x64xi1>, vector<4x64xf32>
    %471 = vector.extract_strided_slice %433 {offsets = [0, 63], sizes = [4, 1], strides = [1, 1]} : vector<4x64xf32> to vector<4x1xf32>
    %472 = vector.extract_strided_slice %433 {offsets = [0, 0], sizes = [4, 63], strides = [1, 1]} : vector<4x64xf32> to vector<4x63xf32>
    %473 = tpu.concatenate %471, %472 in 1 : vector<4x1xf32>, vector<4x63xf32> -> vector<4x64xf32>
    %c1_i32_163 = arith.constant 1 : i32
    %474 = vector.broadcast %c1_i32_163 : i32 to vector<1x64xi32>
    %475 = arith.cmpi sge, %435, %474 : vector<1x64xi32>
    %cst_164 = arith.constant 0.000000e+00 : f32
    %476 = vector.shape_cast %475 : vector<1x64xi1> to vector<1x64xi1>
    %477 = vector.broadcast %476 : vector<1x64xi1> to vector<4x64xi1>
    %478 = vector.broadcast %cst_164 : f32 to vector<4x64xf32>
    %479 = arith.select %477, %473, %478 : vector<4x64xi1>, vector<4x64xf32>
    %480 = vector.extract_strided_slice %433 {offsets = [0, 1], sizes = [4, 63], strides = [1, 1]} : vector<4x64xf32> to vector<4x63xf32>
    %481 = vector.extract_strided_slice %433 {offsets = [0, 0], sizes = [4, 1], strides = [1, 1]} : vector<4x64xf32> to vector<4x1xf32>
    %482 = tpu.concatenate %480, %481 in 1 : vector<4x63xf32>, vector<4x1xf32> -> vector<4x64xf32>
    %c7_i32_165 = arith.constant 7 : i32
    %483 = vector.broadcast %c7_i32_165 : i32 to vector<1x64xi32>
    %484 = arith.cmpi slt, %435, %483 : vector<1x64xi32>
    %cst_166 = arith.constant 0.000000e+00 : f32
    %485 = vector.shape_cast %484 : vector<1x64xi1> to vector<1x64xi1>
    %486 = vector.broadcast %485 : vector<1x64xi1> to vector<4x64xi1>
    %487 = vector.broadcast %cst_166 : f32 to vector<4x64xf32>
    %488 = arith.select %486, %482, %487 : vector<4x64xi1>, vector<4x64xf32>
    %489 = vector.extract_strided_slice %433 {offsets = [0, 7], sizes = [4, 57], strides = [1, 1]} : vector<4x64xf32> to vector<4x57xf32>
    %490 = vector.extract_strided_slice %433 {offsets = [0, 0], sizes = [4, 7], strides = [1, 1]} : vector<4x64xf32> to vector<4x7xf32>
    %491 = tpu.concatenate %489, %490 in 1 : vector<4x57xf32>, vector<4x7xf32> -> vector<4x64xf32>
    %c7_i32_167 = arith.constant 7 : i32
    %492 = vector.broadcast %c7_i32_167 : i32 to vector<1x64xi32>
    %493 = arith.cmpi slt, %434, %492 : vector<1x64xi32>
    %c1_i32_168 = arith.constant 1 : i32
    %494 = vector.broadcast %c1_i32_168 : i32 to vector<1x64xi32>
    %495 = arith.cmpi sge, %435, %494 : vector<1x64xi32>
    %496 = arith.andi %493, %495 : vector<1x64xi1>
    %cst_169 = arith.constant 0.000000e+00 : f32
    %497 = vector.shape_cast %496 : vector<1x64xi1> to vector<1x64xi1>
    %498 = vector.broadcast %497 : vector<1x64xi1> to vector<4x64xi1>
    %499 = vector.broadcast %cst_169 : f32 to vector<4x64xf32>
    %500 = arith.select %498, %491, %499 : vector<4x64xi1>, vector<4x64xf32>
    %501 = vector.extract_strided_slice %433 {offsets = [0, 8], sizes = [4, 56], strides = [1, 1]} : vector<4x64xf32> to vector<4x56xf32>
    %502 = vector.extract_strided_slice %433 {offsets = [0, 0], sizes = [4, 8], strides = [1, 1]} : vector<4x64xf32> to vector<4x8xf32>
    %503 = tpu.concatenate %501, %502 in 1 : vector<4x56xf32>, vector<4x8xf32> -> vector<4x64xf32>
    %c7_i32_170 = arith.constant 7 : i32
    %504 = vector.broadcast %c7_i32_170 : i32 to vector<1x64xi32>
    %505 = arith.cmpi slt, %434, %504 : vector<1x64xi32>
    %cst_171 = arith.constant 0.000000e+00 : f32
    %506 = vector.shape_cast %505 : vector<1x64xi1> to vector<1x64xi1>
    %507 = vector.broadcast %506 : vector<1x64xi1> to vector<4x64xi1>
    %508 = vector.broadcast %cst_171 : f32 to vector<4x64xf32>
    %509 = arith.select %507, %503, %508 : vector<4x64xi1>, vector<4x64xf32>
    %510 = vector.extract_strided_slice %433 {offsets = [0, 9], sizes = [4, 55], strides = [1, 1]} : vector<4x64xf32> to vector<4x55xf32>
    %511 = vector.extract_strided_slice %433 {offsets = [0, 0], sizes = [4, 9], strides = [1, 1]} : vector<4x64xf32> to vector<4x9xf32>
    %512 = tpu.concatenate %510, %511 in 1 : vector<4x55xf32>, vector<4x9xf32> -> vector<4x64xf32>
    %c7_i32_172 = arith.constant 7 : i32
    %513 = vector.broadcast %c7_i32_172 : i32 to vector<1x64xi32>
    %514 = arith.cmpi slt, %434, %513 : vector<1x64xi32>
    %c7_i32_173 = arith.constant 7 : i32
    %515 = vector.broadcast %c7_i32_173 : i32 to vector<1x64xi32>
    %516 = arith.cmpi slt, %435, %515 : vector<1x64xi32>
    %517 = arith.andi %514, %516 : vector<1x64xi1>
    %cst_174 = arith.constant 0.000000e+00 : f32
    %518 = vector.shape_cast %517 : vector<1x64xi1> to vector<1x64xi1>
    %519 = vector.broadcast %518 : vector<1x64xi1> to vector<4x64xi1>
    %520 = vector.broadcast %cst_174 : f32 to vector<4x64xf32>
    %521 = arith.select %519, %512, %520 : vector<4x64xi1>, vector<4x64xf32>
    %522 = vector.extract_strided_slice %437 {offsets = [0, 55], sizes = [4, 9], strides = [1, 1]} : vector<4x64xf32> to vector<4x9xf32>
    %523 = vector.extract_strided_slice %437 {offsets = [0, 0], sizes = [4, 55], strides = [1, 1]} : vector<4x64xf32> to vector<4x55xf32>
    %524 = tpu.concatenate %522, %523 in 1 : vector<4x9xf32>, vector<4x55xf32> -> vector<4x64xf32>
    %c1_i32_175 = arith.constant 1 : i32
    %525 = vector.broadcast %c1_i32_175 : i32 to vector<1x64xi32>
    %526 = arith.cmpi sge, %434, %525 : vector<1x64xi32>
    %c1_i32_176 = arith.constant 1 : i32
    %527 = vector.broadcast %c1_i32_176 : i32 to vector<1x64xi32>
    %528 = arith.cmpi sge, %435, %527 : vector<1x64xi32>
    %529 = arith.andi %526, %528 : vector<1x64xi1>
    %cst_177 = arith.constant 0.000000e+00 : f32
    %530 = vector.shape_cast %529 : vector<1x64xi1> to vector<1x64xi1>
    %531 = vector.broadcast %530 : vector<1x64xi1> to vector<4x64xi1>
    %532 = vector.broadcast %cst_177 : f32 to vector<4x64xf32>
    %533 = arith.select %531, %524, %532 : vector<4x64xi1>, vector<4x64xf32>
    %534 = vector.extract_strided_slice %437 {offsets = [0, 56], sizes = [4, 8], strides = [1, 1]} : vector<4x64xf32> to vector<4x8xf32>
    %535 = vector.extract_strided_slice %437 {offsets = [0, 0], sizes = [4, 56], strides = [1, 1]} : vector<4x64xf32> to vector<4x56xf32>
    %536 = tpu.concatenate %534, %535 in 1 : vector<4x8xf32>, vector<4x56xf32> -> vector<4x64xf32>
    %c1_i32_178 = arith.constant 1 : i32
    %537 = vector.broadcast %c1_i32_178 : i32 to vector<1x64xi32>
    %538 = arith.cmpi sge, %434, %537 : vector<1x64xi32>
    %cst_179 = arith.constant 0.000000e+00 : f32
    %539 = vector.shape_cast %538 : vector<1x64xi1> to vector<1x64xi1>
    %540 = vector.broadcast %539 : vector<1x64xi1> to vector<4x64xi1>
    %541 = vector.broadcast %cst_179 : f32 to vector<4x64xf32>
    %542 = arith.select %540, %536, %541 : vector<4x64xi1>, vector<4x64xf32>
    %543 = vector.extract_strided_slice %437 {offsets = [0, 57], sizes = [4, 7], strides = [1, 1]} : vector<4x64xf32> to vector<4x7xf32>
    %544 = vector.extract_strided_slice %437 {offsets = [0, 0], sizes = [4, 57], strides = [1, 1]} : vector<4x64xf32> to vector<4x57xf32>
    %545 = tpu.concatenate %543, %544 in 1 : vector<4x7xf32>, vector<4x57xf32> -> vector<4x64xf32>
    %c1_i32_180 = arith.constant 1 : i32
    %546 = vector.broadcast %c1_i32_180 : i32 to vector<1x64xi32>
    %547 = arith.cmpi sge, %434, %546 : vector<1x64xi32>
    %c7_i32_181 = arith.constant 7 : i32
    %548 = vector.broadcast %c7_i32_181 : i32 to vector<1x64xi32>
    %549 = arith.cmpi slt, %435, %548 : vector<1x64xi32>
    %550 = arith.andi %547, %549 : vector<1x64xi1>
    %cst_182 = arith.constant 0.000000e+00 : f32
    %551 = vector.shape_cast %550 : vector<1x64xi1> to vector<1x64xi1>
    %552 = vector.broadcast %551 : vector<1x64xi1> to vector<4x64xi1>
    %553 = vector.broadcast %cst_182 : f32 to vector<4x64xf32>
    %554 = arith.select %552, %545, %553 : vector<4x64xi1>, vector<4x64xf32>
    %555 = vector.extract_strided_slice %437 {offsets = [0, 63], sizes = [4, 1], strides = [1, 1]} : vector<4x64xf32> to vector<4x1xf32>
    %556 = vector.extract_strided_slice %437 {offsets = [0, 0], sizes = [4, 63], strides = [1, 1]} : vector<4x64xf32> to vector<4x63xf32>
    %557 = tpu.concatenate %555, %556 in 1 : vector<4x1xf32>, vector<4x63xf32> -> vector<4x64xf32>
    %c1_i32_183 = arith.constant 1 : i32
    %558 = vector.broadcast %c1_i32_183 : i32 to vector<1x64xi32>
    %559 = arith.cmpi sge, %435, %558 : vector<1x64xi32>
    %cst_184 = arith.constant 0.000000e+00 : f32
    %560 = vector.shape_cast %559 : vector<1x64xi1> to vector<1x64xi1>
    %561 = vector.broadcast %560 : vector<1x64xi1> to vector<4x64xi1>
    %562 = vector.broadcast %cst_184 : f32 to vector<4x64xf32>
    %563 = arith.select %561, %557, %562 : vector<4x64xi1>, vector<4x64xf32>
    %564 = vector.extract_strided_slice %437 {offsets = [0, 1], sizes = [4, 63], strides = [1, 1]} : vector<4x64xf32> to vector<4x63xf32>
    %565 = vector.extract_strided_slice %437 {offsets = [0, 0], sizes = [4, 1], strides = [1, 1]} : vector<4x64xf32> to vector<4x1xf32>
    %566 = tpu.concatenate %564, %565 in 1 : vector<4x63xf32>, vector<4x1xf32> -> vector<4x64xf32>
    %c7_i32_185 = arith.constant 7 : i32
    %567 = vector.broadcast %c7_i32_185 : i32 to vector<1x64xi32>
    %568 = arith.cmpi slt, %435, %567 : vector<1x64xi32>
    %cst_186 = arith.constant 0.000000e+00 : f32
    %569 = vector.shape_cast %568 : vector<1x64xi1> to vector<1x64xi1>
    %570 = vector.broadcast %569 : vector<1x64xi1> to vector<4x64xi1>
    %571 = vector.broadcast %cst_186 : f32 to vector<4x64xf32>
    %572 = arith.select %570, %566, %571 : vector<4x64xi1>, vector<4x64xf32>
    %573 = vector.extract_strided_slice %437 {offsets = [0, 7], sizes = [4, 57], strides = [1, 1]} : vector<4x64xf32> to vector<4x57xf32>
    %574 = vector.extract_strided_slice %437 {offsets = [0, 0], sizes = [4, 7], strides = [1, 1]} : vector<4x64xf32> to vector<4x7xf32>
    %575 = tpu.concatenate %573, %574 in 1 : vector<4x57xf32>, vector<4x7xf32> -> vector<4x64xf32>
    %c7_i32_187 = arith.constant 7 : i32
    %576 = vector.broadcast %c7_i32_187 : i32 to vector<1x64xi32>
    %577 = arith.cmpi slt, %434, %576 : vector<1x64xi32>
    %c1_i32_188 = arith.constant 1 : i32
    %578 = vector.broadcast %c1_i32_188 : i32 to vector<1x64xi32>
    %579 = arith.cmpi sge, %435, %578 : vector<1x64xi32>
    %580 = arith.andi %577, %579 : vector<1x64xi1>
    %cst_189 = arith.constant 0.000000e+00 : f32
    %581 = vector.shape_cast %580 : vector<1x64xi1> to vector<1x64xi1>
    %582 = vector.broadcast %581 : vector<1x64xi1> to vector<4x64xi1>
    %583 = vector.broadcast %cst_189 : f32 to vector<4x64xf32>
    %584 = arith.select %582, %575, %583 : vector<4x64xi1>, vector<4x64xf32>
    %585 = vector.extract_strided_slice %437 {offsets = [0, 8], sizes = [4, 56], strides = [1, 1]} : vector<4x64xf32> to vector<4x56xf32>
    %586 = vector.extract_strided_slice %437 {offsets = [0, 0], sizes = [4, 8], strides = [1, 1]} : vector<4x64xf32> to vector<4x8xf32>
    %587 = tpu.concatenate %585, %586 in 1 : vector<4x56xf32>, vector<4x8xf32> -> vector<4x64xf32>
    %c7_i32_190 = arith.constant 7 : i32
    %588 = vector.broadcast %c7_i32_190 : i32 to vector<1x64xi32>
    %589 = arith.cmpi slt, %434, %588 : vector<1x64xi32>
    %cst_191 = arith.constant 0.000000e+00 : f32
    %590 = vector.shape_cast %589 : vector<1x64xi1> to vector<1x64xi1>
    %591 = vector.broadcast %590 : vector<1x64xi1> to vector<4x64xi1>
    %592 = vector.broadcast %cst_191 : f32 to vector<4x64xf32>
    %593 = arith.select %591, %587, %592 : vector<4x64xi1>, vector<4x64xf32>
    %594 = vector.extract_strided_slice %437 {offsets = [0, 9], sizes = [4, 55], strides = [1, 1]} : vector<4x64xf32> to vector<4x55xf32>
    %595 = vector.extract_strided_slice %437 {offsets = [0, 0], sizes = [4, 9], strides = [1, 1]} : vector<4x64xf32> to vector<4x9xf32>
    %596 = tpu.concatenate %594, %595 in 1 : vector<4x55xf32>, vector<4x9xf32> -> vector<4x64xf32>
    %c7_i32_192 = arith.constant 7 : i32
    %597 = vector.broadcast %c7_i32_192 : i32 to vector<1x64xi32>
    %598 = arith.cmpi slt, %434, %597 : vector<1x64xi32>
    %c7_i32_193 = arith.constant 7 : i32
    %599 = vector.broadcast %c7_i32_193 : i32 to vector<1x64xi32>
    %600 = arith.cmpi slt, %435, %599 : vector<1x64xi32>
    %601 = arith.andi %598, %600 : vector<1x64xi1>
    %cst_194 = arith.constant 0.000000e+00 : f32
    %602 = vector.shape_cast %601 : vector<1x64xi1> to vector<1x64xi1>
    %603 = vector.broadcast %602 : vector<1x64xi1> to vector<4x64xi1>
    %604 = vector.broadcast %cst_194 : f32 to vector<4x64xf32>
    %605 = arith.select %603, %596, %604 : vector<4x64xi1>, vector<4x64xf32>
    %606 = tpu.concatenate %449, %458, %470, %479, %433, %488, %500, %509, %521, %533, %542, %554, %563, %437, %572, %584 in 0 : vector<4x64xf32>, vector<4x64xf32>, vector<4x64xf32>, vector<4x64xf32>, vector<4x64xf32>, vector<4x64xf32>, vector<4x64xf32>, vector<4x64xf32>, vector<4x64xf32>, vector<4x64xf32>, vector<4x64xf32>, vector<4x64xf32>, vector<4x64xf32>, vector<4x64xf32>, vector<4x64xf32>, vector<4x64xf32> -> vector<64x64xf32>
    %607 = tpu.concatenate %593, %605 in 0 : vector<4x64xf32>, vector<4x64xf32> -> vector<8x64xf32>
    %608 = tpu.concatenate %606, %607 in 0 : vector<64x64xf32>, vector<8x64xf32> -> vector<72x64xf32>
    %c0_195 = arith.constant 0 : index
    %c0_196 = arith.constant 0 : index
    %609 = vector.load %arg19[%c0_195, %c0_196] : memref<16x72xf32, #tpu.memory_space<vmem>>, vector<16x72xf32>
    %cst_197 = arith.constant dense<0.000000e+00> : vector<16x64xf32>
    %610 = tpu.matmul %609, %608, %cst_197 {dimension_numbers = #tpu.dot_dimension_numbers<[1], [0], [0], [1], [0, 0, 1, 1], [], []>} : vector<16x72xf32>, vector<72x64xf32>, vector<16x64xf32> -> vector<16x64xf32>
    %c0_198 = arith.constant 0 : index
    %c0_199 = arith.constant 0 : index
    %611 = vector.load %arg20[%c0_198, %c0_199] : memref<16x1xf32, #tpu.memory_space<vmem>>, vector<16x1xf32>
    %612 = vector.broadcast %611 : vector<16x1xf32> to vector<16x64xf32>
    %613 = arith.addf %610, %612 : vector<16x64xf32>
    %cst_200 = arith.constant 0.000000e+00 : f32
    %614 = vector.broadcast %cst_200 : f32 to vector<16x64xf32>
    %615 = arith.maximumf %613, %614 : vector<16x64xf32>
    %616 = vector.extract_strided_slice %615 {offsets = [0, 55], sizes = [16, 9], strides = [1, 1]} : vector<16x64xf32> to vector<16x9xf32>
    %617 = vector.extract_strided_slice %615 {offsets = [0, 0], sizes = [16, 55], strides = [1, 1]} : vector<16x64xf32> to vector<16x55xf32>
    %618 = tpu.concatenate %616, %617 in 1 : vector<16x9xf32>, vector<16x55xf32> -> vector<16x64xf32>
    %c1_i32_201 = arith.constant 1 : i32
    %619 = vector.broadcast %c1_i32_201 : i32 to vector<1x64xi32>
    %620 = arith.cmpi sge, %434, %619 : vector<1x64xi32>
    %c1_i32_202 = arith.constant 1 : i32
    %621 = vector.broadcast %c1_i32_202 : i32 to vector<1x64xi32>
    %622 = arith.cmpi sge, %435, %621 : vector<1x64xi32>
    %623 = arith.andi %620, %622 : vector<1x64xi1>
    %cst_203 = arith.constant 0.000000e+00 : f32
    %624 = vector.shape_cast %623 : vector<1x64xi1> to vector<1x64xi1>
    %625 = vector.broadcast %624 : vector<1x64xi1> to vector<16x64xi1>
    %626 = vector.broadcast %cst_203 : f32 to vector<16x64xf32>
    %627 = arith.select %625, %618, %626 : vector<16x64xi1>, vector<16x64xf32>
    %628 = vector.extract_strided_slice %615 {offsets = [0, 56], sizes = [16, 8], strides = [1, 1]} : vector<16x64xf32> to vector<16x8xf32>
    %629 = vector.extract_strided_slice %615 {offsets = [0, 0], sizes = [16, 56], strides = [1, 1]} : vector<16x64xf32> to vector<16x56xf32>
    %630 = tpu.concatenate %628, %629 in 1 : vector<16x8xf32>, vector<16x56xf32> -> vector<16x64xf32>
    %c1_i32_204 = arith.constant 1 : i32
    %631 = vector.broadcast %c1_i32_204 : i32 to vector<1x64xi32>
    %632 = arith.cmpi sge, %434, %631 : vector<1x64xi32>
    %cst_205 = arith.constant 0.000000e+00 : f32
    %633 = vector.shape_cast %632 : vector<1x64xi1> to vector<1x64xi1>
    %634 = vector.broadcast %633 : vector<1x64xi1> to vector<16x64xi1>
    %635 = vector.broadcast %cst_205 : f32 to vector<16x64xf32>
    %636 = arith.select %634, %630, %635 : vector<16x64xi1>, vector<16x64xf32>
    %637 = vector.extract_strided_slice %615 {offsets = [0, 57], sizes = [16, 7], strides = [1, 1]} : vector<16x64xf32> to vector<16x7xf32>
    %638 = vector.extract_strided_slice %615 {offsets = [0, 0], sizes = [16, 57], strides = [1, 1]} : vector<16x64xf32> to vector<16x57xf32>
    %639 = tpu.concatenate %637, %638 in 1 : vector<16x7xf32>, vector<16x57xf32> -> vector<16x64xf32>
    %c1_i32_206 = arith.constant 1 : i32
    %640 = vector.broadcast %c1_i32_206 : i32 to vector<1x64xi32>
    %641 = arith.cmpi sge, %434, %640 : vector<1x64xi32>
    %c7_i32_207 = arith.constant 7 : i32
    %642 = vector.broadcast %c7_i32_207 : i32 to vector<1x64xi32>
    %643 = arith.cmpi slt, %435, %642 : vector<1x64xi32>
    %644 = arith.andi %641, %643 : vector<1x64xi1>
    %cst_208 = arith.constant 0.000000e+00 : f32
    %645 = vector.shape_cast %644 : vector<1x64xi1> to vector<1x64xi1>
    %646 = vector.broadcast %645 : vector<1x64xi1> to vector<16x64xi1>
    %647 = vector.broadcast %cst_208 : f32 to vector<16x64xf32>
    %648 = arith.select %646, %639, %647 : vector<16x64xi1>, vector<16x64xf32>
    %649 = vector.extract_strided_slice %615 {offsets = [0, 63], sizes = [16, 1], strides = [1, 1]} : vector<16x64xf32> to vector<16x1xf32>
    %650 = vector.extract_strided_slice %615 {offsets = [0, 0], sizes = [16, 63], strides = [1, 1]} : vector<16x64xf32> to vector<16x63xf32>
    %651 = tpu.concatenate %649, %650 in 1 : vector<16x1xf32>, vector<16x63xf32> -> vector<16x64xf32>
    %c1_i32_209 = arith.constant 1 : i32
    %652 = vector.broadcast %c1_i32_209 : i32 to vector<1x64xi32>
    %653 = arith.cmpi sge, %435, %652 : vector<1x64xi32>
    %cst_210 = arith.constant 0.000000e+00 : f32
    %654 = vector.shape_cast %653 : vector<1x64xi1> to vector<1x64xi1>
    %655 = vector.broadcast %654 : vector<1x64xi1> to vector<16x64xi1>
    %656 = vector.broadcast %cst_210 : f32 to vector<16x64xf32>
    %657 = arith.select %655, %651, %656 : vector<16x64xi1>, vector<16x64xf32>
    %658 = vector.extract_strided_slice %615 {offsets = [0, 1], sizes = [16, 63], strides = [1, 1]} : vector<16x64xf32> to vector<16x63xf32>
    %659 = vector.extract_strided_slice %615 {offsets = [0, 0], sizes = [16, 1], strides = [1, 1]} : vector<16x64xf32> to vector<16x1xf32>
    %660 = tpu.concatenate %658, %659 in 1 : vector<16x63xf32>, vector<16x1xf32> -> vector<16x64xf32>
    %c7_i32_211 = arith.constant 7 : i32
    %661 = vector.broadcast %c7_i32_211 : i32 to vector<1x64xi32>
    %662 = arith.cmpi slt, %435, %661 : vector<1x64xi32>
    %cst_212 = arith.constant 0.000000e+00 : f32
    %663 = vector.shape_cast %662 : vector<1x64xi1> to vector<1x64xi1>
    %664 = vector.broadcast %663 : vector<1x64xi1> to vector<16x64xi1>
    %665 = vector.broadcast %cst_212 : f32 to vector<16x64xf32>
    %666 = arith.select %664, %660, %665 : vector<16x64xi1>, vector<16x64xf32>
    %667 = vector.extract_strided_slice %615 {offsets = [0, 7], sizes = [16, 57], strides = [1, 1]} : vector<16x64xf32> to vector<16x57xf32>
    %668 = vector.extract_strided_slice %615 {offsets = [0, 0], sizes = [16, 7], strides = [1, 1]} : vector<16x64xf32> to vector<16x7xf32>
    %669 = tpu.concatenate %667, %668 in 1 : vector<16x57xf32>, vector<16x7xf32> -> vector<16x64xf32>
    %c7_i32_213 = arith.constant 7 : i32
    %670 = vector.broadcast %c7_i32_213 : i32 to vector<1x64xi32>
    %671 = arith.cmpi slt, %434, %670 : vector<1x64xi32>
    %c1_i32_214 = arith.constant 1 : i32
    %672 = vector.broadcast %c1_i32_214 : i32 to vector<1x64xi32>
    %673 = arith.cmpi sge, %435, %672 : vector<1x64xi32>
    %674 = arith.andi %671, %673 : vector<1x64xi1>
    %cst_215 = arith.constant 0.000000e+00 : f32
    %675 = vector.shape_cast %674 : vector<1x64xi1> to vector<1x64xi1>
    %676 = vector.broadcast %675 : vector<1x64xi1> to vector<16x64xi1>
    %677 = vector.broadcast %cst_215 : f32 to vector<16x64xf32>
    %678 = arith.select %676, %669, %677 : vector<16x64xi1>, vector<16x64xf32>
    %679 = vector.extract_strided_slice %615 {offsets = [0, 8], sizes = [16, 56], strides = [1, 1]} : vector<16x64xf32> to vector<16x56xf32>
    %680 = vector.extract_strided_slice %615 {offsets = [0, 0], sizes = [16, 8], strides = [1, 1]} : vector<16x64xf32> to vector<16x8xf32>
    %681 = tpu.concatenate %679, %680 in 1 : vector<16x56xf32>, vector<16x8xf32> -> vector<16x64xf32>
    %c7_i32_216 = arith.constant 7 : i32
    %682 = vector.broadcast %c7_i32_216 : i32 to vector<1x64xi32>
    %683 = arith.cmpi slt, %434, %682 : vector<1x64xi32>
    %cst_217 = arith.constant 0.000000e+00 : f32
    %684 = vector.shape_cast %683 : vector<1x64xi1> to vector<1x64xi1>
    %685 = vector.broadcast %684 : vector<1x64xi1> to vector<16x64xi1>
    %686 = vector.broadcast %cst_217 : f32 to vector<16x64xf32>
    %687 = arith.select %685, %681, %686 : vector<16x64xi1>, vector<16x64xf32>
    %688 = vector.extract_strided_slice %615 {offsets = [0, 9], sizes = [16, 55], strides = [1, 1]} : vector<16x64xf32> to vector<16x55xf32>
    %689 = vector.extract_strided_slice %615 {offsets = [0, 0], sizes = [16, 9], strides = [1, 1]} : vector<16x64xf32> to vector<16x9xf32>
    %690 = tpu.concatenate %688, %689 in 1 : vector<16x55xf32>, vector<16x9xf32> -> vector<16x64xf32>
    %c7_i32_218 = arith.constant 7 : i32
    %691 = vector.broadcast %c7_i32_218 : i32 to vector<1x64xi32>
    %692 = arith.cmpi slt, %434, %691 : vector<1x64xi32>
    %c7_i32_219 = arith.constant 7 : i32
    %693 = vector.broadcast %c7_i32_219 : i32 to vector<1x64xi32>
    %694 = arith.cmpi slt, %435, %693 : vector<1x64xi32>
    %695 = arith.andi %692, %694 : vector<1x64xi1>
    %cst_220 = arith.constant 0.000000e+00 : f32
    %696 = vector.shape_cast %695 : vector<1x64xi1> to vector<1x64xi1>
    %697 = vector.broadcast %696 : vector<1x64xi1> to vector<16x64xi1>
    %698 = vector.broadcast %cst_220 : f32 to vector<16x64xf32>
    %699 = arith.select %697, %690, %698 : vector<16x64xi1>, vector<16x64xf32>
    %700 = tpu.concatenate %627, %636, %648, %657, %615, %666, %678, %687, %699 in 0 : vector<16x64xf32>, vector<16x64xf32>, vector<16x64xf32>, vector<16x64xf32>, vector<16x64xf32>, vector<16x64xf32>, vector<16x64xf32>, vector<16x64xf32>, vector<16x64xf32> -> vector<144x64xf32>
    %c0_221 = arith.constant 0 : index
    %c0_222 = arith.constant 0 : index
    %701 = vector.load %arg21[%c0_221, %c0_222] : memref<4x144xf32, #tpu.memory_space<vmem>>, vector<4x144xf32>
    %cst_223 = arith.constant dense<0.000000e+00> : vector<4x64xf32>
    %702 = tpu.matmul %701, %700, %cst_223 {dimension_numbers = #tpu.dot_dimension_numbers<[1], [0], [0], [1], [0, 0, 1, 1], [], []>} : vector<4x144xf32>, vector<144x64xf32>, vector<4x64xf32> -> vector<4x64xf32>
    %c0_224 = arith.constant 0 : index
    %c0_225 = arith.constant 0 : index
    %703 = vector.load %arg22[%c0_224, %c0_225] : memref<4x1xf32, #tpu.memory_space<vmem>>, vector<4x1xf32>
    %704 = vector.broadcast %703 : vector<4x1xf32> to vector<4x64xf32>
    %705 = arith.addf %702, %704 : vector<4x64xf32>
    %cst_226 = arith.constant 0.000000e+00 : f32
    %706 = vector.broadcast %cst_226 : f32 to vector<4x64xf32>
    %707 = arith.maximumf %705, %706 : vector<4x64xf32>
    %c0_227 = arith.constant 0 : index
    %c0_228 = arith.constant 0 : index
    %708 = vector.load %arg23[%c0_227, %c0_228] : memref<64x256xf32, #tpu.memory_space<vmem>>, vector<64x256xf32>
    %cst_229 = arith.constant dense<0.000000e+00> : vector<4x256xf32>
    %709 = tpu.matmul %707, %708, %cst_229 {dimension_numbers = #tpu.dot_dimension_numbers<[1], [0], [0], [1], [0, 0, 1, 1], [], []>} : vector<4x64xf32>, vector<64x256xf32>, vector<4x256xf32> -> vector<4x256xf32>
    %c0_230 = arith.constant 0 : index
    %c0_231 = arith.constant 0 : index
    %710 = vector.load %arg2[%c0_230, %c0_231] : memref<1x256xi32, #tpu.memory_space<vmem>>, vector<1x256xi32>
    %c0_232 = arith.constant 0 : index
    %c0_233 = arith.constant 0 : index
    %711 = vector.load %arg3[%c0_232, %c0_233] : memref<1x256xi32, #tpu.memory_space<vmem>>, vector<1x256xi32>
    %c17_i32_234 = arith.constant 17 : i32
    %712 = tpu.dynamic_rotate %709 by %c17_i32_234 dim 1 : vector<4x256xf32>, i32 -> vector<4x256xf32>
    %c1_i32_235 = arith.constant 1 : i32
    %713 = vector.broadcast %c1_i32_235 : i32 to vector<1x256xi32>
    %714 = arith.cmpi sge, %710, %713 : vector<1x256xi32>
    %c1_i32_236 = arith.constant 1 : i32
    %715 = vector.broadcast %c1_i32_236 : i32 to vector<1x256xi32>
    %716 = arith.cmpi sge, %711, %715 : vector<1x256xi32>
    %717 = arith.andi %714, %716 : vector<1x256xi1>
    %cst_237 = arith.constant 0.000000e+00 : f32
    %718 = vector.shape_cast %717 : vector<1x256xi1> to vector<1x256xi1>
    %719 = vector.broadcast %718 : vector<1x256xi1> to vector<4x256xi1>
    %720 = vector.broadcast %cst_237 : f32 to vector<4x256xf32>
    %721 = arith.select %719, %712, %720 : vector<4x256xi1>, vector<4x256xf32>
    %c16_i32_238 = arith.constant 16 : i32
    %722 = tpu.dynamic_rotate %709 by %c16_i32_238 dim 1 : vector<4x256xf32>, i32 -> vector<4x256xf32>
    %c1_i32_239 = arith.constant 1 : i32
    %723 = vector.broadcast %c1_i32_239 : i32 to vector<1x256xi32>
    %724 = arith.cmpi sge, %710, %723 : vector<1x256xi32>
    %cst_240 = arith.constant 0.000000e+00 : f32
    %725 = vector.shape_cast %724 : vector<1x256xi1> to vector<1x256xi1>
    %726 = vector.broadcast %725 : vector<1x256xi1> to vector<4x256xi1>
    %727 = vector.broadcast %cst_240 : f32 to vector<4x256xf32>
    %728 = arith.select %726, %722, %727 : vector<4x256xi1>, vector<4x256xf32>
    %c15_i32_241 = arith.constant 15 : i32
    %729 = tpu.dynamic_rotate %709 by %c15_i32_241 dim 1 : vector<4x256xf32>, i32 -> vector<4x256xf32>
    %c1_i32_242 = arith.constant 1 : i32
    %730 = vector.broadcast %c1_i32_242 : i32 to vector<1x256xi32>
    %731 = arith.cmpi sge, %710, %730 : vector<1x256xi32>
    %c15_i32_243 = arith.constant 15 : i32
    %732 = vector.broadcast %c15_i32_243 : i32 to vector<1x256xi32>
    %733 = arith.cmpi slt, %711, %732 : vector<1x256xi32>
    %734 = arith.andi %731, %733 : vector<1x256xi1>
    %cst_244 = arith.constant 0.000000e+00 : f32
    %735 = vector.shape_cast %734 : vector<1x256xi1> to vector<1x256xi1>
    %736 = vector.broadcast %735 : vector<1x256xi1> to vector<4x256xi1>
    %737 = vector.broadcast %cst_244 : f32 to vector<4x256xf32>
    %738 = arith.select %736, %729, %737 : vector<4x256xi1>, vector<4x256xf32>
    %c1_i32_245 = arith.constant 1 : i32
    %739 = tpu.dynamic_rotate %709 by %c1_i32_245 dim 1 : vector<4x256xf32>, i32 -> vector<4x256xf32>
    %c1_i32_246 = arith.constant 1 : i32
    %740 = vector.broadcast %c1_i32_246 : i32 to vector<1x256xi32>
    %741 = arith.cmpi sge, %711, %740 : vector<1x256xi32>
    %cst_247 = arith.constant 0.000000e+00 : f32
    %742 = vector.shape_cast %741 : vector<1x256xi1> to vector<1x256xi1>
    %743 = vector.broadcast %742 : vector<1x256xi1> to vector<4x256xi1>
    %744 = vector.broadcast %cst_247 : f32 to vector<4x256xf32>
    %745 = arith.select %743, %739, %744 : vector<4x256xi1>, vector<4x256xf32>
    %c255_i32_248 = arith.constant 255 : i32
    %746 = tpu.dynamic_rotate %709 by %c255_i32_248 dim 1 : vector<4x256xf32>, i32 -> vector<4x256xf32>
    %c15_i32_249 = arith.constant 15 : i32
    %747 = vector.broadcast %c15_i32_249 : i32 to vector<1x256xi32>
    %748 = arith.cmpi slt, %711, %747 : vector<1x256xi32>
    %cst_250 = arith.constant 0.000000e+00 : f32
    %749 = vector.shape_cast %748 : vector<1x256xi1> to vector<1x256xi1>
    %750 = vector.broadcast %749 : vector<1x256xi1> to vector<4x256xi1>
    %751 = vector.broadcast %cst_250 : f32 to vector<4x256xf32>
    %752 = arith.select %750, %746, %751 : vector<4x256xi1>, vector<4x256xf32>
    %c241_i32_251 = arith.constant 241 : i32
    %753 = tpu.dynamic_rotate %709 by %c241_i32_251 dim 1 : vector<4x256xf32>, i32 -> vector<4x256xf32>
    %c15_i32_252 = arith.constant 15 : i32
    %754 = vector.broadcast %c15_i32_252 : i32 to vector<1x256xi32>
    %755 = arith.cmpi slt, %710, %754 : vector<1x256xi32>
    %c1_i32_253 = arith.constant 1 : i32
    %756 = vector.broadcast %c1_i32_253 : i32 to vector<1x256xi32>
    %757 = arith.cmpi sge, %711, %756 : vector<1x256xi32>
    %758 = arith.andi %755, %757 : vector<1x256xi1>
    %cst_254 = arith.constant 0.000000e+00 : f32
    %759 = vector.shape_cast %758 : vector<1x256xi1> to vector<1x256xi1>
    %760 = vector.broadcast %759 : vector<1x256xi1> to vector<4x256xi1>
    %761 = vector.broadcast %cst_254 : f32 to vector<4x256xf32>
    %762 = arith.select %760, %753, %761 : vector<4x256xi1>, vector<4x256xf32>
    %c240_i32_255 = arith.constant 240 : i32
    %763 = tpu.dynamic_rotate %709 by %c240_i32_255 dim 1 : vector<4x256xf32>, i32 -> vector<4x256xf32>
    %c15_i32_256 = arith.constant 15 : i32
    %764 = vector.broadcast %c15_i32_256 : i32 to vector<1x256xi32>
    %765 = arith.cmpi slt, %710, %764 : vector<1x256xi32>
    %cst_257 = arith.constant 0.000000e+00 : f32
    %766 = vector.shape_cast %765 : vector<1x256xi1> to vector<1x256xi1>
    %767 = vector.broadcast %766 : vector<1x256xi1> to vector<4x256xi1>
    %768 = vector.broadcast %cst_257 : f32 to vector<4x256xf32>
    %769 = arith.select %767, %763, %768 : vector<4x256xi1>, vector<4x256xf32>
    %c239_i32_258 = arith.constant 239 : i32
    %770 = tpu.dynamic_rotate %709 by %c239_i32_258 dim 1 : vector<4x256xf32>, i32 -> vector<4x256xf32>
    %c15_i32_259 = arith.constant 15 : i32
    %771 = vector.broadcast %c15_i32_259 : i32 to vector<1x256xi32>
    %772 = arith.cmpi slt, %710, %771 : vector<1x256xi32>
    %c15_i32_260 = arith.constant 15 : i32
    %773 = vector.broadcast %c15_i32_260 : i32 to vector<1x256xi32>
    %774 = arith.cmpi slt, %711, %773 : vector<1x256xi32>
    %775 = arith.andi %772, %774 : vector<1x256xi1>
    %cst_261 = arith.constant 0.000000e+00 : f32
    %776 = vector.shape_cast %775 : vector<1x256xi1> to vector<1x256xi1>
    %777 = vector.broadcast %776 : vector<1x256xi1> to vector<4x256xi1>
    %778 = vector.broadcast %cst_261 : f32 to vector<4x256xf32>
    %779 = arith.select %777, %770, %778 : vector<4x256xi1>, vector<4x256xf32>
    %c17_i32_262 = arith.constant 17 : i32
    %780 = tpu.dynamic_rotate %1 by %c17_i32_262 dim 1 : vector<4x256xf32>, i32 -> vector<4x256xf32>
    %c1_i32_263 = arith.constant 1 : i32
    %781 = vector.broadcast %c1_i32_263 : i32 to vector<1x256xi32>
    %782 = arith.cmpi sge, %710, %781 : vector<1x256xi32>
    %c1_i32_264 = arith.constant 1 : i32
    %783 = vector.broadcast %c1_i32_264 : i32 to vector<1x256xi32>
    %784 = arith.cmpi sge, %711, %783 : vector<1x256xi32>
    %785 = arith.andi %782, %784 : vector<1x256xi1>
    %cst_265 = arith.constant 0.000000e+00 : f32
    %786 = vector.shape_cast %785 : vector<1x256xi1> to vector<1x256xi1>
    %787 = vector.broadcast %786 : vector<1x256xi1> to vector<4x256xi1>
    %788 = vector.broadcast %cst_265 : f32 to vector<4x256xf32>
    %789 = arith.select %787, %780, %788 : vector<4x256xi1>, vector<4x256xf32>
    %c16_i32_266 = arith.constant 16 : i32
    %790 = tpu.dynamic_rotate %1 by %c16_i32_266 dim 1 : vector<4x256xf32>, i32 -> vector<4x256xf32>
    %c1_i32_267 = arith.constant 1 : i32
    %791 = vector.broadcast %c1_i32_267 : i32 to vector<1x256xi32>
    %792 = arith.cmpi sge, %710, %791 : vector<1x256xi32>
    %cst_268 = arith.constant 0.000000e+00 : f32
    %793 = vector.shape_cast %792 : vector<1x256xi1> to vector<1x256xi1>
    %794 = vector.broadcast %793 : vector<1x256xi1> to vector<4x256xi1>
    %795 = vector.broadcast %cst_268 : f32 to vector<4x256xf32>
    %796 = arith.select %794, %790, %795 : vector<4x256xi1>, vector<4x256xf32>
    %c15_i32_269 = arith.constant 15 : i32
    %797 = tpu.dynamic_rotate %1 by %c15_i32_269 dim 1 : vector<4x256xf32>, i32 -> vector<4x256xf32>
    %c1_i32_270 = arith.constant 1 : i32
    %798 = vector.broadcast %c1_i32_270 : i32 to vector<1x256xi32>
    %799 = arith.cmpi sge, %710, %798 : vector<1x256xi32>
    %c15_i32_271 = arith.constant 15 : i32
    %800 = vector.broadcast %c15_i32_271 : i32 to vector<1x256xi32>
    %801 = arith.cmpi slt, %711, %800 : vector<1x256xi32>
    %802 = arith.andi %799, %801 : vector<1x256xi1>
    %cst_272 = arith.constant 0.000000e+00 : f32
    %803 = vector.shape_cast %802 : vector<1x256xi1> to vector<1x256xi1>
    %804 = vector.broadcast %803 : vector<1x256xi1> to vector<4x256xi1>
    %805 = vector.broadcast %cst_272 : f32 to vector<4x256xf32>
    %806 = arith.select %804, %797, %805 : vector<4x256xi1>, vector<4x256xf32>
    %c1_i32_273 = arith.constant 1 : i32
    %807 = tpu.dynamic_rotate %1 by %c1_i32_273 dim 1 : vector<4x256xf32>, i32 -> vector<4x256xf32>
    %c1_i32_274 = arith.constant 1 : i32
    %808 = vector.broadcast %c1_i32_274 : i32 to vector<1x256xi32>
    %809 = arith.cmpi sge, %711, %808 : vector<1x256xi32>
    %cst_275 = arith.constant 0.000000e+00 : f32
    %810 = vector.shape_cast %809 : vector<1x256xi1> to vector<1x256xi1>
    %811 = vector.broadcast %810 : vector<1x256xi1> to vector<4x256xi1>
    %812 = vector.broadcast %cst_275 : f32 to vector<4x256xf32>
    %813 = arith.select %811, %807, %812 : vector<4x256xi1>, vector<4x256xf32>
    %c255_i32_276 = arith.constant 255 : i32
    %814 = tpu.dynamic_rotate %1 by %c255_i32_276 dim 1 : vector<4x256xf32>, i32 -> vector<4x256xf32>
    %c15_i32_277 = arith.constant 15 : i32
    %815 = vector.broadcast %c15_i32_277 : i32 to vector<1x256xi32>
    %816 = arith.cmpi slt, %711, %815 : vector<1x256xi32>
    %cst_278 = arith.constant 0.000000e+00 : f32
    %817 = vector.shape_cast %816 : vector<1x256xi1> to vector<1x256xi1>
    %818 = vector.broadcast %817 : vector<1x256xi1> to vector<4x256xi1>
    %819 = vector.broadcast %cst_278 : f32 to vector<4x256xf32>
    %820 = arith.select %818, %814, %819 : vector<4x256xi1>, vector<4x256xf32>
    %c241_i32_279 = arith.constant 241 : i32
    %821 = tpu.dynamic_rotate %1 by %c241_i32_279 dim 1 : vector<4x256xf32>, i32 -> vector<4x256xf32>
    %c15_i32_280 = arith.constant 15 : i32
    %822 = vector.broadcast %c15_i32_280 : i32 to vector<1x256xi32>
    %823 = arith.cmpi slt, %710, %822 : vector<1x256xi32>
    %c1_i32_281 = arith.constant 1 : i32
    %824 = vector.broadcast %c1_i32_281 : i32 to vector<1x256xi32>
    %825 = arith.cmpi sge, %711, %824 : vector<1x256xi32>
    %826 = arith.andi %823, %825 : vector<1x256xi1>
    %cst_282 = arith.constant 0.000000e+00 : f32
    %827 = vector.shape_cast %826 : vector<1x256xi1> to vector<1x256xi1>
    %828 = vector.broadcast %827 : vector<1x256xi1> to vector<4x256xi1>
    %829 = vector.broadcast %cst_282 : f32 to vector<4x256xf32>
    %830 = arith.select %828, %821, %829 : vector<4x256xi1>, vector<4x256xf32>
    %c240_i32_283 = arith.constant 240 : i32
    %831 = tpu.dynamic_rotate %1 by %c240_i32_283 dim 1 : vector<4x256xf32>, i32 -> vector<4x256xf32>
    %c15_i32_284 = arith.constant 15 : i32
    %832 = vector.broadcast %c15_i32_284 : i32 to vector<1x256xi32>
    %833 = arith.cmpi slt, %710, %832 : vector<1x256xi32>
    %cst_285 = arith.constant 0.000000e+00 : f32
    %834 = vector.shape_cast %833 : vector<1x256xi1> to vector<1x256xi1>
    %835 = vector.broadcast %834 : vector<1x256xi1> to vector<4x256xi1>
    %836 = vector.broadcast %cst_285 : f32 to vector<4x256xf32>
    %837 = arith.select %835, %831, %836 : vector<4x256xi1>, vector<4x256xf32>
    %c239_i32_286 = arith.constant 239 : i32
    %838 = tpu.dynamic_rotate %1 by %c239_i32_286 dim 1 : vector<4x256xf32>, i32 -> vector<4x256xf32>
    %c15_i32_287 = arith.constant 15 : i32
    %839 = vector.broadcast %c15_i32_287 : i32 to vector<1x256xi32>
    %840 = arith.cmpi slt, %710, %839 : vector<1x256xi32>
    %c15_i32_288 = arith.constant 15 : i32
    %841 = vector.broadcast %c15_i32_288 : i32 to vector<1x256xi32>
    %842 = arith.cmpi slt, %711, %841 : vector<1x256xi32>
    %843 = arith.andi %840, %842 : vector<1x256xi1>
    %cst_289 = arith.constant 0.000000e+00 : f32
    %844 = vector.shape_cast %843 : vector<1x256xi1> to vector<1x256xi1>
    %845 = vector.broadcast %844 : vector<1x256xi1> to vector<4x256xi1>
    %846 = vector.broadcast %cst_289 : f32 to vector<4x256xf32>
    %847 = arith.select %845, %838, %846 : vector<4x256xi1>, vector<4x256xf32>
    %848 = tpu.concatenate %721, %728, %738, %745, %709, %752, %762, %769, %779, %789, %796, %806, %813, %1, %820, %830 in 0 : vector<4x256xf32>, vector<4x256xf32>, vector<4x256xf32>, vector<4x256xf32>, vector<4x256xf32>, vector<4x256xf32>, vector<4x256xf32>, vector<4x256xf32>, vector<4x256xf32>, vector<4x256xf32>, vector<4x256xf32>, vector<4x256xf32>, vector<4x256xf32>, vector<4x256xf32>, vector<4x256xf32>, vector<4x256xf32> -> vector<64x256xf32>
    %849 = tpu.concatenate %837, %847 in 0 : vector<4x256xf32>, vector<4x256xf32> -> vector<8x256xf32>
    %850 = tpu.concatenate %848, %849 in 0 : vector<64x256xf32>, vector<8x256xf32> -> vector<72x256xf32>
    %c0_290 = arith.constant 0 : index
    %c0_291 = arith.constant 0 : index
    %851 = vector.load %arg24[%c0_290, %c0_291] : memref<16x72xf32, #tpu.memory_space<vmem>>, vector<16x72xf32>
    %cst_292 = arith.constant dense<0.000000e+00> : vector<16x256xf32>
    %852 = tpu.matmul %851, %850, %cst_292 {dimension_numbers = #tpu.dot_dimension_numbers<[1], [0], [0], [1], [0, 0, 1, 1], [], []>} : vector<16x72xf32>, vector<72x256xf32>, vector<16x256xf32> -> vector<16x256xf32>
    %c0_293 = arith.constant 0 : index
    %c0_294 = arith.constant 0 : index
    %853 = vector.load %arg25[%c0_293, %c0_294] : memref<16x1xf32, #tpu.memory_space<vmem>>, vector<16x1xf32>
    %854 = vector.broadcast %853 : vector<16x1xf32> to vector<16x256xf32>
    %855 = arith.addf %852, %854 : vector<16x256xf32>
    %cst_295 = arith.constant 0.000000e+00 : f32
    %856 = vector.broadcast %cst_295 : f32 to vector<16x256xf32>
    %857 = arith.maximumf %855, %856 : vector<16x256xf32>
    %c17_i32_296 = arith.constant 17 : i32
    %858 = tpu.dynamic_rotate %857 by %c17_i32_296 dim 1 : vector<16x256xf32>, i32 -> vector<16x256xf32>
    %c1_i32_297 = arith.constant 1 : i32
    %859 = vector.broadcast %c1_i32_297 : i32 to vector<1x256xi32>
    %860 = arith.cmpi sge, %710, %859 : vector<1x256xi32>
    %c1_i32_298 = arith.constant 1 : i32
    %861 = vector.broadcast %c1_i32_298 : i32 to vector<1x256xi32>
    %862 = arith.cmpi sge, %711, %861 : vector<1x256xi32>
    %863 = arith.andi %860, %862 : vector<1x256xi1>
    %cst_299 = arith.constant 0.000000e+00 : f32
    %864 = vector.shape_cast %863 : vector<1x256xi1> to vector<1x256xi1>
    %865 = vector.broadcast %864 : vector<1x256xi1> to vector<16x256xi1>
    %866 = vector.broadcast %cst_299 : f32 to vector<16x256xf32>
    %867 = arith.select %865, %858, %866 : vector<16x256xi1>, vector<16x256xf32>
    %c16_i32_300 = arith.constant 16 : i32
    %868 = tpu.dynamic_rotate %857 by %c16_i32_300 dim 1 : vector<16x256xf32>, i32 -> vector<16x256xf32>
    %c1_i32_301 = arith.constant 1 : i32
    %869 = vector.broadcast %c1_i32_301 : i32 to vector<1x256xi32>
    %870 = arith.cmpi sge, %710, %869 : vector<1x256xi32>
    %cst_302 = arith.constant 0.000000e+00 : f32
    %871 = vector.shape_cast %870 : vector<1x256xi1> to vector<1x256xi1>
    %872 = vector.broadcast %871 : vector<1x256xi1> to vector<16x256xi1>
    %873 = vector.broadcast %cst_302 : f32 to vector<16x256xf32>
    %874 = arith.select %872, %868, %873 : vector<16x256xi1>, vector<16x256xf32>
    %c15_i32_303 = arith.constant 15 : i32
    %875 = tpu.dynamic_rotate %857 by %c15_i32_303 dim 1 : vector<16x256xf32>, i32 -> vector<16x256xf32>
    %c1_i32_304 = arith.constant 1 : i32
    %876 = vector.broadcast %c1_i32_304 : i32 to vector<1x256xi32>
    %877 = arith.cmpi sge, %710, %876 : vector<1x256xi32>
    %c15_i32_305 = arith.constant 15 : i32
    %878 = vector.broadcast %c15_i32_305 : i32 to vector<1x256xi32>
    %879 = arith.cmpi slt, %711, %878 : vector<1x256xi32>
    %880 = arith.andi %877, %879 : vector<1x256xi1>
    %cst_306 = arith.constant 0.000000e+00 : f32
    %881 = vector.shape_cast %880 : vector<1x256xi1> to vector<1x256xi1>
    %882 = vector.broadcast %881 : vector<1x256xi1> to vector<16x256xi1>
    %883 = vector.broadcast %cst_306 : f32 to vector<16x256xf32>
    %884 = arith.select %882, %875, %883 : vector<16x256xi1>, vector<16x256xf32>
    %c1_i32_307 = arith.constant 1 : i32
    %885 = tpu.dynamic_rotate %857 by %c1_i32_307 dim 1 : vector<16x256xf32>, i32 -> vector<16x256xf32>
    %c1_i32_308 = arith.constant 1 : i32
    %886 = vector.broadcast %c1_i32_308 : i32 to vector<1x256xi32>
    %887 = arith.cmpi sge, %711, %886 : vector<1x256xi32>
    %cst_309 = arith.constant 0.000000e+00 : f32
    %888 = vector.shape_cast %887 : vector<1x256xi1> to vector<1x256xi1>
    %889 = vector.broadcast %888 : vector<1x256xi1> to vector<16x256xi1>
    %890 = vector.broadcast %cst_309 : f32 to vector<16x256xf32>
    %891 = arith.select %889, %885, %890 : vector<16x256xi1>, vector<16x256xf32>
    %c255_i32_310 = arith.constant 255 : i32
    %892 = tpu.dynamic_rotate %857 by %c255_i32_310 dim 1 : vector<16x256xf32>, i32 -> vector<16x256xf32>
    %c15_i32_311 = arith.constant 15 : i32
    %893 = vector.broadcast %c15_i32_311 : i32 to vector<1x256xi32>
    %894 = arith.cmpi slt, %711, %893 : vector<1x256xi32>
    %cst_312 = arith.constant 0.000000e+00 : f32
    %895 = vector.shape_cast %894 : vector<1x256xi1> to vector<1x256xi1>
    %896 = vector.broadcast %895 : vector<1x256xi1> to vector<16x256xi1>
    %897 = vector.broadcast %cst_312 : f32 to vector<16x256xf32>
    %898 = arith.select %896, %892, %897 : vector<16x256xi1>, vector<16x256xf32>
    %c241_i32_313 = arith.constant 241 : i32
    %899 = tpu.dynamic_rotate %857 by %c241_i32_313 dim 1 : vector<16x256xf32>, i32 -> vector<16x256xf32>
    %c15_i32_314 = arith.constant 15 : i32
    %900 = vector.broadcast %c15_i32_314 : i32 to vector<1x256xi32>
    %901 = arith.cmpi slt, %710, %900 : vector<1x256xi32>
    %c1_i32_315 = arith.constant 1 : i32
    %902 = vector.broadcast %c1_i32_315 : i32 to vector<1x256xi32>
    %903 = arith.cmpi sge, %711, %902 : vector<1x256xi32>
    %904 = arith.andi %901, %903 : vector<1x256xi1>
    %cst_316 = arith.constant 0.000000e+00 : f32
    %905 = vector.shape_cast %904 : vector<1x256xi1> to vector<1x256xi1>
    %906 = vector.broadcast %905 : vector<1x256xi1> to vector<16x256xi1>
    %907 = vector.broadcast %cst_316 : f32 to vector<16x256xf32>
    %908 = arith.select %906, %899, %907 : vector<16x256xi1>, vector<16x256xf32>
    %c240_i32_317 = arith.constant 240 : i32
    %909 = tpu.dynamic_rotate %857 by %c240_i32_317 dim 1 : vector<16x256xf32>, i32 -> vector<16x256xf32>
    %c15_i32_318 = arith.constant 15 : i32
    %910 = vector.broadcast %c15_i32_318 : i32 to vector<1x256xi32>
    %911 = arith.cmpi slt, %710, %910 : vector<1x256xi32>
    %cst_319 = arith.constant 0.000000e+00 : f32
    %912 = vector.shape_cast %911 : vector<1x256xi1> to vector<1x256xi1>
    %913 = vector.broadcast %912 : vector<1x256xi1> to vector<16x256xi1>
    %914 = vector.broadcast %cst_319 : f32 to vector<16x256xf32>
    %915 = arith.select %913, %909, %914 : vector<16x256xi1>, vector<16x256xf32>
    %c239_i32_320 = arith.constant 239 : i32
    %916 = tpu.dynamic_rotate %857 by %c239_i32_320 dim 1 : vector<16x256xf32>, i32 -> vector<16x256xf32>
    %c15_i32_321 = arith.constant 15 : i32
    %917 = vector.broadcast %c15_i32_321 : i32 to vector<1x256xi32>
    %918 = arith.cmpi slt, %710, %917 : vector<1x256xi32>
    %c15_i32_322 = arith.constant 15 : i32
    %919 = vector.broadcast %c15_i32_322 : i32 to vector<1x256xi32>
    %920 = arith.cmpi slt, %711, %919 : vector<1x256xi32>
    %921 = arith.andi %918, %920 : vector<1x256xi1>
    %cst_323 = arith.constant 0.000000e+00 : f32
    %922 = vector.shape_cast %921 : vector<1x256xi1> to vector<1x256xi1>
    %923 = vector.broadcast %922 : vector<1x256xi1> to vector<16x256xi1>
    %924 = vector.broadcast %cst_323 : f32 to vector<16x256xf32>
    %925 = arith.select %923, %916, %924 : vector<16x256xi1>, vector<16x256xf32>
    %926 = tpu.concatenate %867, %874, %884, %891, %857, %898, %908, %915, %925 in 0 : vector<16x256xf32>, vector<16x256xf32>, vector<16x256xf32>, vector<16x256xf32>, vector<16x256xf32>, vector<16x256xf32>, vector<16x256xf32>, vector<16x256xf32>, vector<16x256xf32> -> vector<144x256xf32>
    %c0_324 = arith.constant 0 : index
    %c0_325 = arith.constant 0 : index
    %927 = vector.load %arg26[%c0_324, %c0_325] : memref<4x144xf32, #tpu.memory_space<vmem>>, vector<4x144xf32>
    %cst_326 = arith.constant dense<0.000000e+00> : vector<4x256xf32>
    %928 = tpu.matmul %927, %926, %cst_326 {dimension_numbers = #tpu.dot_dimension_numbers<[1], [0], [0], [1], [0, 0, 1, 1], [], []>} : vector<4x144xf32>, vector<144x256xf32>, vector<4x256xf32> -> vector<4x256xf32>
    %c0_327 = arith.constant 0 : index
    %c0_328 = arith.constant 0 : index
    %929 = vector.load %arg27[%c0_327, %c0_328] : memref<4x1xf32, #tpu.memory_space<vmem>>, vector<4x1xf32>
    %930 = vector.broadcast %929 : vector<4x1xf32> to vector<4x256xf32>
    %931 = arith.addf %928, %930 : vector<4x256xf32>
    %c0_329 = arith.constant 0 : index
    %c0_330 = arith.constant 0 : index
    %c0_331 = arith.constant 0 : index
    %932 = vector.load %arg28[%c0_329, %c0_330, %c0_331] : memref<1x4x256xf32, #tpu.memory_space<vmem>>, vector<1x4x256xf32>
    %933 = vector.shape_cast %932 : vector<1x4x256xf32> to vector<4x256xf32>
    %934 = vector.shape_cast %931 : vector<4x256xf32> to vector<1x4x256xf32>
    tpu.vector_store %arg28[%c0_329, %c0_330, %c0_331], %934 {strides = array<i32>} : memref<1x4x256xf32, #tpu.memory_space<vmem>>, vector<1x4x256xf32>,
    return
  }
  func.func @transform_0(%arg0: i32) -> (i32, i32, i32) {
    %c0_i32 = arith.constant 0 : i32
    %c0_i32_0 = arith.constant 0 : i32
    %c0_i32_1 = arith.constant 0 : i32
    return %arg0, %c0_i32, %c0_i32_0 : i32, i32, i32
  }
  func.func @transform_1(%arg0: i32) -> (i32, i32) {
    %c0_i32 = arith.constant 0 : i32
    %c0_i32_0 = arith.constant 0 : i32
    %c0_i32_1 = arith.constant 0 : i32
    return %c0_i32, %c0_i32_0 : i32, i32
  }
  func.func @transform_2(%arg0: i32) -> (i32, i32) {
    %c0_i32 = arith.constant 0 : i32
    %c0_i32_0 = arith.constant 0 : i32
    %c0_i32_1 = arith.constant 0 : i32
    return %c0_i32, %c0_i32_0 : i32, i32
  }
  func.func @transform_3(%arg0: i32) -> (i32, i32) {
    %c0_i32 = arith.constant 0 : i32
    %c0_i32_0 = arith.constant 0 : i32
    %c0_i32_1 = arith.constant 0 : i32
    return %c0_i32, %c0_i32_0 : i32, i32
  }
  func.func @transform_4(%arg0: i32) -> (i32, i32) {
    %c0_i32 = arith.constant 0 : i32
    %c0_i32_0 = arith.constant 0 : i32
    %c0_i32_1 = arith.constant 0 : i32
    return %c0_i32, %c0_i32_0 : i32, i32
  }
  func.func @transform_5(%arg0: i32) -> (i32, i32) {
    %c0_i32 = arith.constant 0 : i32
    %c0_i32_0 = arith.constant 0 : i32
    %c0_i32_1 = arith.constant 0 : i32
    return %c0_i32, %c0_i32_0 : i32, i32
  }
  func.func @transform_6(%arg0: i32) -> (i32, i32) {
    %c0_i32 = arith.constant 0 : i32
    %c0_i32_0 = arith.constant 0 : i32
    %c0_i32_1 = arith.constant 0 : i32
    return %c0_i32, %c0_i32_0 : i32, i32
  }
  func.func @transform_7(%arg0: i32) -> (i32, i32) {
    %c0_i32 = arith.constant 0 : i32
    %c0_i32_0 = arith.constant 0 : i32
    %c0_i32_1 = arith.constant 0 : i32
    return %c0_i32, %c0_i32_0 : i32, i32
  }
  func.func @transform_8(%arg0: i32) -> (i32, i32) {
    %c0_i32 = arith.constant 0 : i32
    %c0_i32_0 = arith.constant 0 : i32
    %c0_i32_1 = arith.constant 0 : i32
    return %c0_i32, %c0_i32_0 : i32, i32
  }
  func.func @transform_9(%arg0: i32) -> (i32, i32) {
    %c0_i32 = arith.constant 0 : i32
    %c0_i32_0 = arith.constant 0 : i32
    %c0_i32_1 = arith.constant 0 : i32
    return %c0_i32, %c0_i32_0 : i32, i32
  }
  func.func @transform_10(%arg0: i32) -> (i32, i32) {
    %c0_i32 = arith.constant 0 : i32
    %c0_i32_0 = arith.constant 0 : i32
    %c0_i32_1 = arith.constant 0 : i32
    return %c0_i32, %c0_i32_0 : i32, i32
  }
  func.func @transform_11(%arg0: i32) -> (i32, i32) {
    %c0_i32 = arith.constant 0 : i32
    %c0_i32_0 = arith.constant 0 : i32
    %c0_i32_1 = arith.constant 0 : i32
    return %c0_i32, %c0_i32_0 : i32, i32
  }
  func.func @transform_12(%arg0: i32) -> (i32, i32) {
    %c0_i32 = arith.constant 0 : i32
    %c0_i32_0 = arith.constant 0 : i32
    %c0_i32_1 = arith.constant 0 : i32
    return %c0_i32, %c0_i32_0 : i32, i32
  }
  func.func @transform_13(%arg0: i32) -> (i32, i32) {
    %c0_i32 = arith.constant 0 : i32
    %c0_i32_0 = arith.constant 0 : i32
    %c0_i32_1 = arith.constant 0 : i32
    return %c0_i32, %c0_i32_0 : i32, i32
  }
  func.func @transform_14(%arg0: i32) -> (i32, i32) {
    %c0_i32 = arith.constant 0 : i32
    %c0_i32_0 = arith.constant 0 : i32
    %c0_i32_1 = arith.constant 0 : i32
    return %c0_i32, %c0_i32_0 : i32, i32
  }
  func.func @transform_15(%arg0: i32) -> (i32, i32) {
    %c0_i32 = arith.constant 0 : i32
    %c0_i32_0 = arith.constant 0 : i32
    %c0_i32_1 = arith.constant 0 : i32
    return %c0_i32, %c0_i32_0 : i32, i32
  }
  func.func @transform_16(%arg0: i32) -> (i32, i32) {
    %c0_i32 = arith.constant 0 : i32
    %c0_i32_0 = arith.constant 0 : i32
    %c0_i32_1 = arith.constant 0 : i32
    return %c0_i32, %c0_i32_0 : i32, i32
  }
  func.func @transform_17(%arg0: i32) -> (i32, i32) {
    %c0_i32 = arith.constant 0 : i32
    %c0_i32_0 = arith.constant 0 : i32
    %c0_i32_1 = arith.constant 0 : i32
    return %c0_i32, %c0_i32_0 : i32, i32
  }
  func.func @transform_18(%arg0: i32) -> (i32, i32) {
    %c0_i32 = arith.constant 0 : i32
    %c0_i32_0 = arith.constant 0 : i32
    %c0_i32_1 = arith.constant 0 : i32
    return %c0_i32, %c0_i32_0 : i32, i32
  }
  func.func @transform_19(%arg0: i32) -> (i32, i32) {
    %c0_i32 = arith.constant 0 : i32
    %c0_i32_0 = arith.constant 0 : i32
    %c0_i32_1 = arith.constant 0 : i32
    return %c0_i32, %c0_i32_0 : i32, i32
  }
  func.func @transform_20(%arg0: i32) -> (i32, i32) {
    %c0_i32 = arith.constant 0 : i32
    %c0_i32_0 = arith.constant 0 : i32
    %c0_i32_1 = arith.constant 0 : i32
    return %c0_i32, %c0_i32_0 : i32, i32
  }
  func.func @transform_21(%arg0: i32) -> (i32, i32) {
    %c0_i32 = arith.constant 0 : i32
    %c0_i32_0 = arith.constant 0 : i32
    %c0_i32_1 = arith.constant 0 : i32
    return %c0_i32, %c0_i32_0 : i32, i32
  }
  func.func @transform_22(%arg0: i32) -> (i32, i32) {
    %c0_i32 = arith.constant 0 : i32
    %c0_i32_0 = arith.constant 0 : i32
    %c0_i32_1 = arith.constant 0 : i32
    return %c0_i32, %c0_i32_0 : i32, i32
  }
  func.func @transform_23(%arg0: i32) -> (i32, i32) {
    %c0_i32 = arith.constant 0 : i32
    %c0_i32_0 = arith.constant 0 : i32
    %c0_i32_1 = arith.constant 0 : i32
    return %c0_i32, %c0_i32_0 : i32, i32
  }
  func.func @transform_24(%arg0: i32) -> (i32, i32) {
    %c0_i32 = arith.constant 0 : i32
    %c0_i32_0 = arith.constant 0 : i32
    %c0_i32_1 = arith.constant 0 : i32
    return %c0_i32, %c0_i32_0 : i32, i32
  }
  func.func @transform_25(%arg0: i32) -> (i32, i32) {
    %c0_i32 = arith.constant 0 : i32
    %c0_i32_0 = arith.constant 0 : i32
    %c0_i32_1 = arith.constant 0 : i32
    return %c0_i32, %c0_i32_0 : i32, i32
  }
  func.func @transform_26(%arg0: i32) -> (i32, i32) {
    %c0_i32 = arith.constant 0 : i32
    %c0_i32_0 = arith.constant 0 : i32
    %c0_i32_1 = arith.constant 0 : i32
    return %c0_i32, %c0_i32_0 : i32, i32
  }
  func.func @transform_27(%arg0: i32) -> (i32, i32, i32) {
    %c0_i32 = arith.constant 0 : i32
    %c0_i32_0 = arith.constant 0 : i32
    %c0_i32_1 = arith.constant 0 : i32
    return %arg0, %c0_i32, %c0_i32_0 : i32, i32, i32
  }
}

</mosaic_0001>

<llo_original>
// kernel: _lambda_.1
$region0: #{_lambda_.1}
  #allocation0 [shape = 'u32[]', space=smem, size = 0x4, offset = 0x4, fixed_abs, tag = 'smem constant byte address 0x4 - core index']
  #allocation1 [shape = 'u32[144,128]{1,0:T(1,128)}', space=vmem, size = 0x12000, scoped, tag = 'internal scratch']
  %s0 = inlined_call_operand.hbm [shape: f32[2,4,256], index: 0, kind: input, shape index: {}]
  %s1 = inlined_call_operand.hbm [shape: s32[1,256], index: 1, kind: input, shape index: {}]
  %s2 = inlined_call_operand.hbm [shape: s32[1,256], index: 2, kind: input, shape index: {}]
  %s3 = inlined_call_operand.hbm [shape: f32[16,36], index: 3, kind: input, shape index: {}]
  %s4 = inlined_call_operand.hbm [shape: f32[16,1], index: 4, kind: input, shape index: {}]
  %s5 = inlined_call_operand.hbm [shape: f32[4,144], index: 5, kind: input, shape index: {}]
  %s6 = inlined_call_operand.hbm [shape: f32[4,1], index: 6, kind: input, shape index: {}]
  %s7 = inlined_call_operand.hbm [shape: f32[256,16], index: 7, kind: input, shape index: {}]
  %s8 = inlined_call_operand.hbm [shape: s32[1,16], index: 8, kind: input, shape index: {}]
  %s9 = inlined_call_operand.hbm [shape: s32[1,16], index: 9, kind: input, shape index: {}]
  %s10 = inlined_call_operand.hbm [shape: f32[16,72], index: 10, kind: input, shape index: {}]
  %s11 = inlined_call_operand.hbm [shape: f32[16,1], index: 11, kind: input, shape index: {}]
  %s12 = inlined_call_operand.hbm [shape: f32[4,144], index: 12, kind: input, shape index: {}]
  %s13 = inlined_call_operand.hbm [shape: f32[4,1], index: 13, kind: input, shape index: {}]
  %s14 = inlined_call_operand.hbm [shape: f32[16,64], index: 14, kind: input, shape index: {}]
  %s15 = inlined_call_operand.hbm [shape: f32[256,64], index: 15, kind: input, shape index: {}]
  %s16 = inlined_call_operand.hbm [shape: s32[1,64], index: 16, kind: input, shape index: {}]
  %s17 = inlined_call_operand.hbm [shape: s32[1,64], index: 17, kind: input, shape index: {}]
  %s18 = inlined_call_operand.hbm [shape: f32[16,72], index: 18, kind: input, shape index: {}]
  %s19 = inlined_call_operand.hbm [shape: f32[16,1], index: 19, kind: input, shape index: {}]
  %s20 = inlined_call_operand.hbm [shape: f32[4,144], index: 20, kind: input, shape index: {}]
  %s21 = inlined_call_operand.hbm [shape: f32[4,1], index: 21, kind: input, shape index: {}]
  %s22 = inlined_call_operand.hbm [shape: f32[64,256], index: 22, kind: input, shape index: {}]
  %s23 = inlined_call_operand.hbm [shape: f32[16,72], index: 23, kind: input, shape index: {}]
  %s24 = inlined_call_operand.hbm [shape: f32[16,1], index: 24, kind: input, shape index: {}]
  %s25 = inlined_call_operand.hbm [shape: f32[4,144], index: 25, kind: input, shape index: {}]
  %s26 = inlined_call_operand.hbm [shape: f32[4,1], index: 26, kind: input, shape index: {}]
  %s27 = inlined_call_operand.hbm [shape: f32[2,4,256], index: 27, kind: output, shape index: {}]
  %s28 = sld [smem:[#allocation0]]
  $region249: #{_lambda_.1} parent=0
    _
  %s30 = ssub.s32 1, %s28
  %s31 = scalar_select 0, %s30, %s28
  $region1: #{_lambda_.1} parent=0
    #allocation2 [shape = 'u8[8192]{0}', space=vmem, size = 0x2000, scoped, tag = 'input window, operand 0']
    #allocation3 [shape = 's32[2]{0}', space=sflag, size = 0x8, scoped, tag = 'scoped memory for _lambda_.1']
    #allocation4 [shape = 's32[2]{0}', space=sflag, size = 0x8, scoped, tag = 'scoped memory for _lambda_.1']
    #allocation5 [shape = 'u8[1024]{0}', space=vmem, size = 0x400, scoped, tag = 'input window, operand 1, single buffered']
    #allocation6 [shape = 's32[1]{0}', space=sflag, size = 0x4, scoped, tag = 'scoped memory for _lambda_.1']
    #allocation7 [shape = 'u8[1024]{0}', space=vmem, size = 0x400, scoped, tag = 'input window, operand 2, single buffered']
    #allocation8 [shape = 'u8[8192]{0}', space=vmem, size = 0x2000, scoped, tag = 'input window, operand 3, single buffered']
    #allocation9 [shape = 's32[1]{0}', space=sflag, size = 0x4, scoped, tag = 'scoped memory for _lambda_.1']
    #allocation10 [shape = 'u8[8192]{0}', space=vmem, size = 0x2000, scoped, tag = 'input window, operand 4, single buffered']
    #allocation11 [shape = 'u8[4096]{0}', space=vmem, size = 0x1000, scoped, tag = 'input window, operand 5, single buffered']
    #allocation12 [shape = 's32[1]{0}', space=sflag, size = 0x4, scoped, tag = 'scoped memory for _lambda_.1']
    #allocation13 [shape = 'u8[2048]{0}', space=vmem, size = 0x800, scoped, tag = 'input window, operand 6, single buffered']
    #allocation14 [shape = 'u8[131072]{0}', space=vmem, size = 0x20000, scoped, tag = 'input window, operand 7, single buffered']
    #allocation15 [shape = 's32[1]{0}', space=sflag, size = 0x4, scoped, tag = 'scoped memory for _lambda_.1']
    #allocation16 [shape = 'u8[512]{0}', space=vmem, size = 0x400, scoped, tag = 'input window, operand 8, single buffered']
    #allocation17 [shape = 'u8[512]{0}', space=vmem, size = 0x400, scoped, tag = 'input window, operand 9, single buffered']
    #allocation18 [shape = 's32[1]{0}', space=sflag, size = 0x4, scoped, tag = 'scoped memory for _lambda_.1']
    #allocation19 [shape = 'u8[8192]{0}', space=vmem, size = 0x2000, scoped, tag = 'input window, operand 10, single buffered']
    #allocation20 [shape = 'u8[8192]{0}', space=vmem, size = 0x2000, scoped, tag = 'input window, operand 11, single buffered']
    #allocation21 [shape = 's32[1]{0}', space=sflag, size = 0x4, scoped, tag = 'scoped memory for _lambda_.1']
    #allocation22 [shape = 'u8[4096]{0}', space=vmem, size = 0x1000, scoped, tag = 'input window, operand 12, single buffered']
    #allocation23 [shape = 'u8[2048]{0}', space=vmem, size = 0x800, scoped, tag = 'input window, operand 13, single buffered']
    #allocation24 [shape = 's32[1]{0}', space=sflag, size = 0x4, scoped, tag = 'scoped memory for _lambda_.1']
    #allocation25 [shape = 'u8[8192]{0}', space=vmem, size = 0x2000, scoped, tag = 'input window, operand 14, single buffered']
    #allocation26 [shape = 'u8[131072]{0}', space=vmem, size = 0x20000, scoped, tag = 'input window, operand 15, single buffered']
    #allocation27 [shape = 's32[1]{0}', space=sflag, size = 0x4, scoped, tag = 'scoped memory for _lambda_.1']
    #allocation28 [shape = 'u8[512]{0}', space=vmem, size = 0x400, scoped, tag = 'input window, operand 16, single buffered']
    #allocation29 [shape = 'u8[512]{0}', space=vmem, size = 0x400, scoped, tag = 'input window, operand 17, single buffered']
    #allocation30 [shape = 's32[1]{0}', space=sflag, size = 0x4, scoped, tag = 'scoped memory for _lambda_.1']
    #allocation31 [shape = 'u8[8192]{0}', space=vmem, size = 0x2000, scoped, tag = 'input window, operand 18, single buffered']
    #allocation32 [shape = 'u8[8192]{0}', space=vmem, size = 0x2000, scoped, tag = 'input window, operand 19, single buffered']
    #allocation33 [shape = 's32[1]{0}', space=sflag, size = 0x4, scoped, tag = 'scoped memory for _lambda_.1']
    #allocation34 [shape = 'u8[4096]{0}', space=vmem, size = 0x1000, scoped, tag = 'input window, operand 20, single buffered']
    #allocation35 [shape = 'u8[2048]{0}', space=vmem, size = 0x800, scoped, tag = 'input window, operand 21, single buffered']
    #allocation36 [shape = 's32[1]{0}', space=sflag, size = 0x4, scoped, tag = 'scoped memory for _lambda_.1']
    #allocation37 [shape = 'u8[65536]{0}', space=vmem, size = 0x10000, scoped, tag = 'input window, operand 22, single buffered']
    #allocation38 [shape = 'u8[8192]{0}', space=vmem, size = 0x2000, scoped, tag = 'input window, operand 23, single buffered']
    #allocation39 [shape = 's32[1]{0}', space=sflag, size = 0x4, scoped, tag = 'scoped memory for _lambda_.1']
    #allocation40 [shape = 'u8[8192]{0}', space=vmem, size = 0x2000, scoped, tag = 'input window, operand 24, single buffered']
    #allocation41 [shape = 'u8[4096]{0}', space=vmem, size = 0x1000, scoped, tag = 'input window, operand 25, single buffered']
    #allocation42 [shape = 's32[1]{0}', space=sflag, size = 0x4, scoped, tag = 'scoped memory for _lambda_.1']
    #allocation43 [shape = 'u8[2048]{0}', space=vmem, size = 0x800, scoped, tag = 'input window, operand 26, single buffered']
    #allocation44 [shape = 'u8[8192]{0}', space=vmem, size = 0x2000, scoped, tag = 'output window, operand 0']
    %32 = vsyncpa [#allocation3], 0
    %s33 = scalar_lea.sflag [#allocation3], 1
    %34 = vsyncpa %s33, 0
    %35 = vsyncpa [#allocation6], 0
    %36 = vsyncpa [#allocation9], 0
    %37 = vsyncpa [#allocation12], 0
    %38 = vsyncpa [#allocation15], 0
    %39 = vsyncpa [#allocation18], 0
    %40 = vsyncpa [#allocation21], 0
    %41 = vsyncpa [#allocation24], 0
    %42 = vsyncpa [#allocation27], 0
    %43 = vsyncpa [#allocation30], 0
    %44 = vsyncpa [#allocation33], 0
    %45 = vsyncpa [#allocation36], 0
    %46 = vsyncpa [#allocation39], 0
    %47 = vsyncpa [#allocation42], 0
    %48 = vsyncpa [#allocation4], 0
    %s49 = scalar_lea.sflag [#allocation4], 1
    %50 = vsyncpa %s49, 0
    loop: start=0, step=1, limit=4
    $region2: #{_lambda_.1} parent=1 // loop_pre_header
      _
    $region3: #{_lambda_.1} parent=1 // loop_header
      %s52 = sphi 0, %s56
      %p53 = scmp.ge.s32.totalorder %s52, 4
      %s62 = sphi 0, %s64
      %s65 = sphi 0, %s62
      %s66 = sphi 0, %s65
      %s82 = sphi 0, %s66
      %s86 = sphi 0, %s86
      %s88 = sphi 0, %s86
      %s89 = sphi 0, %s88
      %s103 = sphi 0, %s89
      %s107 = sphi 0, %s107
      %s109 = sphi 0, %s107
      %s110 = sphi 0, %s109
      %s124 = sphi 0, %s110
      %s128 = sphi 0, %s128
      %s130 = sphi 0, %s128
      %s131 = sphi 0, %s130
      %s145 = sphi 0, %s131
      %s149 = sphi 0, %s149
      %s151 = sphi 0, %s149
      %s152 = sphi 0, %s151
      %s166 = sphi 0, %s152
      %s170 = sphi 0, %s170
      %s172 = sphi 0, %s170
      %s173 = sphi 0, %s172
      %s187 = sphi 0, %s173
      %s191 = sphi 0, %s191
      %s193 = sphi 0, %s191
      %s194 = sphi 0, %s193
      %s208 = sphi 0, %s194
      %s212 = sphi 0, %s212
      %s214 = sphi 0, %s212
      %s215 = sphi 0, %s214
      %s229 = sphi 0, %s215
      %s233 = sphi 0, %s233
      %s235 = sphi 0, %s233
      %s236 = sphi 0, %s235
      %s250 = sphi 0, %s236
      %s254 = sphi 0, %s254
      %s256 = sphi 0, %s254
      %s257 = sphi 0, %s256
      %s271 = sphi 0, %s257
      %s275 = sphi 0, %s275
      %s277 = sphi 0, %s275
      %s278 = sphi 0, %s277
      %s292 = sphi 0, %s278
      %s296 = sphi 0, %s296
      %s298 = sphi 0, %s296
      %s299 = sphi 0, %s298
      %s313 = sphi 0, %s299
      %s317 = sphi 0, %s317
      %s319 = sphi 0, %s317
      %s320 = sphi 0, %s319
      %s334 = sphi 0, %s320
      %s338 = sphi 0, %s338
      %s340 = sphi 0, %s338
      %s341 = sphi 0, %s340
      %s355 = sphi 0, %s341
      %s359 = sphi 0, %s359
      %s361 = sphi 0, %s359
      %s362 = sphi 0, %s361
      %s376 = sphi 0, %s362
      %s380 = sphi 0, %s380
      %s382 = sphi 0, %s380
      %s383 = sphi 0, %s382
      %s397 = sphi 0, %s383
      %s401 = sphi 0, %s401
      %s403 = sphi 0, %s401
      %s404 = sphi 0, %s403
      %s418 = sphi 0, %s404
      %s422 = sphi 0, %s422
      %s424 = sphi 0, %s422
      %s425 = sphi 0, %s424
      %s439 = sphi 0, %s425
      %s443 = sphi 0, %s443
      %s445 = sphi 0, %s443
      %s446 = sphi 0, %s445
      %s460 = sphi 0, %s446
      %s464 = sphi 0, %s464
      %s466 = sphi 0, %s464
      %s467 = sphi 0, %s466
      %s481 = sphi 0, %s467
      %s485 = sphi 0, %s485
      %s487 = sphi 0, %s485
      %s488 = sphi 0, %s487
      %s502 = sphi 0, %s488
      %s506 = sphi 0, %s506
      %s508 = sphi 0, %s506
      %s509 = sphi 0, %s508
      %s523 = sphi 0, %s509
      %s527 = sphi 0, %s527
      %s529 = sphi 0, %s527
      %s530 = sphi 0, %s529
      %s544 = sphi 0, %s530
      %s548 = sphi 0, %s548
      %s550 = sphi 0, %s548
      %s551 = sphi 0, %s550
      %s565 = sphi 0, %s551
      %s569 = sphi 0, %s569
      %s571 = sphi 0, %s569
      %s572 = sphi 0, %s571
      %s586 = sphi 0, %s572
      %s590 = sphi 0, %s590
      %s592 = sphi 0, %s590
      %s593 = sphi 0, %s592
      %s607 = sphi 0, %s593
      %s611 = sphi 0, %s611
      %s613 = sphi 0, %s611
      %s614 = sphi 0, %s613
      %s628 = sphi 0, %s614
      %s634 = sphi 0, %s636
      %s637 = sphi 0, %s634
      %s638 = sphi 0, %s637
      %s654 = sphi 0, %s638
    $region4: #{_lambda_.1} parent=1 // loop_header_branch
      %55 = sbr.rel (%p53) target = $region8
    $region5: #{_lambda_.1} parent=1 // loop_body
      %s57 = ssub.s32 %s52, 1
      %s58 = ssub.s32 %s52, 2
      %s59 = sadd.s32 %s52, 1
      %s60 = ssub.s32 %s52, %s59
      %p61 = scmp.eq.s32.totalorder %s60, 0
      %s63 = sadd.s32 %s62, 1
      %s64 = scalar_select %p61, %s62, %s63
      %p67 = pneg %p61
      %p68 = scmp.eq.s32.totalorder %s52, 1
      %p69 = por %p67, %p68
      %p70 = scmp.ne.s32.totalorder %s62, %s65
      %p71 = scmp.eq.s32.totalorder %s52, 0
      %p72 = por %p70, %p71
      %p73 = scmp.ne.s32.totalorder %s62, %s65
      %p74 = scmp.eq.s32.totalorder %s57, 1
      %p75 = por %p73, %p74
      %p76 = scmp.ne.s32.totalorder %s65, %s66
      %p77 = scmp.eq.s32.totalorder %s57, 0
      %p78 = por %p76, %p77
      %p79 = scmp.ne.s32.totalorder %s65, %s66
      %p80 = scmp.eq.s32.totalorder %s58, 1
      %p81 = por %p79, %p80
      %p83 = scmp.ne.s32.totalorder %s66, %s82
      %p84 = scmp.eq.s32.totalorder %s58, 0
      %p85 = por %p83, %p84
      %s87 = sadd.s32 %s86, 1
      %p90 = scmp.eq.s32.totalorder %s52, 1
      %p91 = scmp.ne.s32.totalorder %s86, %s88
      %p92 = scmp.eq.s32.totalorder %s52, 0
      %p93 = por %p91, %p92
      %p94 = scmp.ne.s32.totalorder %s86, %s88
      %p95 = scmp.eq.s32.totalorder %s57, 1
      %p96 = por %p94, %p95
      %p97 = scmp.ne.s32.totalorder %s88, %s89
      %p98 = scmp.eq.s32.totalorder %s57, 0
      %p99 = por %p97, %p98
      %p100 = scmp.ne.s32.totalorder %s88, %s89
      %p101 = scmp.eq.s32.totalorder %s58, 1
      %p102 = por %p100, %p101
      %p104 = scmp.ne.s32.totalorder %s89, %s103
      %p105 = scmp.eq.s32.totalorder %s58, 0
      %p106 = por %p104, %p105
      %s108 = sadd.s32 %s107, 1
      %p111 = scmp.eq.s32.totalorder %s52, 1
      %p112 = scmp.ne.s32.totalorder %s107, %s109
      %p113 = scmp.eq.s32.totalorder %s52, 0
      %p114 = por %p112, %p113
      %p115 = scmp.ne.s32.totalorder %s107, %s109
      %p116 = scmp.eq.s32.totalorder %s57, 1
      %p117 = por %p115, %p116
      %p118 = scmp.ne.s32.totalorder %s109, %s110
      %p119 = scmp.eq.s32.totalorder %s57, 0
      %p120 = por %p118, %p119
      %p121 = scmp.ne.s32.totalorder %s109, %s110
      %p122 = scmp.eq.s32.totalorder %s58, 1
      %p123 = por %p121, %p122
      %p125 = scmp.ne.s32.totalorder %s110, %s124
      %p126 = scmp.eq.s32.totalorder %s58, 0
      %p127 = por %p125, %p126
      %s129 = sadd.s32 %s128, 1
      %p132 = scmp.eq.s32.totalorder %s52, 1
      %p133 = scmp.ne.s32.totalorder %s128, %s130
      %p134 = scmp.eq.s32.totalorder %s52, 0
      %p135 = por %p133, %p134
      %p136 = scmp.ne.s32.totalorder %s128, %s130
      %p137 = scmp.eq.s32.totalorder %s57, 1
      %p138 = por %p136, %p137
      %p139 = scmp.ne.s32.totalorder %s130, %s131
      %p140 = scmp.eq.s32.totalorder %s57, 0
      %p141 = por %p139, %p140
      %p142 = scmp.ne.s32.totalorder %s130, %s131
      %p143 = scmp.eq.s32.totalorder %s58, 1
      %p144 = por %p142, %p143
      %p146 = scmp.ne.s32.totalorder %s131, %s145
      %p147 = scmp.eq.s32.totalorder %s58, 0
      %p148 = por %p146, %p147
      %s150 = sadd.s32 %s149, 1
      %p153 = scmp.eq.s32.totalorder %s52, 1
      %p154 = scmp.ne.s32.totalorder %s149, %s151
      %p155 = scmp.eq.s32.totalorder %s52, 0
      %p156 = por %p154, %p155
      %p157 = scmp.ne.s32.totalorder %s149, %s151
      %p158 = scmp.eq.s32.totalorder %s57, 1
      %p159 = por %p157, %p158
      %p160 = scmp.ne.s32.totalorder %s151, %s152
      %p161 = scmp.eq.s32.totalorder %s57, 0
      %p162 = por %p160, %p161
      %p163 = scmp.ne.s32.totalorder %s151, %s152
      %p164 = scmp.eq.s32.totalorder %s58, 1
      %p165 = por %p163, %p164
      %p167 = scmp.ne.s32.totalorder %s152, %s166
      %p168 = scmp.eq.s32.totalorder %s58, 0
      %p169 = por %p167, %p168
      %s171 = sadd.s32 %s170, 1
      %p174 = scmp.eq.s32.totalorder %s52, 1
      %p175 = scmp.ne.s32.totalorder %s170, %s172
      %p176 = scmp.eq.s32.totalorder %s52, 0
      %p177 = por %p175, %p176
      %p178 = scmp.ne.s32.totalorder %s170, %s172
      %p179 = scmp.eq.s32.totalorder %s57, 1
      %p180 = por %p178, %p179
      %p181 = scmp.ne.s32.totalorder %s172, %s173
      %p182 = scmp.eq.s32.totalorder %s57, 0
      %p183 = por %p181, %p182
      %p184 = scmp.ne.s32.totalorder %s172, %s173
      %p185 = scmp.eq.s32.totalorder %s58, 1
      %p186 = por %p184, %p185
      %p188 = scmp.ne.s32.totalorder %s173, %s187
      %p189 = scmp.eq.s32.totalorder %s58, 0
      %p190 = por %p188, %p189
      %s192 = sadd.s32 %s191, 1
      %p195 = scmp.eq.s32.totalorder %s52, 1
      %p196 = scmp.ne.s32.totalorder %s191, %s193
      %p197 = scmp.eq.s32.totalorder %s52, 0
      %p198 = por %p196, %p197
      %p199 = scmp.ne.s32.totalorder %s191, %s193
      %p200 = scmp.eq.s32.totalorder %s57, 1
      %p201 = por %p199, %p200
      %p202 = scmp.ne.s32.totalorder %s193, %s194
      %p203 = scmp.eq.s32.totalorder %s57, 0
      %p204 = por %p202, %p203
      %p205 = scmp.ne.s32.totalorder %s193, %s194
      %p206 = scmp.eq.s32.totalorder %s58, 1
      %p207 = por %p205, %p206
      %p209 = scmp.ne.s32.totalorder %s194, %s208
      %p210 = scmp.eq.s32.totalorder %s58, 0
      %p211 = por %p209, %p210
      %s213 = sadd.s32 %s212, 1
      %p216 = scmp.eq.s32.totalorder %s52, 1
      %p217 = scmp.ne.s32.totalorder %s212, %s214
      %p218 = scmp.eq.s32.totalorder %s52, 0
      %p219 = por %p217, %p218
      %p220 = scmp.ne.s32.totalorder %s212, %s214
      %p221 = scmp.eq.s32.totalorder %s57, 1
      %p222 = por %p220, %p221
      %p223 = scmp.ne.s32.totalorder %s214, %s215
      %p224 = scmp.eq.s32.totalorder %s57, 0
      %p225 = por %p223, %p224
      %p226 = scmp.ne.s32.totalorder %s214, %s215
      %p227 = scmp.eq.s32.totalorder %s58, 1
      %p228 = por %p226, %p227
      %p230 = scmp.ne.s32.totalorder %s215, %s229
      %p231 = scmp.eq.s32.totalorder %s58, 0
      %p232 = por %p230, %p231
      %s234 = sadd.s32 %s233, 1
      %p237 = scmp.eq.s32.totalorder %s52, 1
      %p238 = scmp.ne.s32.totalorder %s233, %s235
      %p239 = scmp.eq.s32.totalorder %s52, 0
      %p240 = por %p238, %p239
      %p241 = scmp.ne.s32.totalorder %s233, %s235
      %p242 = scmp.eq.s32.totalorder %s57, 1
      %p243 = por %p241, %p242
      %p244 = scmp.ne.s32.totalorder %s235, %s236
      %p245 = scmp.eq.s32.totalorder %s57, 0
      %p246 = por %p244, %p245
      %p247 = scmp.ne.s32.totalorder %s235, %s236
      %p248 = scmp.eq.s32.totalorder %s58, 1
      %p249 = por %p247, %p248
      %p251 = scmp.ne.s32.totalorder %s236, %s250
      %p252 = scmp.eq.s32.totalorder %s58, 0
      %p253 = por %p251, %p252
      %s255 = sadd.s32 %s254, 1
      %p258 = scmp.eq.s32.totalorder %s52, 1
      %p259 = scmp.ne.s32.totalorder %s254, %s256
      %p260 = scmp.eq.s32.totalorder %s52, 0
      %p261 = por %p259, %p260
      %p262 = scmp.ne.s32.totalorder %s254, %s256
      %p263 = scmp.eq.s32.totalorder %s57, 1
      %p264 = por %p262, %p263
      %p265 = scmp.ne.s32.totalorder %s256, %s257
      %p266 = scmp.eq.s32.totalorder %s57, 0
      %p267 = por %p265, %p266
      %p268 = scmp.ne.s32.totalorder %s256, %s257
      %p269 = scmp.eq.s32.totalorder %s58, 1
      %p270 = por %p268, %p269
      %p272 = scmp.ne.s32.totalorder %s257, %s271
      %p273 = scmp.eq.s32.totalorder %s58, 0
      %p274 = por %p272, %p273
      %s276 = sadd.s32 %s275, 1
      %p279 = scmp.eq.s32.totalorder %s52, 1
      %p280 = scmp.ne.s32.totalorder %s275, %s277
      %p281 = scmp.eq.s32.totalorder %s52, 0
      %p282 = por %p280, %p281
      %p283 = scmp.ne.s32.totalorder %s275, %s277
      %p284 = scmp.eq.s32.totalorder %s57, 1
      %p285 = por %p283, %p284
      %p286 = scmp.ne.s32.totalorder %s277, %s278
      %p287 = scmp.eq.s32.totalorder %s57, 0
      %p288 = por %p286, %p287
      %p289 = scmp.ne.s32.totalorder %s277, %s278
      %p290 = scmp.eq.s32.totalorder %s58, 1
      %p291 = por %p289, %p290
      %p293 = scmp.ne.s32.totalorder %s278, %s292
      %p294 = scmp.eq.s32.totalorder %s58, 0
      %p295 = por %p293, %p294
      %s297 = sadd.s32 %s296, 1
      %p300 = scmp.eq.s32.totalorder %s52, 1
      %p301 = scmp.ne.s32.totalorder %s296, %s298
      %p302 = scmp.eq.s32.totalorder %s52, 0
      %p303 = por %p301, %p302
      %p304 = scmp.ne.s32.totalorder %s296, %s298
      %p305 = scmp.eq.s32.totalorder %s57, 1
      %p306 = por %p304, %p305
      %p307 = scmp.ne.s32.totalorder %s298, %s299
      %p308 = scmp.eq.s32.totalorder %s57, 0
      %p309 = por %p307, %p308
      %p310 = scmp.ne.s32.totalorder %s298, %s299
      %p311 = scmp.eq.s32.totalorder %s58, 1
      %p312 = por %p310, %p311
      %p314 = scmp.ne.s32.totalorder %s299, %s313
      %p315 = scmp.eq.s32.totalorder %s58, 0
      %p316 = por %p314, %p315
      %s318 = sadd.s32 %s317, 1
      %p321 = scmp.eq.s32.totalorder %s52, 1
      %p322 = scmp.ne.s32.totalorder %s317, %s319
      %p323 = scmp.eq.s32.totalorder %s52, 0
      %p324 = por %p322, %p323
      %p325 = scmp.ne.s32.totalorder %s317, %s319
      %p326 = scmp.eq.s32.totalorder %s57, 1
      %p327 = por %p325, %p326
      %p328 = scmp.ne.s32.totalorder %s319, %s320
      %p329 = scmp.eq.s32.totalorder %s57, 0
      %p330 = por %p328, %p329
      %p331 = scmp.ne.s32.totalorder %s319, %s320
      %p332 = scmp.eq.s32.totalorder %s58, 1
      %p333 = por %p331, %p332
      %p335 = scmp.ne.s32.totalorder %s320, %s334
      %p336 = scmp.eq.s32.totalorder %s58, 0
      %p337 = por %p335, %p336
      %s339 = sadd.s32 %s338, 1
      %p342 = scmp.eq.s32.totalorder %s52, 1
      %p343 = scmp.ne.s32.totalorder %s338, %s340
      %p344 = scmp.eq.s32.totalorder %s52, 0
      %p345 = por %p343, %p344
      %p346 = scmp.ne.s32.totalorder %s338, %s340
      %p347 = scmp.eq.s32.totalorder %s57, 1
      %p348 = por %p346, %p347
      %p349 = scmp.ne.s32.totalorder %s340, %s341
      %p350 = scmp.eq.s32.totalorder %s57, 0
      %p351 = por %p349, %p350
      %p352 = scmp.ne.s32.totalorder %s340, %s341
      %p353 = scmp.eq.s32.totalorder %s58, 1
      %p354 = por %p352, %p353
      %p356 = scmp.ne.s32.totalorder %s341, %s355
      %p357 = scmp.eq.s32.totalorder %s58, 0
      %p358 = por %p356, %p357
      %s360 = sadd.s32 %s359, 1
      %p363 = scmp.eq.s32.totalorder %s52, 1
      %p364 = scmp.ne.s32.totalorder %s359, %s361
      %p365 = scmp.eq.s32.totalorder %s52, 0
      %p366 = por %p364, %p365
      %p367 = scmp.ne.s32.totalorder %s359, %s361
      %p368 = scmp.eq.s32.totalorder %s57, 1
      %p369 = por %p367, %p368
      %p370 = scmp.ne.s32.totalorder %s361, %s362
      %p371 = scmp.eq.s32.totalorder %s57, 0
      %p372 = por %p370, %p371
      %p373 = scmp.ne.s32.totalorder %s361, %s362
      %p374 = scmp.eq.s32.totalorder %s58, 1
      %p375 = por %p373, %p374
      %p377 = scmp.ne.s32.totalorder %s362, %s376
      %p378 = scmp.eq.s32.totalorder %s58, 0
      %p379 = por %p377, %p378
      %s381 = sadd.s32 %s380, 1
      %p384 = scmp.eq.s32.totalorder %s52, 1
      %p385 = scmp.ne.s32.totalorder %s380, %s382
      %p386 = scmp.eq.s32.totalorder %s52, 0
      %p387 = por %p385, %p386
      %p388 = scmp.ne.s32.totalorder %s380, %s382
      %p389 = scmp.eq.s32.totalorder %s57, 1
      %p390 = por %p388, %p389
      %p391 = scmp.ne.s32.totalorder %s382, %s383
      %p392 = scmp.eq.s32.totalorder %s57, 0
      %p393 = por %p391, %p392
      %p394 = scmp.ne.s32.totalorder %s382, %s383
      %p395 = scmp.eq.s32.totalorder %s58, 1
      %p396 = por %p394, %p395
      %p398 = scmp.ne.s32.totalorder %s383, %s397
      %p399 = scmp.eq.s32.totalorder %s58, 0
      %p400 = por %p398, %p399
      %s402 = sadd.s32 %s401, 1
      %p405 = scmp.eq.s32.totalorder %s52, 1
      %p406 = scmp.ne.s32.totalorder %s401, %s403
      %p407 = scmp.eq.s32.totalorder %s52, 0
      %p408 = por %p406, %p407
      %p409 = scmp.ne.s32.totalorder %s401, %s403
      %p410 = scmp.eq.s32.totalorder %s57, 1
      %p411 = por %p409, %p410
      %p412 = scmp.ne.s32.totalorder %s403, %s404
      %p413 = scmp.eq.s32.totalorder %s57, 0
      %p414 = por %p412, %p413
      %p415 = scmp.ne.s32.totalorder %s403, %s404
      %p416 = scmp.eq.s32.totalorder %s58, 1
      %p417 = por %p415, %p416
      %p419 = scmp.ne.s32.totalorder %s404, %s418
      %p420 = scmp.eq.s32.totalorder %s58, 0
      %p421 = por %p419, %p420
      %s423 = sadd.s32 %s422, 1
      %p426 = scmp.eq.s32.totalorder %s52, 1
      %p427 = scmp.ne.s32.totalorder %s422, %s424
      %p428 = scmp.eq.s32.totalorder %s52, 0
      %p429 = por %p427, %p428
      %p430 = scmp.ne.s32.totalorder %s422, %s424
      %p431 = scmp.eq.s32.totalorder %s57, 1
      %p432 = por %p430, %p431
      %p433 = scmp.ne.s32.totalorder %s424, %s425
      %p434 = scmp.eq.s32.totalorder %s57, 0
      %p435 = por %p433, %p434
      %p436 = scmp.ne.s32.totalorder %s424, %s425
      %p437 = scmp.eq.s32.totalorder %s58, 1
      %p438 = por %p436, %p437
      %p440 = scmp.ne.s32.totalorder %s425, %s439
      %p441 = scmp.eq.s32.totalorder %s58, 0
      %p442 = por %p440, %p441
      %s444 = sadd.s32 %s443, 1
      %p447 = scmp.eq.s32.totalorder %s52, 1
      %p448 = scmp.ne.s32.totalorder %s443, %s445
      %p449 = scmp.eq.s32.totalorder %s52, 0
      %p450 = por %p448, %p449
      %p451 = scmp.ne.s32.totalorder %s443, %s445
      %p452 = scmp.eq.s32.totalorder %s57, 1
      %p453 = por %p451, %p452
      %p454 = scmp.ne.s32.totalorder %s445, %s446
      %p455 = scmp.eq.s32.totalorder %s57, 0
      %p456 = por %p454, %p455
      %p457 = scmp.ne.s32.totalorder %s445, %s446
      %p458 = scmp.eq.s32.totalorder %s58, 1
      %p459 = por %p457, %p458
      %p461 = scmp.ne.s32.totalorder %s446, %s460
      %p462 = scmp.eq.s32.totalorder %s58, 0
      %p463 = por %p461, %p462
      %s465 = sadd.s32 %s464, 1
      %p468 = scmp.eq.s32.totalorder %s52, 1
      %p469 = scmp.ne.s32.totalorder %s464, %s466
      %p470 = scmp.eq.s32.totalorder %s52, 0
      %p471 = por %p469, %p470
      %p472 = scmp.ne.s32.totalorder %s464, %s466
      %p473 = scmp.eq.s32.totalorder %s57, 1
      %p474 = por %p472, %p473
      %p475 = scmp.ne.s32.totalorder %s466, %s467
      %p476 = scmp.eq.s32.totalorder %s57, 0
      %p477 = por %p475, %p476
      %p478 = scmp.ne.s32.totalorder %s466, %s467
      %p479 = scmp.eq.s32.totalorder %s58, 1
      %p480 = por %p478, %p479
      %p482 = scmp.ne.s32.totalorder %s467, %s481
      %p483 = scmp.eq.s32.totalorder %s58, 0
      %p484 = por %p482, %p483
      %s486 = sadd.s32 %s485, 1
      %p489 = scmp.eq.s32.totalorder %s52, 1
      %p490 = scmp.ne.s32.totalorder %s485, %s487
      %p491 = scmp.eq.s32.totalorder %s52, 0
      %p492 = por %p490, %p491
      %p493 = scmp.ne.s32.totalorder %s485, %s487
      %p494 = scmp.eq.s32.totalorder %s57, 1
      %p495 = por %p493, %p494
      %p496 = scmp.ne.s32.totalorder %s487, %s488
      %p497 = scmp.eq.s32.totalorder %s57, 0
      %p498 = por %p496, %p497
      %p499 = scmp.ne.s32.totalorder %s487, %s488
      %p500 = scmp.eq.s32.totalorder %s58, 1
      %p501 = por %p499, %p500
      %p503 = scmp.ne.s32.totalorder %s488, %s502
      %p504 = scmp.eq.s32.totalorder %s58, 0
      %p505 = por %p503, %p504
      %s507 = sadd.s32 %s506, 1
      %p510 = scmp.eq.s32.totalorder %s52, 1
      %p511 = scmp.ne.s32.totalorder %s506, %s508
      %p512 = scmp.eq.s32.totalorder %s52, 0
      %p513 = por %p511, %p512
      %p514 = scmp.ne.s32.totalorder %s506, %s508
      %p515 = scmp.eq.s32.totalorder %s57, 1
      %p516 = por %p514, %p515
      %p517 = scmp.ne.s32.totalorder %s508, %s509
      %p518 = scmp.eq.s32.totalorder %s57, 0
      %p519 = por %p517, %p518
      %p520 = scmp.ne.s32.totalorder %s508, %s509
      %p521 = scmp.eq.s32.totalorder %s58, 1
      %p522 = por %p520, %p521
      %p524 = scmp.ne.s32.totalorder %s509, %s523
      %p525 = scmp.eq.s32.totalorder %s58, 0
      %p526 = por %p524, %p525
      %s528 = sadd.s32 %s527, 1
      %p531 = scmp.eq.s32.totalorder %s52, 1
      %p532 = scmp.ne.s32.totalorder %s527, %s529
      %p533 = scmp.eq.s32.totalorder %s52, 0
      %p534 = por %p532, %p533
      %p535 = scmp.ne.s32.totalorder %s527, %s529
      %p536 = scmp.eq.s32.totalorder %s57, 1
      %p537 = por %p535, %p536
      %p538 = scmp.ne.s32.totalorder %s529, %s530
      %p539 = scmp.eq.s32.totalorder %s57, 0
      %p540 = por %p538, %p539
      %p541 = scmp.ne.s32.totalorder %s529, %s530
      %p542 = scmp.eq.s32.totalorder %s58, 1
      %p543 = por %p541, %p542
      %p545 = scmp.ne.s32.totalorder %s530, %s544
      %p546 = scmp.eq.s32.totalorder %s58, 0
      %p547 = por %p545, %p546
      %s549 = sadd.s32 %s548, 1
      %p552 = scmp.eq.s32.totalorder %s52, 1
      %p553 = scmp.ne.s32.totalorder %s548, %s550
      %p554 = scmp.eq.s32.totalorder %s52, 0
      %p555 = por %p553, %p554
      %p556 = scmp.ne.s32.totalorder %s548, %s550
      %p557 = scmp.eq.s32.totalorder %s57, 1
      %p558 = por %p556, %p557
      %p559 = scmp.ne.s32.totalorder %s550, %s551
      %p560 = scmp.eq.s32.totalorder %s57, 0
      %p561 = por %p559, %p560
      %p562 = scmp.ne.s32.totalorder %s550, %s551
      %p563 = scmp.eq.s32.totalorder %s58, 1
      %p564 = por %p562, %p563
      %p566 = scmp.ne.s32.totalorder %s551, %s565
      %p567 = scmp.eq.s32.totalorder %s58, 0
      %p568 = por %p566, %p567
      %s570 = sadd.s32 %s569, 1
      %p573 = scmp.eq.s32.totalorder %s52, 1
      %p574 = scmp.ne.s32.totalorder %s569, %s571
      %p575 = scmp.eq.s32.totalorder %s52, 0
      %p576 = por %p574, %p575
      %p577 = scmp.ne.s32.totalorder %s569, %s571
      %p578 = scmp.eq.s32.totalorder %s57, 1
      %p579 = por %p577, %p578
      %p580 = scmp.ne.s32.totalorder %s571, %s572
      %p581 = scmp.eq.s32.totalorder %s57, 0
      %p582 = por %p580, %p581
      %p583 = scmp.ne.s32.totalorder %s571, %s572
      %p584 = scmp.eq.s32.totalorder %s58, 1
      %p585 = por %p583, %p584
      %p587 = scmp.ne.s32.totalorder %s572, %s586
      %p588 = scmp.eq.s32.totalorder %s58, 0
      %p589 = por %p587, %p588
      %s591 = sadd.s32 %s590, 1
      %p594 = scmp.eq.s32.totalorder %s52, 1
      %p595 = scmp.ne.s32.totalorder %s590, %s592
      %p596 = scmp.eq.s32.totalorder %s52, 0
      %p597 = por %p595, %p596
      %p598 = scmp.ne.s32.totalorder %s590, %s592
      %p599 = scmp.eq.s32.totalorder %s57, 1
      %p600 = por %p598, %p599
      %p601 = scmp.ne.s32.totalorder %s592, %s593
      %p602 = scmp.eq.s32.totalorder %s57, 0
      %p603 = por %p601, %p602
      %p604 = scmp.ne.s32.totalorder %s592, %s593
      %p605 = scmp.eq.s32.totalorder %s58, 1
      %p606 = por %p604, %p605
      %p608 = scmp.ne.s32.totalorder %s593, %s607
      %p609 = scmp.eq.s32.totalorder %s58, 0
      %p610 = por %p608, %p609
      %s612 = sadd.s32 %s611, 1
      %p615 = scmp.eq.s32.totalorder %s52, 1
      %p616 = scmp.ne.s32.totalorder %s611, %s613
      %p617 = scmp.eq.s32.totalorder %s52, 0
      %p618 = por %p616, %p617
      %p619 = scmp.ne.s32.totalorder %s611, %s613
      %p620 = scmp.eq.s32.totalorder %s57, 1
      %p621 = por %p619, %p620
      %p622 = scmp.ne.s32.totalorder %s613, %s614
      %p623 = scmp.eq.s32.totalorder %s57, 0
      %p624 = por %p622, %p623
      %p625 = scmp.ne.s32.totalorder %s613, %s614
      %p626 = scmp.eq.s32.totalorder %s58, 1
      %p627 = por %p625, %p626
      %p629 = scmp.ne.s32.totalorder %s614, %s628
      %p630 = scmp.eq.s32.totalorder %s58, 0
      %p631 = por %p629, %p630
      %s632 = ssub.s32 %s52, %s59
      %p633 = scmp.eq.s32.totalorder %s632, 0
      %s635 = sadd.s32 %s634, 1
      %s636 = scalar_select %p633, %s634, %s635
      %p639 = pneg %p633
      %p640 = scmp.eq.s32.totalorder %s52, 1
      %p641 = por %p639, %p640
      %p642 = scmp.ne.s32.totalorder %s634, %s637
      %p643 = scmp.eq.s32.totalorder %s52, 0
      %p644 = por %p642, %p643
      %p645 = scmp.ne.s32.totalorder %s634, %s637
      %p646 = scmp.eq.s32.totalorder %s57, 1
      %p647 = por %p645, %p646
      %p648 = scmp.ne.s32.totalorder %s637, %s638
      %p649 = scmp.eq.s32.totalorder %s57, 0
      %p650 = por %p648, %p649
      %p651 = scmp.ne.s32.totalorder %s637, %s638
      %p652 = scmp.eq.s32.totalorder %s58, 1
      %p653 = por %p651, %p652
      %p655 = scmp.ne.s32.totalorder %s638, %s654
      %p656 = scmp.eq.s32.totalorder %s58, 0
      %p657 = por %p655, %p656
      %p658 = scmp.le.s32.totalorder 1, %s52
      %p659 = scmp.lt.s32.totalorder %s52, 3
      %p660 = pnand %p658, %p659
      %p661 = pneg %p660
      // Predicated region
      $region9: #{_lambda_.1} parent=5 // pred_check
        _
      $region10: #{_lambda_.1} parent=5 // pred_check_branch
        %663 = sbr.rel (%p660) target = $region12
      $region11: #{_lambda_.1} parent=5 // pred_region
        %s664 = ssub.s32 %s52, 1
        // Predicated region
        $region13: #{_lambda_.1} parent=11 // pred_check
          %p665 = pneg %p99
        $region14: #{_lambda_.1} parent=11 // pred_check_branch
          %667 = sbr.rel (%p665) target = $region16
        $region15: #{_lambda_.1} parent=11 // pred_region
          %s669 = ssub.s32 32, 32
          %670 = vsyncadd [#allocation6], %s669
          %s672 = sshll.u32 [#allocation5], 4
          %s673 = int_to_ptr.vmem [resolvable:$true] %s672
          %675 = dma.hbm_to_vmem [thread:$0]  %s1, 32, %s673, [#allocation6]
        $region16: #{_lambda_.1} parent=11 // pred_fallthru
          _
        // Predicated region
        $region17: #{_lambda_.1} parent=11 // pred_check
          %p676 = pneg %p120
        $region18: #{_lambda_.1} parent=11 // pred_check_branch
          %678 = sbr.rel (%p676) target = $region20
        $region19: #{_lambda_.1} parent=11 // pred_region
          %s680 = ssub.s32 32, 32
          %681 = vsyncadd [#allocation6], %s680
          %s683 = sshll.u32 [#allocation7], 4
          %s684 = int_to_ptr.vmem [resolvable:$true] %s683
          %686 = dma.hbm_to_vmem [thread:$0]  %s2, 32, %s684, [#allocation6]
        $region20: #{_lambda_.1} parent=11 // pred_fallthru
          _
        // Predicated region
        $region21: #{_lambda_.1} parent=11 // pred_check
          %p687 = pneg %p141
        $region22: #{_lambda_.1} parent=11 // pred_check_branch
          %689 = sbr.rel (%p687) target = $region24
        $region23: #{_lambda_.1} parent=11 // pred_region
          %s691 = ssub.s32 256, 256
          %692 = vsyncadd [#allocation9], %s691
          %s693 = sshll.u32 [#allocation8], 4
          %s694 = int_to_ptr.vmem [resolvable:$true] %s693
          %699 = dma.hbm_to_vmem [thread:$0]  %s3, 256, %s694, [#allocation9], 128, 128, 8
        $region24: #{_lambda_.1} parent=11 // pred_fallthru
          _
        // Predicated region
        $region25: #{_lambda_.1} parent=11 // pred_check
          %p700 = pneg %p162
        $region26: #{_lambda_.1} parent=11 // pred_check_branch
          %702 = sbr.rel (%p700) target = $region28
        $region27: #{_lambda_.1} parent=11 // pred_region
          %s704 = ssub.s32 256, 256
          %705 = vsyncadd [#allocation9], %s704
          %s706 = sshll.u32 [#allocation10], 4
          %s707 = int_to_ptr.vmem [resolvable:$true] %s706
          %712 = dma.hbm_to_vmem [thread:$0]  %s4, 256, %s707, [#allocation9], 128, 128, 8
        $region28: #{_lambda_.1} parent=11 // pred_fallthru
          _
        // Predicated region
        $region29: #{_lambda_.1} parent=11 // pred_check
          %p713 = pneg %p183
        $region30: #{_lambda_.1} parent=11 // pred_check_branch
          %715 = sbr.rel (%p713) target = $region32
        $region31: #{_lambda_.1} parent=11 // pred_region
          %s717 = ssub.s32 128, 128
          %718 = vsyncadd [#allocation12], %s717
          %s720 = sshll.u32 [#allocation11], 4
          %s721 = int_to_ptr.vmem [resolvable:$true] %s720
          %723 = dma.hbm_to_vmem [thread:$0]  %s5, 128, %s721, [#allocation12]
        $region32: #{_lambda_.1} parent=11 // pred_fallthru
          _
        // Predicated region
        $region33: #{_lambda_.1} parent=11 // pred_check
          %p724 = pneg %p204
        $region34: #{_lambda_.1} parent=11 // pred_check_branch
          %726 = sbr.rel (%p724) target = $region36
        $region35: #{_lambda_.1} parent=11 // pred_region
          %s728 = ssub.s32 64, 64
          %729 = vsyncadd [#allocation12], %s728
          %s731 = sshll.u32 [#allocation13], 4
          %s732 = int_to_ptr.vmem [resolvable:$true] %s731
          %734 = dma.hbm_to_vmem [thread:$0]  %s6, 64, %s732, [#allocation12]
        $region36: #{_lambda_.1} parent=11 // pred_fallthru
          _
        // Predicated region
        $region37: #{_lambda_.1} parent=11 // pred_check
          %p735 = pneg %p225
        $region38: #{_lambda_.1} parent=11 // pred_check_branch
          %737 = sbr.rel (%p735) target = $region40
        $region39: #{_lambda_.1} parent=11 // pred_region
          %s739 = ssub.s32 4096, 4096
          %740 = vsyncadd [#allocation15], %s739
          %s741 = sshll.u32 [#allocation14], 4
          %s742 = int_to_ptr.vmem [resolvable:$true] %s741
          %747 = dma.hbm_to_vmem [thread:$0]  %s7, 4096, %s742, [#allocation15], 128, 128, 8
        $region40: #{_lambda_.1} parent=11 // pred_fallthru
          _
        // Predicated region
        $region41: #{_lambda_.1} parent=11 // pred_check
          %p748 = pneg %p246
        $region42: #{_lambda_.1} parent=11 // pred_check_branch
          %750 = sbr.rel (%p748) target = $region44
        $region43: #{_lambda_.1} parent=11 // pred_region
          %s752 = ssub.s32 16, 16
          %753 = vsyncadd [#allocation15], %s752
          %s755 = sshll.u32 [#allocation16], 4
          %s756 = int_to_ptr.vmem [resolvable:$true] %s755
          %758 = dma.hbm_to_vmem [thread:$0]  %s8, 16, %s756, [#allocation15]
        $region44: #{_lambda_.1} parent=11 // pred_fallthru
          _
        // Predicated region
        $region45: #{_lambda_.1} parent=11 // pred_check
          %p759 = pneg %p267
        $region46: #{_lambda_.1} parent=11 // pred_check_branch
          %761 = sbr.rel (%p759) target = $region48
        $region47: #{_lambda_.1} parent=11 // pred_region
          %s763 = ssub.s32 16, 16
          %764 = vsyncadd [#allocation18], %s763
          %s766 = sshll.u32 [#allocation17], 4
          %s767 = int_to_ptr.vmem [resolvable:$true] %s766
          %769 = dma.hbm_to_vmem [thread:$0]  %s9, 16, %s767, [#allocation18]
        $region48: #{_lambda_.1} parent=11 // pred_fallthru
          _
        // Predicated region
        $region49: #{_lambda_.1} parent=11 // pred_check
          %p770 = pneg %p288
        $region50: #{_lambda_.1} parent=11 // pred_check_branch
          %772 = sbr.rel (%p770) target = $region52
        $region51: #{_lambda_.1} parent=11 // pred_region
          %s774 = ssub.s32 256, 256
          %775 = vsyncadd [#allocation18], %s774
          %s776 = sshll.u32 [#allocation19], 4
          %s777 = int_to_ptr.vmem [resolvable:$true] %s776
          %782 = dma.hbm_to_vmem [thread:$0]  %s10, 256, %s777, [#allocation18], 128, 128, 8
        $region52: #{_lambda_.1} parent=11 // pred_fallthru
          _
        // Predicated region
        $region53: #{_lambda_.1} parent=11 // pred_check
          %p783 = pneg %p309
        $region54: #{_lambda_.1} parent=11 // pred_check_branch
          %785 = sbr.rel (%p783) target = $region56
        $region55: #{_lambda_.1} parent=11 // pred_region
          %s787 = ssub.s32 256, 256
          %788 = vsyncadd [#allocation21], %s787
          %s789 = sshll.u32 [#allocation20], 4
          %s790 = int_to_ptr.vmem [resolvable:$true] %s789
          %795 = dma.hbm_to_vmem [thread:$0]  %s11, 256, %s790, [#allocation21], 128, 128, 8
        $region56: #{_lambda_.1} parent=11 // pred_fallthru
          _
        // Predicated region
        $region57: #{_lambda_.1} parent=11 // pred_check
          %p796 = pneg %p330
        $region58: #{_lambda_.1} parent=11 // pred_check_branch
          %798 = sbr.rel (%p796) target = $region60
        $region59: #{_lambda_.1} parent=11 // pred_region
          %s800 = ssub.s32 128, 128
          %801 = vsyncadd [#allocation21], %s800
          %s803 = sshll.u32 [#allocation22], 4
          %s804 = int_to_ptr.vmem [resolvable:$true] %s803
          %806 = dma.hbm_to_vmem [thread:$0]  %s12, 128, %s804, [#allocation21]
        $region60: #{_lambda_.1} parent=11 // pred_fallthru
          _
        // Predicated region
        $region61: #{_lambda_.1} parent=11 // pred_check
          %p807 = pneg %p351
        $region62: #{_lambda_.1} parent=11 // pred_check_branch
          %809 = sbr.rel (%p807) target = $region64
        $region63: #{_lambda_.1} parent=11 // pred_region
          %s811 = ssub.s32 64, 64
          %812 = vsyncadd [#allocation24], %s811
          %s814 = sshll.u32 [#allocation23], 4
          %s815 = int_to_ptr.vmem [resolvable:$true] %s814
          %817 = dma.hbm_to_vmem [thread:$0]  %s13, 64, %s815, [#allocation24]
        $region64: #{_lambda_.1} parent=11 // pred_fallthru
          _
        // Predicated region
        $region65: #{_lambda_.1} parent=11 // pred_check
          %p818 = pneg %p372
        $region66: #{_lambda_.1} parent=11 // pred_check_branch
          %820 = sbr.rel (%p818) target = $region68
        $region67: #{_lambda_.1} parent=11 // pred_region
          %s822 = ssub.s32 256, 256
          %823 = vsyncadd [#allocation24], %s822
          %s824 = sshll.u32 [#allocation25], 4
          %s825 = int_to_ptr.vmem [resolvable:$true] %s824
          %830 = dma.hbm_to_vmem [thread:$0]  %s14, 256, %s825, [#allocation24], 128, 128, 8
        $region68: #{_lambda_.1} parent=11 // pred_fallthru
          _
        // Predicated region
        $region69: #{_lambda_.1} parent=11 // pred_check
          %p831 = pneg %p393
        $region70: #{_lambda_.1} parent=11 // pred_check_branch
          %833 = sbr.rel (%p831) target = $region72
        $region71: #{_lambda_.1} parent=11 // pred_region
          %s835 = ssub.s32 4096, 4096
          %836 = vsyncadd [#allocation27], %s835
          %s837 = sshll.u32 [#allocation26], 4
          %s838 = int_to_ptr.vmem [resolvable:$true] %s837
          %843 = dma.hbm_to_vmem [thread:$0]  %s15, 4096, %s838, [#allocation27], 128, 128, 8
        $region72: #{_lambda_.1} parent=11 // pred_fallthru
          _
        // Predicated region
        $region73: #{_lambda_.1} parent=11 // pred_check
          %p844 = pneg %p414
        $region74: #{_lambda_.1} parent=11 // pred_check_branch
          %846 = sbr.rel (%p844) target = $region76
        $region75: #{_lambda_.1} parent=11 // pred_region
          %s848 = ssub.s32 16, 16
          %849 = vsyncadd [#allocation27], %s848
          %s851 = sshll.u32 [#allocation28], 4
          %s852 = int_to_ptr.vmem [resolvable:$true] %s851
          %854 = dma.hbm_to_vmem [thread:$0]  %s16, 16, %s852, [#allocation27]
        $region76: #{_lambda_.1} parent=11 // pred_fallthru
          _
        // Predicated region
        $region77: #{_lambda_.1} parent=11 // pred_check
          %p855 = pneg %p435
        $region78: #{_lambda_.1} parent=11 // pred_check_branch
          %857 = sbr.rel (%p855) target = $region80
        $region79: #{_lambda_.1} parent=11 // pred_region
          %s859 = ssub.s32 16, 16
          %860 = vsyncadd [#allocation30], %s859
          %s862 = sshll.u32 [#allocation29], 4
          %s863 = int_to_ptr.vmem [resolvable:$true] %s862
          %865 = dma.hbm_to_vmem [thread:$0]  %s17, 16, %s863, [#allocation30]
        $region80: #{_lambda_.1} parent=11 // pred_fallthru
          _
        // Predicated region
        $region81: #{_lambda_.1} parent=11 // pred_check
          %p866 = pneg %p456
        $region82: #{_lambda_.1} parent=11 // pred_check_branch
          %868 = sbr.rel (%p866) target = $region84
        $region83: #{_lambda_.1} parent=11 // pred_region
          %s870 = ssub.s32 256, 256
          %871 = vsyncadd [#allocation30], %s870
          %s872 = sshll.u32 [#allocation31], 4
          %s873 = int_to_ptr.vmem [resolvable:$true] %s872
          %878 = dma.hbm_to_vmem [thread:$0]  %s18, 256, %s873, [#allocation30], 128, 128, 8
        $region84: #{_lambda_.1} parent=11 // pred_fallthru
          _
        // Predicated region
        $region85: #{_lambda_.1} parent=11 // pred_check
          %p879 = pneg %p477
        $region86: #{_lambda_.1} parent=11 // pred_check_branch
          %881 = sbr.rel (%p879) target = $region88
        $region87: #{_lambda_.1} parent=11 // pred_region
          %s883 = ssub.s32 256, 256
          %884 = vsyncadd [#allocation33], %s883
          %s885 = sshll.u32 [#allocation32], 4
          %s886 = int_to_ptr.vmem [resolvable:$true] %s885
          %891 = dma.hbm_to_vmem [thread:$0]  %s19, 256, %s886, [#allocation33], 128, 128, 8
        $region88: #{_lambda_.1} parent=11 // pred_fallthru
          _
        // Predicated region
        $region89: #{_lambda_.1} parent=11 // pred_check
          %p892 = pneg %p498
        $region90: #{_lambda_.1} parent=11 // pred_check_branch
          %894 = sbr.rel (%p892) target = $region92
        $region91: #{_lambda_.1} parent=11 // pred_region
          %s896 = ssub.s32 128, 128
          %897 = vsyncadd [#allocation33], %s896
          %s899 = sshll.u32 [#allocation34], 4
          %s900 = int_to_ptr.vmem [resolvable:$true] %s899
          %902 = dma.hbm_to_vmem [thread:$0]  %s20, 128, %s900, [#allocation33]
        $region92: #{_lambda_.1} parent=11 // pred_fallthru
          _
        // Predicated region
        $region93: #{_lambda_.1} parent=11 // pred_check
          %p903 = pneg %p519
        $region94: #{_lambda_.1} parent=11 // pred_check_branch
          %905 = sbr.rel (%p903) target = $region96
        $region95: #{_lambda_.1} parent=11 // pred_region
          %s907 = ssub.s32 64, 64
          %908 = vsyncadd [#allocation36], %s907
          %s910 = sshll.u32 [#allocation35], 4
          %s911 = int_to_ptr.vmem [resolvable:$true] %s910
          %913 = dma.hbm_to_vmem [thread:$0]  %s21, 64, %s911, [#allocation36]
        $region96: #{_lambda_.1} parent=11 // pred_fallthru
          _
        // Predicated region
        $region97: #{_lambda_.1} parent=11 // pred_check
          %p914 = pneg %p540
        $region98: #{_lambda_.1} parent=11 // pred_check_branch
          %916 = sbr.rel (%p914) target = $region100
        $region99: #{_lambda_.1} parent=11 // pred_region
          %s918 = ssub.s32 2048, 2048
          %919 = vsyncadd [#allocation36], %s918
          %s920 = sshll.u32 [#allocation37], 4
          %s921 = int_to_ptr.vmem [resolvable:$true] %s920
          %926 = dma.hbm_to_vmem [thread:$0]  %s22, 2048, %s921, [#allocation36], 256, 256, 16
        $region100: #{_lambda_.1} parent=11 // pred_fallthru
          _
        // Predicated region
        $region101: #{_lambda_.1} parent=11 // pred_check
          %p927 = pneg %p561
        $region102: #{_lambda_.1} parent=11 // pred_check_branch
          %929 = sbr.rel (%p927) target = $region104
        $region103: #{_lambda_.1} parent=11 // pred_region
          %s931 = ssub.s32 256, 256
          %932 = vsyncadd [#allocation39], %s931
          %s933 = sshll.u32 [#allocation38], 4
          %s934 = int_to_ptr.vmem [resolvable:$true] %s933
          %939 = dma.hbm_to_vmem [thread:$0]  %s23, 256, %s934, [#allocation39], 128, 128, 8
        $region104: #{_lambda_.1} parent=11 // pred_fallthru
          _
        // Predicated region
        $region105: #{_lambda_.1} parent=11 // pred_check
          %p940 = pneg %p582
        $region106: #{_lambda_.1} parent=11 // pred_check_branch
          %942 = sbr.rel (%p940) target = $region108
        $region107: #{_lambda_.1} parent=11 // pred_region
          %s944 = ssub.s32 256, 256
          %945 = vsyncadd [#allocation39], %s944
          %s946 = sshll.u32 [#allocation40], 4
          %s947 = int_to_ptr.vmem [resolvable:$true] %s946
          %952 = dma.hbm_to_vmem [thread:$0]  %s24, 256, %s947, [#allocation39], 128, 128, 8
        $region108: #{_lambda_.1} parent=11 // pred_fallthru
          _
        // Predicated region
        $region109: #{_lambda_.1} parent=11 // pred_check
          %p953 = pneg %p603
        $region110: #{_lambda_.1} parent=11 // pred_check_branch
          %955 = sbr.rel (%p953) target = $region112
        $region111: #{_lambda_.1} parent=11 // pred_region
          %s957 = ssub.s32 128, 128
          %958 = vsyncadd [#allocation42], %s957
          %s960 = sshll.u32 [#allocation41], 4
          %s961 = int_to_ptr.vmem [resolvable:$true] %s960
          %963 = dma.hbm_to_vmem [thread:$0]  %s25, 128, %s961, [#allocation42]
        $region112: #{_lambda_.1} parent=11 // pred_fallthru
          _
        // Predicated region
        $region113: #{_lambda_.1} parent=11 // pred_check
          %p964 = pneg %p624
        $region114: #{_lambda_.1} parent=11 // pred_check_branch
          %966 = sbr.rel (%p964) target = $region116
        $region115: #{_lambda_.1} parent=11 // pred_region
          %s968 = ssub.s32 64, 64
          %969 = vsyncadd [#allocation42], %s968
          %s971 = sshll.u32 [#allocation43], 4
          %s972 = int_to_ptr.vmem [resolvable:$true] %s971
          %974 = dma.hbm_to_vmem [thread:$0]  %s26, 64, %s972, [#allocation42]
        $region116: #{_lambda_.1} parent=11 // pred_fallthru
          _
      $region12: #{_lambda_.1} parent=5 // pred_fallthru
        _
      %p975 = scmp.lt.s32.totalorder %s52, 2
      // Predicated region
      $region117: #{_lambda_.1} parent=5 // pred_check
        %p976 = pneg %p975
      $region118: #{_lambda_.1} parent=5 // pred_check_branch
        %978 = sbr.rel (%p976) target = $region120
      $region119: #{_lambda_.1} parent=5 // pred_region
        // Predicated region
        $region121: #{_lambda_.1} parent=119 // pred_check
          %p979 = pneg %p72
        $region122: #{_lambda_.1} parent=119 // pred_check_branch
          %981 = sbr.rel (%p979) target = $region124
        $region123: #{_lambda_.1} parent=119 // pred_region
          %s982 = sand.u32 %s62, 1
          %s983 = scalar_lea.sflag [#allocation3], %s982
          %s984 = sand.u32 %s62, 1
          %s985 = smul.addr %s984, 8
          %s986 = scalar_lea.vmem [#allocation2], %s985
          %s988 = ssub.s32 128, 128
          %989 = vsyncadd %s983, %s988
          %s990 = smul.addr %s52, 2
          %s991 = smul.addr %s990, 64
          %s992 = scalar_lea.hbm %s0, %s991
          %s994 = sshll.u32 %s986, 4
          %s995 = int_to_ptr.vmem [resolvable:$true] %s994
          %997 = dma.hbm_to_vmem [thread:$0]  %s992, 128, %s995, %s983
        $region124: #{_lambda_.1} parent=119 // pred_fallthru
          _
      $region120: #{_lambda_.1} parent=5 // pred_fallthru
        _
      %p998 = scmp.le.s32.totalorder 1, %s52
      %p999 = scmp.lt.s32.totalorder %s52, 3
      %p1000 = pnand %p998, %p999
      %p1001 = pneg %p1000
      // Predicated region
      $region125: #{_lambda_.1} parent=5 // pred_check
        _
      $region126: #{_lambda_.1} parent=5 // pred_check_branch
        %1003 = sbr.rel (%p1000) target = $region128
      $region127: #{_lambda_.1} parent=5 // pred_region
        %s1004 = ssub.s32 %s52, 1
        %s1005 = sand.u32 %s65, 1
        %s1006 = scalar_lea.sflag [#allocation3], %s1005
        %s1007 = sand.u32 %s65, 1
        %s1008 = smul.addr %s1007, 8
        %s1009 = scalar_lea.vmem [#allocation2], %s1008
        // Predicated region
        $region129: #{_lambda_.1} parent=127 // pred_check
          %p1010 = pneg %p78
        $region130: #{_lambda_.1} parent=127 // pred_check_branch
          %1012 = sbr.rel (%p1010) target = $region132
        $region131: #{_lambda_.1} parent=127 // pred_region
          %1013 = dma.done %s1006, 128
        $region132: #{_lambda_.1} parent=127 // pred_fallthru
          _
        // Predicated region
        $region133: #{_lambda_.1} parent=127 // pred_check
          %p1014 = pneg %p99
        $region134: #{_lambda_.1} parent=127 // pred_check_branch
          %1016 = sbr.rel (%p1014) target = $region136
        $region135: #{_lambda_.1} parent=127 // pred_region
          %1017 = dma.done [#allocation6], 32
        $region136: #{_lambda_.1} parent=127 // pred_fallthru
          _
        // Predicated region
        $region137: #{_lambda_.1} parent=127 // pred_check
          %p1018 = pneg %p120
        $region138: #{_lambda_.1} parent=127 // pred_check_branch
          %1020 = sbr.rel (%p1018) target = $region140
        $region139: #{_lambda_.1} parent=127 // pred_region
          %1021 = dma.done [#allocation6], 32
        $region140: #{_lambda_.1} parent=127 // pred_fallthru
          _
        // Predicated region
        $region141: #{_lambda_.1} parent=127 // pred_check
          %p1022 = pneg %p141
        $region142: #{_lambda_.1} parent=127 // pred_check_branch
          %1024 = sbr.rel (%p1022) target = $region144
        $region143: #{_lambda_.1} parent=127 // pred_region
          %1025 = dma.done [#allocation9], 256
        $region144: #{_lambda_.1} parent=127 // pred_fallthru
          _
        // Predicated region
        $region145: #{_lambda_.1} parent=127 // pred_check
          %p1026 = pneg %p162
        $region146: #{_lambda_.1} parent=127 // pred_check_branch
          %1028 = sbr.rel (%p1026) target = $region148
        $region147: #{_lambda_.1} parent=127 // pred_region
          %1029 = dma.done [#allocation9], 256
        $region148: #{_lambda_.1} parent=127 // pred_fallthru
          _
        // Predicated region
        $region149: #{_lambda_.1} parent=127 // pred_check
          %p1030 = pneg %p183
        $region150: #{_lambda_.1} parent=127 // pred_check_branch
          %1032 = sbr.rel (%p1030) target = $region152
        $region151: #{_lambda_.1} parent=127 // pred_region
          %1033 = dma.done [#allocation12], 128
        $region152: #{_lambda_.1} parent=127 // pred_fallthru
          _
        // Predicated region
        $region153: #{_lambda_.1} parent=127 // pred_check
          %p1034 = pneg %p204
        $region154: #{_lambda_.1} parent=127 // pred_check_branch
          %1036 = sbr.rel (%p1034) target = $region156
        $region155: #{_lambda_.1} parent=127 // pred_region
          %1037 = dma.done [#allocation12], 64
        $region156: #{_lambda_.1} parent=127 // pred_fallthru
          _
        // Predicated region
        $region157: #{_lambda_.1} parent=127 // pred_check
          %p1038 = pneg %p225
        $region158: #{_lambda_.1} parent=127 // pred_check_branch
          %1040 = sbr.rel (%p1038) target = $region160
        $region159: #{_lambda_.1} parent=127 // pred_region
          %1041 = dma.done [#allocation15], 4096
        $region160: #{_lambda_.1} parent=127 // pred_fallthru
          _
        // Predicated region
        $region161: #{_lambda_.1} parent=127 // pred_check
          %p1042 = pneg %p246
        $region162: #{_lambda_.1} parent=127 // pred_check_branch
          %1044 = sbr.rel (%p1042) target = $region164
        $region163: #{_lambda_.1} parent=127 // pred_region
          %1045 = dma.done [#allocation15], 16
        $region164: #{_lambda_.1} parent=127 // pred_fallthru
          _
        // Predicated region
        $region165: #{_lambda_.1} parent=127 // pred_check
          %p1046 = pneg %p267
        $region166: #{_lambda_.1} parent=127 // pred_check_branch
          %1048 = sbr.rel (%p1046) target = $region168
        $region167: #{_lambda_.1} parent=127 // pred_region
          %1049 = dma.done [#allocation18], 16
        $region168: #{_lambda_.1} parent=127 // pred_fallthru
          _
        // Predicated region
        $region169: #{_lambda_.1} parent=127 // pred_check
          %p1050 = pneg %p288
        $region170: #{_lambda_.1} parent=127 // pred_check_branch
          %1052 = sbr.rel (%p1050) target = $region172
        $region171: #{_lambda_.1} parent=127 // pred_region
          %1053 = dma.done [#allocation18], 256
        $region172: #{_lambda_.1} parent=127 // pred_fallthru
          _
        // Predicated region
        $region173: #{_lambda_.1} parent=127 // pred_check
          %p1054 = pneg %p309
        $region174: #{_lambda_.1} parent=127 // pred_check_branch
          %1056 = sbr.rel (%p1054) target = $region176
        $region175: #{_lambda_.1} parent=127 // pred_region
          %1057 = dma.done [#allocation21], 256
        $region176: #{_lambda_.1} parent=127 // pred_fallthru
          _
        // Predicated region
        $region177: #{_lambda_.1} parent=127 // pred_check
          %p1058 = pneg %p330
        $region178: #{_lambda_.1} parent=127 // pred_check_branch
          %1060 = sbr.rel (%p1058) target = $region180
        $region179: #{_lambda_.1} parent=127 // pred_region
          %1061 = dma.done [#allocation21], 128
        $region180: #{_lambda_.1} parent=127 // pred_fallthru
          _
        // Predicated region
        $region181: #{_lambda_.1} parent=127 // pred_check
          %p1062 = pneg %p351
        $region182: #{_lambda_.1} parent=127 // pred_check_branch
          %1064 = sbr.rel (%p1062) target = $region184
        $region183: #{_lambda_.1} parent=127 // pred_region
          %1065 = dma.done [#allocation24], 64
        $region184: #{_lambda_.1} parent=127 // pred_fallthru
          _
        // Predicated region
        $region185: #{_lambda_.1} parent=127 // pred_check
          %p1066 = pneg %p372
        $region186: #{_lambda_.1} parent=127 // pred_check_branch
          %1068 = sbr.rel (%p1066) target = $region188
        $region187: #{_lambda_.1} parent=127 // pred_region
          %1069 = dma.done [#allocation24], 256
        $region188: #{_lambda_.1} parent=127 // pred_fallthru
          _
        // Predicated region
        $region189: #{_lambda_.1} parent=127 // pred_check
          %p1070 = pneg %p393
        $region190: #{_lambda_.1} parent=127 // pred_check_branch
          %1072 = sbr.rel (%p1070) target = $region192
        $region191: #{_lambda_.1} parent=127 // pred_region
          %1073 = dma.done [#allocation27], 4096
        $region192: #{_lambda_.1} parent=127 // pred_fallthru
          _
        // Predicated region
        $region193: #{_lambda_.1} parent=127 // pred_check
          %p1074 = pneg %p414
        $region194: #{_lambda_.1} parent=127 // pred_check_branch
          %1076 = sbr.rel (%p1074) target = $region196
        $region195: #{_lambda_.1} parent=127 // pred_region
          %1077 = dma.done [#allocation27], 16
        $region196: #{_lambda_.1} parent=127 // pred_fallthru
          _
        // Predicated region
        $region197: #{_lambda_.1} parent=127 // pred_check
          %p1078 = pneg %p435
        $region198: #{_lambda_.1} parent=127 // pred_check_branch
          %1080 = sbr.rel (%p1078) target = $region200
        $region199: #{_lambda_.1} parent=127 // pred_region
          %1081 = dma.done [#allocation30], 16
        $region200: #{_lambda_.1} parent=127 // pred_fallthru
          _
        // Predicated region
        $region201: #{_lambda_.1} parent=127 // pred_check
          %p1082 = pneg %p456
        $region202: #{_lambda_.1} parent=127 // pred_check_branch
          %1084 = sbr.rel (%p1082) target = $region204
        $region203: #{_lambda_.1} parent=127 // pred_region
          %1085 = dma.done [#allocation30], 256
        $region204: #{_lambda_.1} parent=127 // pred_fallthru
          _
        // Predicated region
        $region205: #{_lambda_.1} parent=127 // pred_check
          %p1086 = pneg %p477
        $region206: #{_lambda_.1} parent=127 // pred_check_branch
          %1088 = sbr.rel (%p1086) target = $region208
        $region207: #{_lambda_.1} parent=127 // pred_region
          %1089 = dma.done [#allocation33], 256
        $region208: #{_lambda_.1} parent=127 // pred_fallthru
          _
        // Predicated region
        $region209: #{_lambda_.1} parent=127 // pred_check
          %p1090 = pneg %p498
        $region210: #{_lambda_.1} parent=127 // pred_check_branch
          %1092 = sbr.rel (%p1090) target = $region212
        $region211: #{_lambda_.1} parent=127 // pred_region
          %1093 = dma.done [#allocation33], 128
        $region212: #{_lambda_.1} parent=127 // pred_fallthru
          _
        // Predicated region
        $region213: #{_lambda_.1} parent=127 // pred_check
          %p1094 = pneg %p519
        $region214: #{_lambda_.1} parent=127 // pred_check_branch
          %1096 = sbr.rel (%p1094) target = $region216
        $region215: #{_lambda_.1} parent=127 // pred_region
          %1097 = dma.done [#allocation36], 64
        $region216: #{_lambda_.1} parent=127 // pred_fallthru
          _
        // Predicated region
        $region217: #{_lambda_.1} parent=127 // pred_check
          %p1098 = pneg %p540
        $region218: #{_lambda_.1} parent=127 // pred_check_branch
          %1100 = sbr.rel (%p1098) target = $region220
        $region219: #{_lambda_.1} parent=127 // pred_region
          %1101 = dma.done [#allocation36], 2048
        $region220: #{_lambda_.1} parent=127 // pred_fallthru
          _
        // Predicated region
        $region221: #{_lambda_.1} parent=127 // pred_check
          %p1102 = pneg %p561
        $region222: #{_lambda_.1} parent=127 // pred_check_branch
          %1104 = sbr.rel (%p1102) target = $region224
        $region223: #{_lambda_.1} parent=127 // pred_region
          %1105 = dma.done [#allocation39], 256
        $region224: #{_lambda_.1} parent=127 // pred_fallthru
          _
        // Predicated region
        $region225: #{_lambda_.1} parent=127 // pred_check
          %p1106 = pneg %p582
        $region226: #{_lambda_.1} parent=127 // pred_check_branch
          %1108 = sbr.rel (%p1106) target = $region228
        $region227: #{_lambda_.1} parent=127 // pred_region
          %1109 = dma.done [#allocation39], 256
        $region228: #{_lambda_.1} parent=127 // pred_fallthru
          _
        // Predicated region
        $region229: #{_lambda_.1} parent=127 // pred_check
          %p1110 = pneg %p603
        $region230: #{_lambda_.1} parent=127 // pred_check_branch
          %1112 = sbr.rel (%p1110) target = $region232
        $region231: #{_lambda_.1} parent=127 // pred_region
          %1113 = dma.done [#allocation42], 128
        $region232: #{_lambda_.1} parent=127 // pred_fallthru
          _
        // Predicated region
        $region233: #{_lambda_.1} parent=127 // pred_check
          %p1114 = pneg %p624
        $region234: #{_lambda_.1} parent=127 // pred_check_branch
          %1116 = sbr.rel (%p1114) target = $region236
        $region235: #{_lambda_.1} parent=127 // pred_region
          %1117 = dma.done [#allocation42], 64
        $region236: #{_lambda_.1} parent=127 // pred_fallthru
          _
        %s1118 = sand.u32 %s65, 1
        %s1119 = scalar_lea.sflag [#allocation3], %s1118
        %s1120 = sand.u32 %s65, 1
        %s1121 = smul.addr %s1120, 8
        %s1122 = scalar_lea.vmem [#allocation2], %s1121
        %p1123 = pneg %p78
        %p1124 = pneg %p75
        %p1125 = pneg %p99
        %p1126 = pneg %p96
        %p1127 = pneg %p120
        %p1128 = pneg %p117
        %p1129 = pneg %p141
        %p1130 = pneg %p138
        %p1131 = pneg %p162
        %p1132 = pneg %p159
        %p1133 = pneg %p183
        %p1134 = pneg %p180
        %p1135 = pneg %p204
        %p1136 = pneg %p201
        %p1137 = pneg %p225
        %p1138 = pneg %p222
        %p1139 = pneg %p246
        %p1140 = pneg %p243
        %p1141 = pneg %p267
        %p1142 = pneg %p264
        %p1143 = pneg %p288
        %p1144 = pneg %p285
        %p1145 = pneg %p309
        %p1146 = pneg %p306
        %p1147 = pneg %p330
        %p1148 = pneg %p327
        %p1149 = pneg %p351
        %p1150 = pneg %p348
        %p1151 = pneg %p372
        %p1152 = pneg %p369
        %p1153 = pneg %p393
        %p1154 = pneg %p390
        %p1155 = pneg %p414
        %p1156 = pneg %p411
        %p1157 = pneg %p435
        %p1158 = pneg %p432
        %p1159 = pneg %p456
        %p1160 = pneg %p453
        %p1161 = pneg %p477
        %p1162 = pneg %p474
        %p1163 = pneg %p498
        %p1164 = pneg %p495
        %p1165 = pneg %p519
        %p1166 = pneg %p516
        %p1167 = pneg %p540
        %p1168 = pneg %p537
        %p1169 = pneg %p561
        %p1170 = pneg %p558
        %p1171 = pneg %p582
        %p1172 = pneg %p579
        %p1173 = pneg %p603
        %p1174 = pneg %p600
        %p1175 = pneg %p624
        %p1176 = pneg %p621
        %p1177 = pneg %p650
        %p1178 = pneg %p647
        %s1179 = sand.u32 %s637, 1
        %s1180 = scalar_lea.sflag [#allocation4], %s1179
        %s1181 = sand.u32 %s637, 1
        %s1182 = smul.addr %s1181, 8
        %s1183 = scalar_lea.vmem [#allocation44], %s1182
        %v1184 = vld [vmem:[%s1009] sm:$0xff]
        %v1185 = vld [vmem:[#allocation5] sm:$0x3]
        %v1186 = vld [vmem:[#allocation7] sm:$0x3]
        %v1188 = vcombine.high %v1184, %v1184
        %1190 = vrot.lane.b32.xlu0 %v1184, 17
        %v1191 = vpop.permute.xlu0 %1190
        %1192 = vrot.lane.b32.xlu0 %v1188, 17
        %v1193 = vpop.permute.xlu0 %1192
        %v1194 = vlaneseq
        %v1195 = vand.u32 %v1194, 127
        %vm1196 = vcmp.lt.s32.totalorder %v1195, 17
        %v1197 = vsel %vm1196, %v1191, %v1193
        %v1198 = vsel %vm1196, %v1193, %v1191
        %vm1199 = vcmp.ge.s32.totalorder %v1185, 1
        %vm1200 = vcmp.ge.s32.totalorder %v1186, 1
        %vm1201 = vmand %vm1199, %vm1200
        %v1202 = vsel %vm1201, 1, 0
        %v1203 = vlaneseq
        %v1204 = vshrl.u32 %v1203, 7
        %v1205 = vsub.s32 0, %v1204
        %v1206 = vrot.slane %v1202, %v1205
        %v1207 = vlaneseq
        %v1208 = vshrl.u32 %v1207, 7
        %v1209 = vsub.s32 1, %v1208
        %v1210 = vrot.slane %v1202, %v1209
        %vm1211 = vcmp.eq.s32.totalorder %v1206, 1
        %vm1212 = vcmp.eq.s32.totalorder %v1210, 1
        %v1213 = vsel %vm1211, %v1198, 0.0
        %v1214 = vsel %vm1212, %v1197, 0.0
        %1215 = vrot.lane.b32.xlu0 %v1184, 16
        %v1216 = vpop.permute.xlu0 %1215
        %1217 = vrot.lane.b32.xlu0 %v1188, 16
        %v1218 = vpop.permute.xlu0 %1217
        %vm1219 = vcmp.lt.s32.totalorder %v1195, 16
        %v1220 = vsel %vm1219, %v1216, %v1218
        %v1221 = vsel %vm1219, %v1218, %v1216
        %v1222 = vsel %vm1199, 1, 0
        %v1223 = vlaneseq
        %v1224 = vshrl.u32 %v1223, 7
        %v1225 = vsub.s32 0, %v1224
        %v1226 = vrot.slane %v1222, %v1225
        %v1227 = vlaneseq
        %v1228 = vshrl.u32 %v1227, 7
        %v1229 = vsub.s32 1, %v1228
        %v1230 = vrot.slane %v1222, %v1229
        %vm1231 = vcmp.eq.s32.totalorder %v1226, 1
        %vm1232 = vcmp.eq.s32.totalorder %v1230, 1
        %v1233 = vsel %vm1231, %v1221, 0.0
        %v1234 = vsel %vm1232, %v1220, 0.0
        %1235 = vrot.lane.b32.xlu0 %v1184, 15
        %v1236 = vpop.permute.xlu0 %1235
        %1237 = vrot.lane.b32.xlu0 %v1188, 15
        %v1238 = vpop.permute.xlu0 %1237
        %vm1239 = vcmp.lt.s32.totalorder %v1195, 15
        %v1240 = vsel %vm1239, %v1236, %v1238
        %v1241 = vsel %vm1239, %v1238, %v1236
        %vm1242 = vcmp.lt.s32.totalorder %v1186, 15
        %vm1243 = vmand %vm1199, %vm1242
        %v1244 = vsel %vm1243, 1, 0
        %v1245 = vlaneseq
        %v1246 = vshrl.u32 %v1245, 7
        %v1247 = vsub.s32 0, %v1246
        %v1248 = vrot.slane %v1244, %v1247
        %v1249 = vlaneseq
        %v1250 = vshrl.u32 %v1249, 7
        %v1251 = vsub.s32 1, %v1250
        %v1252 = vrot.slane %v1244, %v1251
        %vm1253 = vcmp.eq.s32.totalorder %v1248, 1
        %vm1254 = vcmp.eq.s32.totalorder %v1252, 1
        %v1255 = vsel %vm1253, %v1241, 0.0
        %v1256 = vsel %vm1254, %v1240, 0.0
        %1257 = vrot.lane.b32.xlu0 %v1184, 1
        %v1258 = vpop.permute.xlu0 %1257
        %1259 = vrot.lane.b32.xlu0 %v1188, 1
        %v1260 = vpop.permute.xlu0 %1259
        %vm1261 = vcmp.lt.s32.totalorder %v1195, 1
        %v1262 = vsel %vm1261, %v1258, %v1260
        %v1263 = vsel %vm1261, %v1260, %v1258
        %v1264 = vsel %vm1200, 1, 0
        %v1265 = vlaneseq
        %v1266 = vshrl.u32 %v1265, 7
        %v1267 = vsub.s32 0, %v1266
        %v1268 = vrot.slane %v1264, %v1267
        %v1269 = vlaneseq
        %v1270 = vshrl.u32 %v1269, 7
        %v1271 = vsub.s32 1, %v1270
        %v1272 = vrot.slane %v1264, %v1271
        %vm1273 = vcmp.eq.s32.totalorder %v1268, 1
        %vm1274 = vcmp.eq.s32.totalorder %v1272, 1
        %v1275 = vsel %vm1273, %v1263, 0.0
        %v1276 = vsel %vm1274, %v1262, 0.0
        %1277 = vrot.lane.b32.xlu0 %v1184, 127
        %v1278 = vpop.permute.xlu0 %1277
        %1279 = vrot.lane.b32.xlu0 %v1188, 127
        %v1280 = vpop.permute.xlu0 %1279
        %vm1281 = vcmp.lt.s32.totalorder %v1195, 127
        %v1282 = vsel %vm1281, %v1278, %v1280
        %v1283 = vsel %vm1281, %v1280, %v1278
        %v1284 = vsel %vm1242, 1, 0
        %v1285 = vlaneseq
        %v1286 = vshrl.u32 %v1285, 7
        %v1287 = vsub.s32 0, %v1286
        %v1288 = vrot.slane %v1284, %v1287
        %v1289 = vlaneseq
        %v1290 = vshrl.u32 %v1289, 7
        %v1291 = vsub.s32 1, %v1290
        %v1292 = vrot.slane %v1284, %v1291
        %vm1293 = vcmp.eq.s32.totalorder %v1288, 1
        %vm1294 = vcmp.eq.s32.totalorder %v1292, 1
        %v1295 = vsel %vm1293, %v1282, 0.0
        %v1296 = vsel %vm1294, %v1283, 0.0
        %1297 = vrot.lane.b32.xlu0 %v1184, 113
        %v1298 = vpop.permute.xlu0 %1297
        %1299 = vrot.lane.b32.xlu0 %v1188, 113
        %v1300 = vpop.permute.xlu0 %1299
        %vm1301 = vcmp.lt.s32.totalorder %v1195, 113
        %v1302 = vsel %vm1301, %v1298, %v1300
        %v1303 = vsel %vm1301, %v1300, %v1298
        %vm1304 = vcmp.lt.s32.totalorder %v1185, 15
        %vm1305 = vmand %vm1304, %vm1200
        %v1306 = vsel %vm1305, 1, 0
        %v1307 = vlaneseq
        %v1308 = vshrl.u32 %v1307, 7
        %v1309 = vsub.s32 0, %v1308
        %v1310 = vrot.slane %v1306, %v1309
        %v1311 = vlaneseq
        %v1312 = vshrl.u32 %v1311, 7
        %v1313 = vsub.s32 1, %v1312
        %v1314 = vrot.slane %v1306, %v1313
        %vm1315 = vcmp.eq.s32.totalorder %v1310, 1
        %vm1316 = vcmp.eq.s32.totalorder %v1314, 1
        %v1317 = vsel %vm1315, %v1302, 0.0
        %v1318 = vsel %vm1316, %v1303, 0.0
        %1319 = vrot.lane.b32.xlu0 %v1184, 112
        %v1320 = vpop.permute.xlu0 %1319
        %1321 = vrot.lane.b32.xlu0 %v1188, 112
        %v1322 = vpop.permute.xlu0 %1321
        %vm1323 = vcmp.lt.s32.totalorder %v1195, 112
        %v1324 = vsel %vm1323, %v1320, %v1322
        %v1325 = vsel %vm1323, %v1322, %v1320
        %v1326 = vsel %vm1304, 1, 0
        %v1327 = vlaneseq
        %v1328 = vshrl.u32 %v1327, 7
        %v1329 = vsub.s32 0, %v1328
        %v1330 = vrot.slane %v1326, %v1329
        %v1331 = vlaneseq
        %v1332 = vshrl.u32 %v1331, 7
        %v1333 = vsub.s32 1, %v1332
        %v1334 = vrot.slane %v1326, %v1333
        %vm1335 = vcmp.eq.s32.totalorder %v1330, 1
        %vm1336 = vcmp.eq.s32.totalorder %v1334, 1
        %v1337 = vsel %vm1335, %v1324, 0.0
        %v1338 = vsel %vm1336, %v1325, 0.0
        %1339 = vrot.lane.b32.xlu0 %v1184, 111
        %v1340 = vpop.permute.xlu0 %1339
        %1341 = vrot.lane.b32.xlu0 %v1188, 111
        %v1342 = vpop.permute.xlu0 %1341
        %vm1343 = vcmp.lt.s32.totalorder %v1195, 111
        %v1344 = vsel %vm1343, %v1340, %v1342
        %v1345 = vsel %vm1343, %v1342, %v1340
        %vm1346 = vmand %vm1304, %vm1242
        %v1347 = vsel %vm1346, 1, 0
        %v1348 = vlaneseq
        %v1349 = vshrl.u32 %v1348, 7
        %v1350 = vsub.s32 0, %v1349
        %v1351 = vrot.slane %v1347, %v1350
        %v1352 = vlaneseq
        %v1353 = vshrl.u32 %v1352, 7
        %v1354 = vsub.s32 1, %v1353
        %v1355 = vrot.slane %v1347, %v1354
        %vm1356 = vcmp.eq.s32.totalorder %v1351, 1
        %vm1357 = vcmp.eq.s32.totalorder %v1355, 1
        %v1358 = vsel %vm1356, %v1344, 0.0
        %v1359 = vsel %vm1357, %v1345, 0.0
        %v1362 = vrot.slane %v1233, 4
        %v1363 = vrot.slane %v1234, 4
        %v1368 = vrot.slane %v1275, 4
        %v1369 = vrot.slane %v1276, 4
        %v1374 = vrot.slane %v1295, 4
        %v1375 = vrot.slane %v1296, 4
        %v1380 = vrot.slane %v1337, 4
        %v1381 = vrot.slane %v1338, 4
        %vm1384 = vcmask 1043456
        %v1385 = vsel %vm1384, %v1213, %v1362
        %v1386 = vsel %vm1384, %v1214, %v1363
        %v1387 = vsel %vm1384, %v1255, %v1368
        %v1388 = vsel %vm1384, %v1256, %v1369
        %v1389 = vsel %vm1384, %v1184, %v1374
        %v1390 = vsel %vm1384, %v1188, %v1375
        %v1391 = vsel %vm1384, %v1317, %v1380
        %v1392 = vsel %vm1384, %v1318, %v1381
        %v1393 = vld [vmem:[#allocation8] sm:$0xff]
        %v1394 = vld [vmem:[#allocation8 + $0x8] sm:$0xff]
        %v1395 = vld [vmem:[#allocation10] sm:$0xff]
        %v1396 = vld [vmem:[#allocation10 + $0x8] sm:$0xff]
        %1398 = vset.pattern.permute.xlu0 0
        %1399 = vperm.xlu0 %1398, %v1395
        %v1400 = vpop.permute.xlu0 %1399
        %1403 = vset.pattern.permute.xlu0 0
        %1404 = vperm.xlu0 %1403, %v1396
        %v1405 = vpop.permute.xlu0 %1404
        %vm1407 = vcmask 293888
        %v1409 = vsel %vm1407, %v1393, 0
        %v1412 = vsel %vm1407, %v1394, 0
        %v1415 = vsel %vm1384, %v1358, 0
        %v1418 = vsel %vm1384, %v1359, 0
        %1420 = vmatprep.subr.mxu0 %v1386
        %1421 = vmatpush1.msra.mxu0 %v1385
        %1422 = vmatprep.subr.mxu0 %v1388
        %1423 = vmatpush1.msra.mxu0 %v1387
        %1424 = vmatprep.subr.mxu0 %v1390
        %1425 = vmatpush1.msra.mxu0 %v1389
        %1426 = vmatprep.subr.mxu0 %v1392
        %1427 = vmatpush1.msra.mxu0 %v1391
        %1428 = vmatprep.subr.mxu0 %v1418
        %1429 = vmatpush1.msra.mxu0 %v1415
        %1430 = vmatprep.subr.mxu0 0.0
        %1431 = vmatpush1.msra.mxu0 0.0
        %1432 = vmatprep.subr.mxu0 0.0
        %1433 = vmatpush1.msra.mxu0 0.0
        %1434 = vmatprep.subr.mxu0 0.0
        %1435 = vmatpush1.msra.mxu0 0.0
        %1436 = vmatprep.subr.mxu0 0.0
        %1437 = vmatpush1.msra.mxu0 0.0
        %1438 = vmatprep.subr.mxu0 0.0
        %1439 = vmatpush1.msra.mxu0 0.0
        %1440 = vmatprep.subr.mxu0 0.0
        %1441 = vmatpush1.msra.mxu0 0.0
        %1442 = vmatprep.subr.mxu0 0.0
        %1443 = vmatpush1.msra.mxu0 0.0
        %1444 = vmatprep.subr.mxu0 0.0
        %1445 = vmatpush1.msra.mxu0 0.0
        %1446 = vmatprep.subr.mxu0 0.0
        %1447 = vmatpush1.msra.mxu0 0.0
        %1448 = vmatprep.subr.mxu0 0.0
        %1449 = vmatpush1.msra.mxu0 0.0
        %1450 = vmatprep.subr.mxu0 0.0
        %1451 = vmatpush1.msra.mxu0 0.0
        %1452 = vmatprep.subr.mxu0 0.0
        %1453 = vmatpush1.msra.mxu0 0.0
        %1454 = vmatprep.subr.mxu0 0.0
        %1455 = vmatpush1.msra.mxu0 0.0
        %1456 = vmatprep.subr.mxu0 0.0
        %1457 = vmatpush1.msra.mxu0 0.0
        %1458 = vmatprep.subr.mxu0 0.0
        %1459 = vmatpush1.msra.mxu0 0.0
        %1460 = vmatprep.subr.mxu0 0.0
        %1461 = vmatpush1.msra.mxu0 0.0
        %1462 = vmatprep.subr.mxu0 0.0
        %1463 = vmatpush1.msra.mxu0 0.0
        %1464 = vmatprep.subr.mxu0 0.0
        %1465 = vmatpush1.msra.mxu0 0.0
        %1466 = vmatprep.subr.mxu0 0.0
        %1467 = vmatpush1.msra.mxu0 0.0
        %1468 = vmatprep.subr.mxu0 0.0
        %1469 = vmatpush1.msra.mxu0 0.0
        %1470 = vmatprep.subr.mxu0 0.0
        %1471 = vmatpush1.msra.mxu0 0.0
        %1472 = vmatprep.subr.mxu0 0.0
        %1473 = vmatpush1.msra.mxu0 0.0
        %1474 = vmatprep.subr.mxu0 0.0
        %1475 = vmatpush1.msra.mxu0 0.0
        %1476 = vmatprep.subr.mxu0 0.0
        %1477 = vmatpush1.msra.mxu0 0.0
        %1478 = vmatprep.subr.mxu0 0.0
        %1479 = vmatpush1.msra.mxu0 0.0
        %1480 = vmatprep.subr.mxu0 0.0
        %1481 = vmatpush1.msra.mxu0 0.0
        %1482 = vmatprep.subr.mxu0 0.0
        %1483 = vmatpush1.msra.mxu0 0.0
        %1484 = vmatprep.mubr.f32.mxu0 0.0
        %1485 = vmatmul.mubr.f32.gmra.mrb[0].mxu0 %v1409
        %v1486 = vpop.f32.mrb[0].mxu0
        %v1487 = vadd.f32 %v1400, %v1486
        %v1488 = vpop.f32.mrb[0].mxu0
        %v1489 = vadd.f32 %v1400, %v1488
        %1490 = vmatprep.mubr.f32.mxu0 0.0
        %1491 = vmatmul.mubr.f32.gmra.mrb[0].mxu0 %v1412
        %v1492 = vpop.f32.mrb[0].mxu0
        %v1493 = vadd.f32 %v1405, %v1492
        %v1494 = vpop.f32.mrb[0].mxu0
        %v1495 = vadd.f32 %v1405, %v1494
        %1496 = vdwg.mxu0
        %v1497 = vmax.f32 %v1487, 0.0
        %v1498 = vmax.f32 %v1489, 0.0
        %v1499 = vmax.f32 %v1493, 0.0
        %v1500 = vmax.f32 %v1495, 0.0
        %1501 = vrot.lane.b32.xlu0 %v1497, 17
        %v1502 = vpop.permute.xlu0 %1501
        %1503 = vrot.lane.b32.xlu0 %v1499, 17
        %v1504 = vpop.permute.xlu0 %1503
        %1505 = vrot.lane.b32.xlu0 %v1498, 17
        %v1506 = vpop.permute.xlu0 %1505
        %1507 = vrot.lane.b32.xlu0 %v1500, 17
        %v1508 = vpop.permute.xlu0 %1507
        %v1509 = vsel %vm1196, %v1502, %v1506
        %v1510 = vsel %vm1196, %v1504, %v1508
        %v1511 = vsel %vm1196, %v1506, %v1502
        %v1512 = vsel %vm1196, %v1508, %v1504
        %v1513 = vsel %vm1211, %v1511, 0.0
        %v1514 = vsel %vm1212, %v1509, 0.0
        %v1515 = vsel %vm1211, %v1512, 0.0
        %v1516 = vsel %vm1212, %v1510, 0.0
        %1517 = vrot.lane.b32.xlu0 %v1497, 16
        %v1518 = vpop.permute.xlu0 %1517
        %1519 = vrot.lane.b32.xlu0 %v1499, 16
        %v1520 = vpop.permute.xlu0 %1519
        %1521 = vrot.lane.b32.xlu0 %v1498, 16
        %v1522 = vpop.permute.xlu0 %1521
        %1523 = vrot.lane.b32.xlu0 %v1500, 16
        %v1524 = vpop.permute.xlu0 %1523
        %v1525 = vsel %vm1219, %v1518, %v1522
        %v1526 = vsel %vm1219, %v1520, %v1524
        %v1527 = vsel %vm1219, %v1522, %v1518
        %v1528 = vsel %vm1219, %v1524, %v1520
        %v1529 = vsel %vm1231, %v1527, 0.0
        %v1530 = vsel %vm1232, %v1525, 0.0
        %v1531 = vsel %vm1231, %v1528, 0.0
        %v1532 = vsel %vm1232, %v1526, 0.0
        %1533 = vrot.lane.b32.xlu0 %v1497, 15
        %v1534 = vpop.permute.xlu0 %1533
        %1535 = vrot.lane.b32.xlu0 %v1499, 15
        %v1536 = vpop.permute.xlu0 %1535
        %1537 = vrot.lane.b32.xlu0 %v1498, 15
        %v1538 = vpop.permute.xlu0 %1537
        %1539 = vrot.lane.b32.xlu0 %v1500, 15
        %v1540 = vpop.permute.xlu0 %1539
        %v1541 = vsel %vm1239, %v1534, %v1538
        %v1542 = vsel %vm1239, %v1536, %v1540
        %v1543 = vsel %vm1239, %v1538, %v1534
        %v1544 = vsel %vm1239, %v1540, %v1536
        %v1545 = vsel %vm1253, %v1543, 0.0
        %v1546 = vsel %vm1254, %v1541, 0.0
        %v1547 = vsel %vm1253, %v1544, 0.0
        %v1548 = vsel %vm1254, %v1542, 0.0
        %1549 = vrot.lane.b32.xlu0 %v1497, 1
        %v1550 = vpop.permute.xlu0 %1549
        %1551 = vrot.lane.b32.xlu0 %v1499, 1
        %v1552 = vpop.permute.xlu0 %1551
        %1553 = vrot.lane.b32.xlu0 %v1498, 1
        %v1554 = vpop.permute.xlu0 %1553
        %1555 = vrot.lane.b32.xlu0 %v1500, 1
        %v1556 = vpop.permute.xlu0 %1555
        %v1557 = vsel %vm1261, %v1550, %v1554
        %v1558 = vsel %vm1261, %v1552, %v1556
        %v1559 = vsel %vm1261, %v1554, %v1550
        %v1560 = vsel %vm1261, %v1556, %v1552
        %v1561 = vsel %vm1273, %v1559, 0.0
        %v1562 = vsel %vm1274, %v1557, 0.0
        %v1563 = vsel %vm1273, %v1560, 0.0
        %v1564 = vsel %vm1274, %v1558, 0.0
        %1565 = vrot.lane.b32.xlu0 %v1497, 127
        %v1566 = vpop.permute.xlu0 %1565
        %1567 = vrot.lane.b32.xlu0 %v1499, 127
        %v1568 = vpop.permute.xlu0 %1567
        %1569 = vrot.lane.b32.xlu0 %v1498, 127
        %v1570 = vpop.permute.xlu0 %1569
        %1571 = vrot.lane.b32.xlu0 %v1500, 127
        %v1572 = vpop.permute.xlu0 %1571
        %v1573 = vsel %vm1281, %v1566, %v1570
        %v1574 = vsel %vm1281, %v1568, %v1572
        %v1575 = vsel %vm1281, %v1570, %v1566
        %v1576 = vsel %vm1281, %v1572, %v1568
        %v1577 = vsel %vm1293, %v1573, 0.0
        %v1578 = vsel %vm1294, %v1575, 0.0
        %v1579 = vsel %vm1293, %v1574, 0.0
        %v1580 = vsel %vm1294, %v1576, 0.0
        %1581 = vrot.lane.b32.xlu0 %v1497, 113
        %v1582 = vpop.permute.xlu0 %1581
        %1583 = vrot.lane.b32.xlu0 %v1499, 113
        %v1584 = vpop.permute.xlu0 %1583
        %1585 = vrot.lane.b32.xlu0 %v1498, 113
        %v1586 = vpop.permute.xlu0 %1585
        %1587 = vrot.lane.b32.xlu0 %v1500, 113
        %v1588 = vpop.permute.xlu0 %1587
        %v1589 = vsel %vm1301, %v1582, %v1586
        %v1590 = vsel %vm1301, %v1584, %v1588
        %v1591 = vsel %vm1301, %v1586, %v1582
        %v1592 = vsel %vm1301, %v1588, %v1584
        %v1593 = vsel %vm1315, %v1589, 0.0
        %v1594 = vsel %vm1316, %v1591, 0.0
        %v1595 = vsel %vm1315, %v1590, 0.0
        %v1596 = vsel %vm1316, %v1592, 0.0
        %1597 = vrot.lane.b32.xlu0 %v1497, 112
        %v1598 = vpop.permute.xlu0 %1597
        %1599 = vrot.lane.b32.xlu0 %v1499, 112
        %v1600 = vpop.permute.xlu0 %1599
        %1601 = vrot.lane.b32.xlu0 %v1498, 112
        %v1602 = vpop.permute.xlu0 %1601
        %1603 = vrot.lane.b32.xlu0 %v1500, 112
        %v1604 = vpop.permute.xlu0 %1603
        %v1605 = vsel %vm1323, %v1598, %v1602
        %v1606 = vsel %vm1323, %v1600, %v1604
        %v1607 = vsel %vm1323, %v1602, %v1598
        %v1608 = vsel %vm1323, %v1604, %v1600
        %v1609 = vsel %vm1335, %v1605, 0.0
        %v1610 = vsel %vm1336, %v1607, 0.0
        %v1611 = vsel %vm1335, %v1606, 0.0
        %v1612 = vsel %vm1336, %v1608, 0.0
        %1613 = vrot.lane.b32.xlu0 %v1497, 111
        %v1614 = vpop.permute.xlu0 %1613
        %1615 = vrot.lane.b32.xlu0 %v1499, 111
        %v1616 = vpop.permute.xlu0 %1615
        %1617 = vrot.lane.b32.xlu0 %v1498, 111
        %v1618 = vpop.permute.xlu0 %1617
        %1619 = vrot.lane.b32.xlu0 %v1500, 111
        %v1620 = vpop.permute.xlu0 %1619
        %v1621 = vsel %vm1343, %v1614, %v1618
        %v1622 = vsel %vm1343, %v1616, %v1620
        %v1623 = vsel %vm1343, %v1618, %v1614
        %v1624 = vsel %vm1343, %v1620, %v1616
        %v1625 = vsel %vm1356, %v1621, 0.0
        %v1626 = vsel %vm1357, %v1623, 0.0
        %v1627 = vsel %vm1356, %v1622, 0.0
        %v1628 = vsel %vm1357, %v1624, 0.0
        %v1629 = vld [vmem:[#allocation11] sm:$0xff]
        %v1630 = vld [vmem:[#allocation13] sm:$0xf]
        %1632 = vset.pattern.permute.xlu0 0
        %1633 = vperm.xlu0 %1632, %v1630
        %v1634 = vpop.permute.xlu0 %1633
        %v1637 = vcombine.high %v1629, %v1629
        %vm1638 = vcmask 130048
        %v1639 = vsel %vm1638, %v1637, 0
        %1641 = vmatprep.subr.mxu0 %v1514
        %1642 = vmatpush1.msra.mxu0 %v1513
        %1643 = vmatprep.subr.mxu0 %v1516
        %1644 = vmatpush1.msra.mxu0 %v1515
        %1645 = vmatprep.subr.mxu0 %v1530
        %1646 = vmatpush1.msra.mxu0 %v1529
        %1647 = vmatprep.subr.mxu0 %v1532
        %1648 = vmatpush1.msra.mxu0 %v1531
        %1649 = vmatprep.subr.mxu0 %v1546
        %1650 = vmatpush1.msra.mxu0 %v1545
        %1651 = vmatprep.subr.mxu0 %v1548
        %1652 = vmatpush1.msra.mxu0 %v1547
        %1653 = vmatprep.subr.mxu0 %v1562
        %1654 = vmatpush1.msra.mxu0 %v1561
        %1655 = vmatprep.subr.mxu0 %v1564
        %1656 = vmatpush1.msra.mxu0 %v1563
        %1657 = vmatprep.subr.mxu0 %v1498
        %1658 = vmatpush1.msra.mxu0 %v1497
        %1659 = vmatprep.subr.mxu0 %v1500
        %1660 = vmatpush1.msra.mxu0 %v1499
        %1661 = vmatprep.subr.mxu0 %v1578
        %1662 = vmatpush1.msra.mxu0 %v1577
        %1663 = vmatprep.subr.mxu0 %v1580
        %1664 = vmatpush1.msra.mxu0 %v1579
        %1665 = vmatprep.subr.mxu0 %v1594
        %1666 = vmatpush1.msra.mxu0 %v1593
        %1667 = vmatprep.subr.mxu0 %v1596
        %1668 = vmatpush1.msra.mxu0 %v1595
        %1669 = vmatprep.subr.mxu0 %v1610
        %1670 = vmatpush1.msra.mxu0 %v1609
        %1671 = vmatprep.subr.mxu0 %v1612
        %1672 = vmatpush1.msra.mxu0 %v1611
        %1673 = vmatprep.subr.mxu0 %v1626
        %1674 = vmatpush1.msra.mxu0 %v1625
        %1675 = vmatprep.subr.mxu0 %v1628
        %1676 = vmatpush1.msra.mxu0 %v1627
        %1677 = vmatprep.subr.mxu0 0.0
        %1678 = vmatpush1.msra.mxu0 0.0
        %1679 = vmatprep.subr.mxu0 0.0
        %1680 = vmatpush1.msra.mxu0 0.0
        %1681 = vmatprep.subr.mxu0 0.0
        %1682 = vmatpush1.msra.mxu0 0.0
        %1683 = vmatprep.subr.mxu0 0.0
        %1684 = vmatpush1.msra.mxu0 0.0
        %1685 = vmatprep.subr.mxu0 0.0
        %1686 = vmatpush1.msra.mxu0 0.0
        %1687 = vmatprep.subr.mxu0 0.0
        %1688 = vmatpush1.msra.mxu0 0.0
        %1689 = vmatprep.subr.mxu0 0.0
        %1690 = vmatpush1.msra.mxu0 0.0
        %1691 = vmatprep.subr.mxu0 0.0
        %1692 = vmatpush1.msra.mxu0 0.0
        %1693 = vmatprep.subr.mxu0 0.0
        %1694 = vmatpush1.msra.mxu0 0.0
        %1695 = vmatprep.subr.mxu0 0.0
        %1696 = vmatpush1.msra.mxu0 0.0
        %1697 = vmatprep.subr.mxu0 0.0
        %1698 = vmatpush1.msra.mxu0 0.0
        %1699 = vmatprep.subr.mxu0 0.0
        %1700 = vmatpush1.msra.mxu0 0.0
        %1701 = vmatprep.subr.mxu0 0.0
        %1702 = vmatpush1.msra.mxu0 0.0
        %1703 = vmatprep.subr.mxu0 0.0
        %1704 = vmatpush1.msra.mxu0 0.0
        %1705 = vmatprep.mubr.f32.mxu0 %v1639
        %1706 = vmatmul.mubr.f32.gmra.mrb[0].mxu0 %v1629
        %v1707 = vpop.f32.mrb[0].mxu0
        %v1708 = vadd.f32 %v1634, %v1707
        %v1709 = vpop.f32.mrb[0].mxu0
        %v1710 = vadd.f32 %v1634, %v1709
        %1711 = vdwg.mxu0
        %v1712 = vmax.f32 %v1708, 0.0
        %v1713 = vmax.f32 %v1710, 0.0
        %v1714 = vld [vmem:[#allocation14] sm:$0xff]
        %v1715 = vld [vmem:[#allocation14 + $0x8] sm:$0xff]
        %v1716 = vld [vmem:[#allocation14 + $0x10] sm:$0xff]
        %v1717 = vld [vmem:[#allocation14 + $0x18] sm:$0xff]
        %v1718 = vld [vmem:[#allocation14 + $0x20] sm:$0xff]
        %v1719 = vld [vmem:[#allocation14 + $0x28] sm:$0xff]
        %v1720 = vld [vmem:[#allocation14 + $0x30] sm:$0xff]
        %v1721 = vld [vmem:[#allocation14 + $0x38] sm:$0xff]
        %v1722 = vld [vmem:[#allocation14 + $0x40] sm:$0xff]
        %v1723 = vld [vmem:[#allocation14 + $0x48] sm:$0xff]
        %v1724 = vld [vmem:[#allocation14 + $0x50] sm:$0xff]
        %v1725 = vld [vmem:[#allocation14 + $0x58] sm:$0xff]
        %v1726 = vld [vmem:[#allocation14 + $0x60] sm:$0xff]
        %v1727 = vld [vmem:[#allocation14 + $0x68] sm:$0xff]
        %v1728 = vld [vmem:[#allocation14 + $0x70] sm:$0xff]
        %v1729 = vld [vmem:[#allocation14 + $0x78] sm:$0xff]
        %v1730 = vld [vmem:[#allocation14 + $0x80] sm:$0xff]
        %v1731 = vld [vmem:[#allocation14 + $0x88] sm:$0xff]
        %v1732 = vld [vmem:[#allocation14 + $0x90] sm:$0xff]
        %v1733 = vld [vmem:[#allocation14 + $0x98] sm:$0xff]
        %v1734 = vld [vmem:[#allocation14 + $0xa0] sm:$0xff]
        %v1735 = vld [vmem:[#allocation14 + $0xa8] sm:$0xff]
        %v1736 = vld [vmem:[#allocation14 + $0xb0] sm:$0xff]
        %v1737 = vld [vmem:[#allocation14 + $0xb8] sm:$0xff]
        %v1738 = vld [vmem:[#allocation14 + $0xc0] sm:$0xff]
        %v1739 = vld [vmem:[#allocation14 + $0xc8] sm:$0xff]
        %v1740 = vld [vmem:[#allocation14 + $0xd0] sm:$0xff]
        %v1741 = vld [vmem:[#allocation14 + $0xd8] sm:$0xff]
        %v1742 = vld [vmem:[#allocation14 + $0xe0] sm:$0xff]
        %v1743 = vld [vmem:[#allocation14 + $0xe8] sm:$0xff]
        %v1744 = vld [vmem:[#allocation14 + $0xf0] sm:$0xff]
        %v1745 = vld [vmem:[#allocation14 + $0xf8] sm:$0xff]
        %1746 = vmatprep.subr.mxu0 0.0
        %1747 = vmatpush1.msra.mxu0 %v1714
        %1748 = vmatprep.subr.mxu0 0.0
        %1749 = vmatpush1.msra.mxu0 %v1715
        %1750 = vmatprep.subr.mxu0 0.0
        %1751 = vmatpush1.msra.mxu0 %v1716
        %1752 = vmatprep.subr.mxu0 0.0
        %1753 = vmatpush1.msra.mxu0 %v1717
        %1754 = vmatprep.subr.mxu0 0.0
        %1755 = vmatpush1.msra.mxu0 %v1718
        %1756 = vmatprep.subr.mxu0 0.0
        %1757 = vmatpush1.msra.mxu0 %v1719
        %1758 = vmatprep.subr.mxu0 0.0
        %1759 = vmatpush1.msra.mxu0 %v1720
        %1760 = vmatprep.subr.mxu0 0.0
        %1761 = vmatpush1.msra.mxu0 %v1721
        %1762 = vmatprep.subr.mxu0 0.0
        %1763 = vmatpush1.msra.mxu0 %v1722
        %1764 = vmatprep.subr.mxu0 0.0
        %1765 = vmatpush1.msra.mxu0 %v1723
        %1766 = vmatprep.subr.mxu0 0.0
        %1767 = vmatpush1.msra.mxu0 %v1724
        %1768 = vmatprep.subr.mxu0 0.0
        %1769 = vmatpush1.msra.mxu0 %v1725
        %1770 = vmatprep.subr.mxu0 0.0
        %1771 = vmatpush1.msra.mxu0 %v1726
        %1772 = vmatprep.subr.mxu0 0.0
        %1773 = vmatpush1.msra.mxu0 %v1727
        %1774 = vmatprep.subr.mxu0 0.0
        %1775 = vmatpush1.msra.mxu0 %v1728
        %1776 = vmatprep.subr.mxu0 0.0
        %1777 = vmatpush1.msra.mxu0 %v1729
        %1778 = vmatprep.subr.mxu0 0.0
        %1779 = vmatpush1.msra.mxu0 %v1730
        %1780 = vmatprep.subr.mxu0 0.0
        %1781 = vmatpush1.msra.mxu0 %v1731
        %1782 = vmatprep.subr.mxu0 0.0
        %1783 = vmatpush1.msra.mxu0 %v1732
        %1784 = vmatprep.subr.mxu0 0.0
        %1785 = vmatpush1.msra.mxu0 %v1733
        %1786 = vmatprep.subr.mxu0 0.0
        %1787 = vmatpush1.msra.mxu0 %v1734
        %1788 = vmatprep.subr.mxu0 0.0
        %1789 = vmatpush1.msra.mxu0 %v1735
        %1790 = vmatprep.subr.mxu0 0.0
        %1791 = vmatpush1.msra.mxu0 %v1736
        %1792 = vmatprep.subr.mxu0 0.0
        %1793 = vmatpush1.msra.mxu0 %v1737
        %1794 = vmatprep.subr.mxu0 0.0
        %1795 = vmatpush1.msra.mxu0 %v1738
        %1796 = vmatprep.subr.mxu0 0.0
        %1797 = vmatpush1.msra.mxu0 %v1739
        %1798 = vmatprep.subr.mxu0 0.0
        %1799 = vmatpush1.msra.mxu0 %v1740
        %1800 = vmatprep.subr.mxu0 0.0
        %1801 = vmatpush1.msra.mxu0 %v1741
        %1802 = vmatprep.subr.mxu0 0.0
        %1803 = vmatpush1.msra.mxu0 %v1742
        %1804 = vmatprep.subr.mxu0 0.0
        %1805 = vmatpush1.msra.mxu0 %v1743
        %1806 = vmatprep.subr.mxu0 0.0
        %1807 = vmatpush1.msra.mxu0 %v1744
        %1808 = vmatprep.subr.mxu0 0.0
        %1809 = vmatpush1.msra.mxu0 %v1745
        %1810 = vmatprep.mubr.f32.mxu0 %v1713
        %1811 = vmatmul.mubr.f32.gmra.mrb[0].mxu0 %v1712
        %v1812 = vpop.f32.mrb[0].mxu0
        %v1813 = vadd.f32 0.0, %v1812
        %v1814 = vpop.f32.mrb[0].mxu0
        %1815 = vdwg.mxu0
        %v1816 = vld [vmem:[#allocation16] sm:$0x1]
        %v1817 = vld [vmem:[#allocation17] sm:$0x1]
        %1818 = vmatprep.subr.mxu0 0.0
        %1819 = vmatpush1.msra.mxu0 %v1714
        %1820 = vmatprep.subr.mxu0 0.0
        %1821 = vmatpush1.msra.mxu0 %v1715
        %1822 = vmatprep.subr.mxu0 0.0
        %1823 = vmatpush1.msra.mxu0 %v1716
        %1824 = vmatprep.subr.mxu0 0.0
        %1825 = vmatpush1.msra.mxu0 %v1717
        %1826 = vmatprep.subr.mxu0 0.0
        %1827 = vmatpush1.msra.mxu0 %v1718
        %1828 = vmatprep.subr.mxu0 0.0
        %1829 = vmatpush1.msra.mxu0 %v1719
        %1830 = vmatprep.subr.mxu0 0.0
        %1831 = vmatpush1.msra.mxu0 %v1720
        %1832 = vmatprep.subr.mxu0 0.0
        %1833 = vmatpush1.msra.mxu0 %v1721
        %1834 = vmatprep.subr.mxu0 0.0
        %1835 = vmatpush1.msra.mxu0 %v1722
        %1836 = vmatprep.subr.mxu0 0.0
        %1837 = vmatpush1.msra.mxu0 %v1723
        %1838 = vmatprep.subr.mxu0 0.0
        %1839 = vmatpush1.msra.mxu0 %v1724
        %1840 = vmatprep.subr.mxu0 0.0
        %1841 = vmatpush1.msra.mxu0 %v1725
        %1842 = vmatprep.subr.mxu0 0.0
        %1843 = vmatpush1.msra.mxu0 %v1726
        %1844 = vmatprep.subr.mxu0 0.0
        %1845 = vmatpush1.msra.mxu0 %v1727
        %1846 = vmatprep.subr.mxu0 0.0
        %1847 = vmatpush1.msra.mxu0 %v1728
        %1848 = vmatprep.subr.mxu0 0.0
        %1849 = vmatpush1.msra.mxu0 %v1729
        %1850 = vmatprep.subr.mxu0 0.0
        %1851 = vmatpush1.msra.mxu0 %v1730
        %1852 = vmatprep.subr.mxu0 0.0
        %1853 = vmatpush1.msra.mxu0 %v1731
        %1854 = vmatprep.subr.mxu0 0.0
        %1855 = vmatpush1.msra.mxu0 %v1732
        %1856 = vmatprep.subr.mxu0 0.0
        %1857 = vmatpush1.msra.mxu0 %v1733
        %1858 = vmatprep.subr.mxu0 0.0
        %1859 = vmatpush1.msra.mxu0 %v1734
        %1860 = vmatprep.subr.mxu0 0.0
        %1861 = vmatpush1.msra.mxu0 %v1735
        %1862 = vmatprep.subr.mxu0 0.0
        %1863 = vmatpush1.msra.mxu0 %v1736
        %1864 = vmatprep.subr.mxu0 0.0
        %1865 = vmatpush1.msra.mxu0 %v1737
        %1866 = vmatprep.subr.mxu0 0.0
        %1867 = vmatpush1.msra.mxu0 %v1738
        %1868 = vmatprep.subr.mxu0 0.0
        %1869 = vmatpush1.msra.mxu0 %v1739
        %1870 = vmatprep.subr.mxu0 0.0
        %1871 = vmatpush1.msra.mxu0 %v1740
        %1872 = vmatprep.subr.mxu0 0.0
        %1873 = vmatpush1.msra.mxu0 %v1741
        %1874 = vmatprep.subr.mxu0 0.0
        %1875 = vmatpush1.msra.mxu0 %v1742
        %1876 = vmatprep.subr.mxu0 0.0
        %1877 = vmatpush1.msra.mxu0 %v1743
        %1878 = vmatprep.subr.mxu0 0.0
        %1879 = vmatpush1.msra.mxu0 %v1744
        %1880 = vmatprep.subr.mxu0 0.0
        %1881 = vmatpush1.msra.mxu0 %v1745
        %1882 = vmatprep.mubr.f32.mxu0 %v1188
        %1883 = vmatmul.mubr.f32.gmra.mrb[0].mxu0 %v1184
        %v1884 = vpop.f32.mrb[0].mxu0
        %v1885 = vadd.f32 0.0, %v1884
        %v1886 = vpop.f32.mrb[0].mxu0
        %1887 = vdwg.mxu0
        %1889 = vrot.lane.b32.xlu0 %v1813, 117
        %v1890 = vpop.permute.xlu0 %1889
        %1892 = vrot.lane.b32.xlu0 %v1813, 5
        %v1893 = vpop.permute.xlu0 %1892
        %vm1895 = vcmask 39936
        %v1896 = vsel %vm1895, %v1890, %v1893
        %vm1897 = vcmp.ge.s32.totalorder %v1816, 1
        %vm1898 = vcmp.ge.s32.totalorder %v1817, 1
        %vm1899 = vmand %vm1897, %vm1898
        %v1900 = vsel %vm1899, 1, 0
        %v1901 = vlaneseq
        %v1902 = vshrl.u32 %v1901, 7
        %v1903 = vsub.s32 0, %v1902
        %v1904 = vrot.slane %v1900, %v1903
        %vm1905 = vcmp.eq.s32.totalorder %v1904, 1
        %v1906 = vsel %vm1905, %v1896, 0.0
        %1907 = vrot.lane.b32.xlu0 %v1813, 116
        %v1908 = vpop.permute.xlu0 %1907
        %1910 = vrot.lane.b32.xlu0 %v1813, 4
        %v1911 = vpop.permute.xlu0 %1910
        %vm1913 = vcmask 31744
        %v1914 = vsel %vm1913, %v1908, %v1911
        %v1915 = vsel %vm1897, 1, 0
        %v1916 = vlaneseq
        %v1917 = vshrl.u32 %v1916, 7
        %v1918 = vsub.s32 0, %v1917
        %v1919 = vrot.slane %v1915, %v1918
        %vm1920 = vcmp.eq.s32.totalorder %v1919, 1
        %v1921 = vsel %vm1920, %v1914, 0.0
        %1922 = vrot.lane.b32.xlu0 %v1813, 115
        %v1923 = vpop.permute.xlu0 %1922
        %1925 = vrot.lane.b32.xlu0 %v1813, 3
        %v1926 = vpop.permute.xlu0 %1925
        %vm1928 = vcmask 23552
        %v1929 = vsel %vm1928, %v1923, %v1926
        %vm1930 = vcmp.lt.s32.totalorder %v1817, 3
        %vm1931 = vmand %vm1897, %vm1930
        %v1932 = vsel %vm1931, 1, 0
        %v1933 = vlaneseq
        %v1934 = vshrl.u32 %v1933, 7
        %v1935 = vsub.s32 0, %v1934
        %v1936 = vrot.slane %v1932, %v1935
        %vm1937 = vcmp.eq.s32.totalorder %v1936, 1
        %v1938 = vsel %vm1937, %v1929, 0.0
        %1939 = vrot.lane.b32.xlu0 %v1813, 113
        %v1940 = vpop.permute.xlu0 %1939
        %1942 = vrot.lane.b32.xlu0 %v1813, 1
        %v1943 = vpop.permute.xlu0 %1942
        %vm1945 = vcmask 7168
        %v1946 = vsel %vm1945, %v1940, %v1943
        %v1947 = vsel %vm1898, 1, 0
        %v1948 = vlaneseq
        %v1949 = vshrl.u32 %v1948, 7
        %v1950 = vsub.s32 0, %v1949
        %v1951 = vrot.slane %v1947, %v1950
        %vm1952 = vcmp.eq.s32.totalorder %v1951, 1
        %v1953 = vsel %vm1952, %v1946, 0.0
        %1954 = vrot.lane.b32.xlu0 %v1813, 127
        %v1955 = vpop.permute.xlu0 %1954
        %1957 = vrot.lane.b32.xlu0 %v1813, 15
        %v1958 = vpop.permute.xlu0 %1957
        %vm1960 = vcmask 121856
        %v1961 = vsel %vm1960, %v1955, %v1958
        %v1962 = vsel %vm1930, 1, 0
        %v1963 = vlaneseq
        %v1964 = vshrl.u32 %v1963, 7
        %v1965 = vsub.s32 0, %v1964
        %v1966 = vrot.slane %v1962, %v1965
        %vm1967 = vcmp.eq.s32.totalorder %v1966, 1
        %v1968 = vsel %vm1967, %v1961, 0.0
        %1969 = vrot.lane.b32.xlu0 %v1813, 125
        %v1970 = vpop.permute.xlu0 %1969
        %1972 = vrot.lane.b32.xlu0 %v1813, 13
        %v1973 = vpop.permute.xlu0 %1972
        %vm1975 = vcmask 105472
        %v1976 = vsel %vm1975, %v1970, %v1973
        %vm1977 = vcmp.lt.s32.totalorder %v1816, 3
        %vm1978 = vmand %vm1977, %vm1898
        %v1979 = vsel %vm1978, 1, 0
        %v1980 = vlaneseq
        %v1981 = vshrl.u32 %v1980, 7
        %v1982 = vsub.s32 0, %v1981
        %v1983 = vrot.slane %v1979, %v1982
        %vm1984 = vcmp.eq.s32.totalorder %v1983, 1
        %v1985 = vsel %vm1984, %v1976, 0.0
        %1986 = vrot.lane.b32.xlu0 %v1813, 124
        %v1987 = vpop.permute.xlu0 %1986
        %1989 = vrot.lane.b32.xlu0 %v1813, 12
        %v1990 = vpop.permute.xlu0 %1989
        %vm1992 = vcmask 97280
        %v1993 = vsel %vm1992, %v1987, %v1990
        %v1994 = vsel %vm1977, 1, 0
        %v1995 = vlaneseq
        %v1996 = vshrl.u32 %v1995, 7
        %v1997 = vsub.s32 0, %v1996
        %v1998 = vrot.slane %v1994, %v1997
        %vm1999 = vcmp.eq.s32.totalorder %v1998, 1
        %v2000 = vsel %vm1999, %v1993, 0.0
        %2001 = vrot.lane.b32.xlu0 %v1813, 123
        %v2002 = vpop.permute.xlu0 %2001
        %2004 = vrot.lane.b32.xlu0 %v1813, 11
        %v2005 = vpop.permute.xlu0 %2004
        %vm2007 = vcmask 89088
        %v2008 = vsel %vm2007, %v2002, %v2005
        %vm2009 = vmand %vm1977, %vm1930
        %v2010 = vsel %vm2009, 1, 0
        %v2011 = vlaneseq
        %v2012 = vshrl.u32 %v2011, 7
        %v2013 = vsub.s32 0, %v2012
        %v2014 = vrot.slane %v2010, %v2013
        %vm2015 = vcmp.eq.s32.totalorder %v2014, 1
        %v2016 = vsel %vm2015, %v2008, 0.0
        %2018 = vrot.lane.b32.xlu0 %v1885, 117
        %v2019 = vpop.permute.xlu0 %2018
        %2021 = vrot.lane.b32.xlu0 %v1885, 5
        %v2022 = vpop.permute.xlu0 %2021
        %v2024 = vsel %vm1895, %v2019, %v2022
        %v2025 = vsel %vm1905, %v2024, 0.0
        %2026 = vrot.lane.b32.xlu0 %v1885, 116
        %v2027 = vpop.permute.xlu0 %2026
        %2029 = vrot.lane.b32.xlu0 %v1885, 4
        %v2030 = vpop.permute.xlu0 %2029
        %v2032 = vsel %vm1913, %v2027, %v2030
        %v2033 = vsel %vm1920, %v2032, 0.0
        %2034 = vrot.lane.b32.xlu0 %v1885, 115
        %v2035 = vpop.permute.xlu0 %2034
        %2037 = vrot.lane.b32.xlu0 %v1885, 3
        %v2038 = vpop.permute.xlu0 %2037
        %v2040 = vsel %vm1928, %v2035, %v2038
        %v2041 = vsel %vm1937, %v2040, 0.0
        %2042 = vrot.lane.b32.xlu0 %v1885, 113
        %v2043 = vpop.permute.xlu0 %2042
        %2045 = vrot.lane.b32.xlu0 %v1885, 1
        %v2046 = vpop.permute.xlu0 %2045
        %v2048 = vsel %vm1945, %v2043, %v2046
        %v2049 = vsel %vm1952, %v2048, 0.0
        %2050 = vrot.lane.b32.xlu0 %v1885, 127
        %v2051 = vpop.permute.xlu0 %2050
        %2053 = vrot.lane.b32.xlu0 %v1885, 15
        %v2054 = vpop.permute.xlu0 %2053
        %v2056 = vsel %vm1960, %v2051, %v2054
        %v2057 = vsel %vm1967, %v2056, 0.0
        %2058 = vrot.lane.b32.xlu0 %v1885, 125
        %v2059 = vpop.permute.xlu0 %2058
        %2061 = vrot.lane.b32.xlu0 %v1885, 13
        %v2062 = vpop.permute.xlu0 %2061
        %v2064 = vsel %vm1975, %v2059, %v2062
        %v2065 = vsel %vm1984, %v2064, 0.0
        %2066 = vrot.lane.b32.xlu0 %v1885, 124
        %v2067 = vpop.permute.xlu0 %2066
        %2069 = vrot.lane.b32.xlu0 %v1885, 12
        %v2070 = vpop.permute.xlu0 %2069
        %v2072 = vsel %vm1992, %v2067, %v2070
        %v2073 = vsel %vm1999, %v2072, 0.0
        %2074 = vrot.lane.b32.xlu0 %v1885, 123
        %v2075 = vpop.permute.xlu0 %2074
        %2077 = vrot.lane.b32.xlu0 %v1885, 11
        %v2078 = vpop.permute.xlu0 %2077
        %v2080 = vsel %vm2007, %v2075, %v2078
        %v2081 = vsel %vm2015, %v2080, 0.0
        %v2083 = vrot.slane %v1921, 4
        %v2086 = vrot.slane %v1953, 4
        %v2089 = vrot.slane %v1968, 4
        %v2092 = vrot.slane %v2000, 4
        %v2095 = vrot.slane %v2025, 4
        %v2098 = vrot.slane %v2041, 4
        %v2100 = vrot.slane %v1885, 4
        %v2103 = vrot.slane %v2065, 4
        %v2105 = vsel %vm1384, %v1906, %v2083
        %v2106 = vsel %vm1384, %v1938, %v2086
        %v2107 = vsel %vm1384, %v1813, %v2089
        %v2108 = vsel %vm1384, %v1985, %v2092
        %v2109 = vsel %vm1384, %v2016, %v2095
        %v2110 = vsel %vm1384, %v2033, %v2098
        %v2111 = vsel %vm1384, %v2049, %v2100
        %v2112 = vsel %vm1384, %v2057, %v2103
        %v2114 = vrot.slane %v2081, 4
        %v2116 = vsel %vm1384, %v2073, %v2114
        %v2117 = vld [vmem:[#allocation19] sm:$0xff]
        %v2118 = vld [vmem:[#allocation19 + $0x8] sm:$0xff]
        %v2119 = vld [vmem:[#allocation20] sm:$0xff]
        %v2120 = vld [vmem:[#allocation20 + $0x8] sm:$0xff]
        %2122 = vset.pattern.permute.xlu0 0
        %2123 = vperm.xlu0 %2122, %v2119
        %v2124 = vpop.permute.xlu0 %2123
        %2127 = vset.pattern.permute.xlu0 0
        %2128 = vperm.xlu0 %2127, %v2120
        %v2129 = vpop.permute.xlu0 %2128
        %vm2131 = vcmask 588800
        %v2133 = vsel %vm2131, %v2117, 0
        %v2136 = vsel %vm2131, %v2118, 0
        %2138 = vmatprep.subr.mxu0 0.0
        %2139 = vmatpush1.msra.mxu0 %v2105
        %2140 = vmatprep.subr.mxu0 0.0
        %2141 = vmatpush1.msra.mxu0 %v2106
        %2142 = vmatprep.subr.mxu0 0.0
        %2143 = vmatpush1.msra.mxu0 %v2107
        %2144 = vmatprep.subr.mxu0 0.0
        %2145 = vmatpush1.msra.mxu0 %v2108
        %2146 = vmatprep.subr.mxu0 0.0
        %2147 = vmatpush1.msra.mxu0 %v2109
        %2148 = vmatprep.subr.mxu0 0.0
        %2149 = vmatpush1.msra.mxu0 %v2110
        %2150 = vmatprep.subr.mxu0 0.0
        %2151 = vmatpush1.msra.mxu0 %v2111
        %2152 = vmatprep.subr.mxu0 0.0
        %2153 = vmatpush1.msra.mxu0 %v2112
        %2154 = vmatprep.subr.mxu0 0.0
        %2155 = vmatpush1.msra.mxu0 %v2116
        %2156 = vmatprep.subr.mxu0 0.0
        %2157 = vmatpush1.msra.mxu0 0.0
        %2158 = vmatprep.subr.mxu0 0.0
        %2159 = vmatpush1.msra.mxu0 0.0
        %2160 = vmatprep.subr.mxu0 0.0
        %2161 = vmatpush1.msra.mxu0 0.0
        %2162 = vmatprep.subr.mxu0 0.0
        %2163 = vmatpush1.msra.mxu0 0.0
        %2164 = vmatprep.subr.mxu0 0.0
        %2165 = vmatpush1.msra.mxu0 0.0
        %2166 = vmatprep.subr.mxu0 0.0
        %2167 = vmatpush1.msra.mxu0 0.0
        %2168 = vmatprep.subr.mxu0 0.0
        %2169 = vmatpush1.msra.mxu0 0.0
        %2170 = vmatprep.subr.mxu0 0.0
        %2171 = vmatpush1.msra.mxu0 0.0
        %2172 = vmatprep.subr.mxu0 0.0
        %2173 = vmatpush1.msra.mxu0 0.0
        %2174 = vmatprep.subr.mxu0 0.0
        %2175 = vmatpush1.msra.mxu0 0.0
        %2176 = vmatprep.subr.mxu0 0.0
        %2177 = vmatpush1.msra.mxu0 0.0
        %2178 = vmatprep.subr.mxu0 0.0
        %2179 = vmatpush1.msra.mxu0 0.0
        %2180 = vmatprep.subr.mxu0 0.0
        %2181 = vmatpush1.msra.mxu0 0.0
        %2182 = vmatprep.subr.mxu0 0.0
        %2183 = vmatpush1.msra.mxu0 0.0
        %2184 = vmatprep.subr.mxu0 0.0
        %2185 = vmatpush1.msra.mxu0 0.0
        %2186 = vmatprep.subr.mxu0 0.0
        %2187 = vmatpush1.msra.mxu0 0.0
        %2188 = vmatprep.subr.mxu0 0.0
        %2189 = vmatpush1.msra.mxu0 0.0
        %2190 = vmatprep.subr.mxu0 0.0
        %2191 = vmatpush1.msra.mxu0 0.0
        %2192 = vmatprep.subr.mxu0 0.0
        %2193 = vmatpush1.msra.mxu0 0.0
        %2194 = vmatprep.subr.mxu0 0.0
        %2195 = vmatpush1.msra.mxu0 0.0
        %2196 = vmatprep.subr.mxu0 0.0
        %2197 = vmatpush1.msra.mxu0 0.0
        %2198 = vmatprep.subr.mxu0 0.0
        %2199 = vmatpush1.msra.mxu0 0.0
        %2200 = vmatprep.subr.mxu0 0.0
        %2201 = vmatpush1.msra.mxu0 0.0
        %2202 = vmatprep.mubr.f32.mxu0 0.0
        %2203 = vmatmul.mubr.f32.gmra.mrb[0].mxu0 %v2133
        %v2204 = vpop.f32.mrb[0].mxu0
        %v2205 = vadd.f32 %v2124, %v2204
        %v2206 = vpop.f32.mrb[0].mxu0
        %2207 = vmatprep.mubr.f32.mxu0 0.0
        %2208 = vmatmul.mubr.f32.gmra.mrb[0].mxu0 %v2136
        %v2209 = vpop.f32.mrb[0].mxu0
        %v2210 = vadd.f32 %v2129, %v2209
        %v2211 = vpop.f32.mrb[0].mxu0
        %2212 = vdwg.mxu0
        %v2213 = vmax.f32 %v2205, 0.0
        %v2214 = vmax.f32 %v2210, 0.0
        %2217 = vrot.lane.b32.xlu0 %v2213, 117
        %v2218 = vpop.permute.xlu0 %2217
        %2219 = vrot.lane.b32.xlu0 %v2214, 117
        %v2220 = vpop.permute.xlu0 %2219
        %2223 = vrot.lane.b32.xlu0 %v2213, 5
        %v2224 = vpop.permute.xlu0 %2223
        %2225 = vrot.lane.b32.xlu0 %v2214, 5
        %v2226 = vpop.permute.xlu0 %2225
        %v2229 = vsel %vm1895, %v2218, %v2224
        %v2230 = vsel %vm1895, %v2220, %v2226
        %v2231 = vsel %vm1905, %v2229, 0.0
        %v2232 = vsel %vm1905, %v2230, 0.0
        %2233 = vrot.lane.b32.xlu0 %v2213, 116
        %v2234 = vpop.permute.xlu0 %2233
        %2235 = vrot.lane.b32.xlu0 %v2214, 116
        %v2236 = vpop.permute.xlu0 %2235
        %2239 = vrot.lane.b32.xlu0 %v2213, 4
        %v2240 = vpop.permute.xlu0 %2239
        %2241 = vrot.lane.b32.xlu0 %v2214, 4
        %v2242 = vpop.permute.xlu0 %2241
        %v2245 = vsel %vm1913, %v2234, %v2240
        %v2246 = vsel %vm1913, %v2236, %v2242
        %v2247 = vsel %vm1920, %v2245, 0.0
        %v2248 = vsel %vm1920, %v2246, 0.0
        %2249 = vrot.lane.b32.xlu0 %v2213, 115
        %v2250 = vpop.permute.xlu0 %2249
        %2251 = vrot.lane.b32.xlu0 %v2214, 115
        %v2252 = vpop.permute.xlu0 %2251
        %2255 = vrot.lane.b32.xlu0 %v2213, 3
        %v2256 = vpop.permute.xlu0 %2255
        %2257 = vrot.lane.b32.xlu0 %v2214, 3
        %v2258 = vpop.permute.xlu0 %2257
        %v2261 = vsel %vm1928, %v2250, %v2256
        %v2262 = vsel %vm1928, %v2252, %v2258
        %v2263 = vsel %vm1937, %v2261, 0.0
        %v2264 = vsel %vm1937, %v2262, 0.0
        %2265 = vrot.lane.b32.xlu0 %v2213, 113
        %v2266 = vpop.permute.xlu0 %2265
        %2267 = vrot.lane.b32.xlu0 %v2214, 113
        %v2268 = vpop.permute.xlu0 %2267
        %2271 = vrot.lane.b32.xlu0 %v2213, 1
        %v2272 = vpop.permute.xlu0 %2271
        %2273 = vrot.lane.b32.xlu0 %v2214, 1
        %v2274 = vpop.permute.xlu0 %2273
        %v2277 = vsel %vm1945, %v2266, %v2272
        %v2278 = vsel %vm1945, %v2268, %v2274
        %v2279 = vsel %vm1952, %v2277, 0.0
        %v2280 = vsel %vm1952, %v2278, 0.0
        %2281 = vrot.lane.b32.xlu0 %v2213, 127
        %v2282 = vpop.permute.xlu0 %2281
        %2283 = vrot.lane.b32.xlu0 %v2214, 127
        %v2284 = vpop.permute.xlu0 %2283
        %2287 = vrot.lane.b32.xlu0 %v2213, 15
        %v2288 = vpop.permute.xlu0 %2287
        %2289 = vrot.lane.b32.xlu0 %v2214, 15
        %v2290 = vpop.permute.xlu0 %2289
        %v2293 = vsel %vm1960, %v2282, %v2288
        %v2294 = vsel %vm1960, %v2284, %v2290
        %v2295 = vsel %vm1967, %v2293, 0.0
        %v2296 = vsel %vm1967, %v2294, 0.0
        %2297 = vrot.lane.b32.xlu0 %v2213, 125
        %v2298 = vpop.permute.xlu0 %2297
        %2299 = vrot.lane.b32.xlu0 %v2214, 125
        %v2300 = vpop.permute.xlu0 %2299
        %2303 = vrot.lane.b32.xlu0 %v2213, 13
        %v2304 = vpop.permute.xlu0 %2303
        %2305 = vrot.lane.b32.xlu0 %v2214, 13
        %v2306 = vpop.permute.xlu0 %2305
        %v2309 = vsel %vm1975, %v2298, %v2304
        %v2310 = vsel %vm1975, %v2300, %v2306
        %v2311 = vsel %vm1984, %v2309, 0.0
        %v2312 = vsel %vm1984, %v2310, 0.0
        %2313 = vrot.lane.b32.xlu0 %v2213, 124
        %v2314 = vpop.permute.xlu0 %2313
        %2315 = vrot.lane.b32.xlu0 %v2214, 124
        %v2316 = vpop.permute.xlu0 %2315
        %2319 = vrot.lane.b32.xlu0 %v2213, 12
        %v2320 = vpop.permute.xlu0 %2319
        %2321 = vrot.lane.b32.xlu0 %v2214, 12
        %v2322 = vpop.permute.xlu0 %2321
        %v2325 = vsel %vm1992, %v2314, %v2320
        %v2326 = vsel %vm1992, %v2316, %v2322
        %v2327 = vsel %vm1999, %v2325, 0.0
        %v2328 = vsel %vm1999, %v2326, 0.0
        %2329 = vrot.lane.b32.xlu0 %v2213, 123
        %v2330 = vpop.permute.xlu0 %2329
        %2331 = vrot.lane.b32.xlu0 %v2214, 123
        %v2332 = vpop.permute.xlu0 %2331
        %2335 = vrot.lane.b32.xlu0 %v2213, 11
        %v2336 = vpop.permute.xlu0 %2335
        %2337 = vrot.lane.b32.xlu0 %v2214, 11
        %v2338 = vpop.permute.xlu0 %2337
        %v2341 = vsel %vm2007, %v2330, %v2336
        %v2342 = vsel %vm2007, %v2332, %v2338
        %v2343 = vsel %vm2015, %v2341, 0.0
        %v2344 = vsel %vm2015, %v2342, 0.0
        %v2345 = vld [vmem:[#allocation22] sm:$0xff]
        %v2346 = vld [vmem:[#allocation23] sm:$0xf]
        %2348 = vset.pattern.permute.xlu0 0
        %2349 = vperm.xlu0 %2348, %v2346
        %v2350 = vpop.permute.xlu0 %2349
        %v2353 = vcombine.high %v2345, %v2345
        %v2354 = vsel %vm1638, %v2353, 0
        %2356 = vmatprep.subr.mxu0 0.0
        %2357 = vmatpush1.msra.mxu0 %v2231
        %2358 = vmatprep.subr.mxu0 0.0
        %2359 = vmatpush1.msra.mxu0 %v2232
        %2360 = vmatprep.subr.mxu0 0.0
        %2361 = vmatpush1.msra.mxu0 %v2247
        %2362 = vmatprep.subr.mxu0 0.0
        %2363 = vmatpush1.msra.mxu0 %v2248
        %2364 = vmatprep.subr.mxu0 0.0
        %2365 = vmatpush1.msra.mxu0 %v2263
        %2366 = vmatprep.subr.mxu0 0.0
        %2367 = vmatpush1.msra.mxu0 %v2264
        %2368 = vmatprep.subr.mxu0 0.0
        %2369 = vmatpush1.msra.mxu0 %v2279
        %2370 = vmatprep.subr.mxu0 0.0
        %2371 = vmatpush1.msra.mxu0 %v2280
        %2372 = vmatprep.subr.mxu0 0.0
        %2373 = vmatpush1.msra.mxu0 %v2213
        %2374 = vmatprep.subr.mxu0 0.0
        %2375 = vmatpush1.msra.mxu0 %v2214
        %2376 = vmatprep.subr.mxu0 0.0
        %2377 = vmatpush1.msra.mxu0 %v2295
        %2378 = vmatprep.subr.mxu0 0.0
        %2379 = vmatpush1.msra.mxu0 %v2296
        %2380 = vmatprep.subr.mxu0 0.0
        %2381 = vmatpush1.msra.mxu0 %v2311
        %2382 = vmatprep.subr.mxu0 0.0
        %2383 = vmatpush1.msra.mxu0 %v2312
        %2384 = vmatprep.subr.mxu0 0.0
        %2385 = vmatpush1.msra.mxu0 %v2327
        %2386 = vmatprep.subr.mxu0 0.0
        %2387 = vmatpush1.msra.mxu0 %v2328
        %2388 = vmatprep.subr.mxu0 0.0
        %2389 = vmatpush1.msra.mxu0 %v2343
        %2390 = vmatprep.subr.mxu0 0.0
        %2391 = vmatpush1.msra.mxu0 %v2344
        %2392 = vmatprep.subr.mxu0 0.0
        %2393 = vmatpush1.msra.mxu0 0.0
        %2394 = vmatprep.subr.mxu0 0.0
        %2395 = vmatpush1.msra.mxu0 0.0
        %2396 = vmatprep.subr.mxu0 0.0
        %2397 = vmatpush1.msra.mxu0 0.0
        %2398 = vmatprep.subr.mxu0 0.0
        %2399 = vmatpush1.msra.mxu0 0.0
        %2400 = vmatprep.subr.mxu0 0.0
        %2401 = vmatpush1.msra.mxu0 0.0
        %2402 = vmatprep.subr.mxu0 0.0
        %2403 = vmatpush1.msra.mxu0 0.0
        %2404 = vmatprep.subr.mxu0 0.0
        %2405 = vmatpush1.msra.mxu0 0.0
        %2406 = vmatprep.subr.mxu0 0.0
        %2407 = vmatpush1.msra.mxu0 0.0
        %2408 = vmatprep.subr.mxu0 0.0
        %2409 = vmatpush1.msra.mxu0 0.0
        %2410 = vmatprep.subr.mxu0 0.0
        %2411 = vmatpush1.msra.mxu0 0.0
        %2412 = vmatprep.subr.mxu0 0.0
        %2413 = vmatpush1.msra.mxu0 0.0
        %2414 = vmatprep.subr.mxu0 0.0
        %2415 = vmatpush1.msra.mxu0 0.0
        %2416 = vmatprep.subr.mxu0 0.0
        %2417 = vmatpush1.msra.mxu0 0.0
        %2418 = vmatprep.subr.mxu0 0.0
        %2419 = vmatpush1.msra.mxu0 0.0
        %2420 = vmatprep.mubr.f32.mxu0 %v2354
        %2421 = vmatmul.mubr.f32.gmra.mrb[0].mxu0 %v2345
        %v2422 = vpop.f32.mrb[0].mxu0
        %v2423 = vadd.f32 %v2350, %v2422
        %v2424 = vpop.f32.mrb[0].mxu0
        %2425 = vdwg.mxu0
        %v2426 = vmax.f32 %v2423, 0.0
        %v2427 = vld [vmem:[#allocation25] sm:$0xff]
        %v2428 = vld [vmem:[#allocation25 + $0x8] sm:$0xff]
        %v2430 = vsel %vm1638, %v2426, 0
        %2432 = vmatprep.subr.mxu0 0.0
        %2433 = vmatpush1.msra.mxu0 %v2427
        %2434 = vmatprep.subr.mxu0 0.0
        %2435 = vmatpush1.msra.mxu0 %v2428
        %2436 = vmatprep.subr.mxu0 0.0
        %2437 = vmatpush1.msra.mxu0 0.0
        %2438 = vmatprep.subr.mxu0 0.0
        %2439 = vmatpush1.msra.mxu0 0.0
        %2440 = vmatprep.subr.mxu0 0.0
        %2441 = vmatpush1.msra.mxu0 0.0
        %2442 = vmatprep.subr.mxu0 0.0
        %2443 = vmatpush1.msra.mxu0 0.0
        %2444 = vmatprep.subr.mxu0 0.0
        %2445 = vmatpush1.msra.mxu0 0.0
        %2446 = vmatprep.subr.mxu0 0.0
        %2447 = vmatpush1.msra.mxu0 0.0
        %2448 = vmatprep.subr.mxu0 0.0
        %2449 = vmatpush1.msra.mxu0 0.0
        %2450 = vmatprep.subr.mxu0 0.0
        %2451 = vmatpush1.msra.mxu0 0.0
        %2452 = vmatprep.subr.mxu0 0.0
        %2453 = vmatpush1.msra.mxu0 0.0
        %2454 = vmatprep.subr.mxu0 0.0
        %2455 = vmatpush1.msra.mxu0 0.0
        %2456 = vmatprep.subr.mxu0 0.0
        %2457 = vmatpush1.msra.mxu0 0.0
        %2458 = vmatprep.subr.mxu0 0.0
        %2459 = vmatpush1.msra.mxu0 0.0
        %2460 = vmatprep.subr.mxu0 0.0
        %2461 = vmatpush1.msra.mxu0 0.0
        %2462 = vmatprep.subr.mxu0 0.0
        %2463 = vmatpush1.msra.mxu0 0.0
        %2464 = vmatprep.subr.mxu0 0.0
        %2465 = vmatpush1.msra.mxu0 0.0
        %2466 = vmatprep.subr.mxu0 0.0
        %2467 = vmatpush1.msra.mxu0 0.0
        %2468 = vmatprep.subr.mxu0 0.0
        %2469 = vmatpush1.msra.mxu0 0.0
        %2470 = vmatprep.subr.mxu0 0.0
        %2471 = vmatpush1.msra.mxu0 0.0
        %2472 = vmatprep.subr.mxu0 0.0
        %2473 = vmatpush1.msra.mxu0 0.0
        %2474 = vmatprep.subr.mxu0 0.0
        %2475 = vmatpush1.msra.mxu0 0.0
        %2476 = vmatprep.subr.mxu0 0.0
        %2477 = vmatpush1.msra.mxu0 0.0
        %2478 = vmatprep.subr.mxu0 0.0
        %2479 = vmatpush1.msra.mxu0 0.0
        %2480 = vmatprep.subr.mxu0 0.0
        %2481 = vmatpush1.msra.mxu0 0.0
        %2482 = vmatprep.subr.mxu0 0.0
        %2483 = vmatpush1.msra.mxu0 0.0
        %2484 = vmatprep.subr.mxu0 0.0
        %2485 = vmatpush1.msra.mxu0 0.0
        %2486 = vmatprep.subr.mxu0 0.0
        %2487 = vmatpush1.msra.mxu0 0.0
        %2488 = vmatprep.subr.mxu0 0.0
        %2489 = vmatpush1.msra.mxu0 0.0
        %2490 = vmatprep.subr.mxu0 0.0
        %2491 = vmatpush1.msra.mxu0 0.0
        %2492 = vmatprep.subr.mxu0 0.0
        %2493 = vmatpush1.msra.mxu0 0.0
        %2494 = vmatprep.subr.mxu0 0.0
        %2495 = vmatpush1.msra.mxu0 0.0
        %2496 = vmatprep.mubr.f32.mxu0 0.0
        %2497 = vmatmul.mubr.f32.gmra.mrb[0].mxu0 %v2430
        %v2498 = vpop.f32.mrb[0].mxu0
        %v2499 = vadd.f32 0.0, %v2498
        %v2500 = vpop.f32.mrb[0].mxu0
        %2501 = vdwg.mxu0
        %v2502 = vld [vmem:[#allocation28] sm:$0x1]
        %v2503 = vld [vmem:[#allocation29] sm:$0x1]
        %v2504 = vld [vmem:[#allocation26] sm:$0xff]
        %v2505 = vld [vmem:[#allocation26 + $0x8] sm:$0xff]
        %v2506 = vld [vmem:[#allocation26 + $0x10] sm:$0xff]
        %v2507 = vld [vmem:[#allocation26 + $0x18] sm:$0xff]
        %v2508 = vld [vmem:[#allocation26 + $0x20] sm:$0xff]
        %v2509 = vld [vmem:[#allocation26 + $0x28] sm:$0xff]
        %v2510 = vld [vmem:[#allocation26 + $0x30] sm:$0xff]
        %v2511 = vld [vmem:[#allocation26 + $0x38] sm:$0xff]
        %v2512 = vld [vmem:[#allocation26 + $0x40] sm:$0xff]
        %v2513 = vld [vmem:[#allocation26 + $0x48] sm:$0xff]
        %v2514 = vld [vmem:[#allocation26 + $0x50] sm:$0xff]
        %v2515 = vld [vmem:[#allocation26 + $0x58] sm:$0xff]
        %v2516 = vld [vmem:[#allocation26 + $0x60] sm:$0xff]
        %v2517 = vld [vmem:[#allocation26 + $0x68] sm:$0xff]
        %v2518 = vld [vmem:[#allocation26 + $0x70] sm:$0xff]
        %v2519 = vld [vmem:[#allocation26 + $0x78] sm:$0xff]
        %v2520 = vld [vmem:[#allocation26 + $0x80] sm:$0xff]
        %v2521 = vld [vmem:[#allocation26 + $0x88] sm:$0xff]
        %v2522 = vld [vmem:[#allocation26 + $0x90] sm:$0xff]
        %v2523 = vld [vmem:[#allocation26 + $0x98] sm:$0xff]
        %v2524 = vld [vmem:[#allocation26 + $0xa0] sm:$0xff]
        %v2525 = vld [vmem:[#allocation26 + $0xa8] sm:$0xff]
        %v2526 = vld [vmem:[#allocation26 + $0xb0] sm:$0xff]
        %v2527 = vld [vmem:[#allocation26 + $0xb8] sm:$0xff]
        %v2528 = vld [vmem:[#allocation26 + $0xc0] sm:$0xff]
        %v2529 = vld [vmem:[#allocation26 + $0xc8] sm:$0xff]
        %v2530 = vld [vmem:[#allocation26 + $0xd0] sm:$0xff]
        %v2531 = vld [vmem:[#allocation26 + $0xd8] sm:$0xff]
        %v2532 = vld [vmem:[#allocation26 + $0xe0] sm:$0xff]
        %v2533 = vld [vmem:[#allocation26 + $0xe8] sm:$0xff]
        %v2534 = vld [vmem:[#allocation26 + $0xf0] sm:$0xff]
        %v2535 = vld [vmem:[#allocation26 + $0xf8] sm:$0xff]
        %2536 = vmatprep.subr.mxu0 0.0
        %2537 = vmatpush1.msra.mxu0 %v2504
        %2538 = vmatprep.subr.mxu0 0.0
        %2539 = vmatpush1.msra.mxu0 %v2505
        %2540 = vmatprep.subr.mxu0 0.0
        %2541 = vmatpush1.msra.mxu0 %v2506
        %2542 = vmatprep.subr.mxu0 0.0
        %2543 = vmatpush1.msra.mxu0 %v2507
        %2544 = vmatprep.subr.mxu0 0.0
        %2545 = vmatpush1.msra.mxu0 %v2508
        %2546 = vmatprep.subr.mxu0 0.0
        %2547 = vmatpush1.msra.mxu0 %v2509
        %2548 = vmatprep.subr.mxu0 0.0
        %2549 = vmatpush1.msra.mxu0 %v2510
        %2550 = vmatprep.subr.mxu0 0.0
        %2551 = vmatpush1.msra.mxu0 %v2511
        %2552 = vmatprep.subr.mxu0 0.0
        %2553 = vmatpush1.msra.mxu0 %v2512
        %2554 = vmatprep.subr.mxu0 0.0
        %2555 = vmatpush1.msra.mxu0 %v2513
        %2556 = vmatprep.subr.mxu0 0.0
        %2557 = vmatpush1.msra.mxu0 %v2514
        %2558 = vmatprep.subr.mxu0 0.0
        %2559 = vmatpush1.msra.mxu0 %v2515
        %2560 = vmatprep.subr.mxu0 0.0
        %2561 = vmatpush1.msra.mxu0 %v2516
        %2562 = vmatprep.subr.mxu0 0.0
        %2563 = vmatpush1.msra.mxu0 %v2517
        %2564 = vmatprep.subr.mxu0 0.0
        %2565 = vmatpush1.msra.mxu0 %v2518
        %2566 = vmatprep.subr.mxu0 0.0
        %2567 = vmatpush1.msra.mxu0 %v2519
        %2568 = vmatprep.subr.mxu0 0.0
        %2569 = vmatpush1.msra.mxu0 %v2520
        %2570 = vmatprep.subr.mxu0 0.0
        %2571 = vmatpush1.msra.mxu0 %v2521
        %2572 = vmatprep.subr.mxu0 0.0
        %2573 = vmatpush1.msra.mxu0 %v2522
        %2574 = vmatprep.subr.mxu0 0.0
        %2575 = vmatpush1.msra.mxu0 %v2523
        %2576 = vmatprep.subr.mxu0 0.0
        %2577 = vmatpush1.msra.mxu0 %v2524
        %2578 = vmatprep.subr.mxu0 0.0
        %2579 = vmatpush1.msra.mxu0 %v2525
        %2580 = vmatprep.subr.mxu0 0.0
        %2581 = vmatpush1.msra.mxu0 %v2526
        %2582 = vmatprep.subr.mxu0 0.0
        %2583 = vmatpush1.msra.mxu0 %v2527
        %2584 = vmatprep.subr.mxu0 0.0
        %2585 = vmatpush1.msra.mxu0 %v2528
        %2586 = vmatprep.subr.mxu0 0.0
        %2587 = vmatpush1.msra.mxu0 %v2529
        %2588 = vmatprep.subr.mxu0 0.0
        %2589 = vmatpush1.msra.mxu0 %v2530
        %2590 = vmatprep.subr.mxu0 0.0
        %2591 = vmatpush1.msra.mxu0 %v2531
        %2592 = vmatprep.subr.mxu0 0.0
        %2593 = vmatpush1.msra.mxu0 %v2532
        %2594 = vmatprep.subr.mxu0 0.0
        %2595 = vmatpush1.msra.mxu0 %v2533
        %2596 = vmatprep.subr.mxu0 0.0
        %2597 = vmatpush1.msra.mxu0 %v2534
        %2598 = vmatprep.subr.mxu0 0.0
        %2599 = vmatpush1.msra.mxu0 %v2535
        %2600 = vmatprep.mubr.f32.mxu0 %v1188
        %2601 = vmatmul.mubr.f32.gmra.mrb[0].mxu0 %v1184
        %v2602 = vpop.f32.mrb[0].mxu0
        %v2603 = vadd.f32 0.0, %v2602
        %v2604 = vpop.f32.mrb[0].mxu0
        %2605 = vdwg.mxu0
        %2607 = vrot.lane.b32.xlu0 %v2499, 73
        %v2608 = vpop.permute.xlu0 %2607
        %2610 = vrot.lane.b32.xlu0 %v2499, 9
        %v2611 = vpop.permute.xlu0 %2610
        %vm2613 = vcmask 72704
        %v2614 = vsel %vm2613, %v2608, %v2611
        %vm2615 = vcmp.ge.s32.totalorder %v2502, 1
        %vm2616 = vcmp.ge.s32.totalorder %v2503, 1
        %vm2617 = vmand %vm2615, %vm2616
        %v2618 = vsel %vm2617, 1, 0
        %v2619 = vlaneseq
        %v2620 = vshrl.u32 %v2619, 7
        %v2621 = vsub.s32 0, %v2620
        %v2622 = vrot.slane %v2618, %v2621
        %vm2623 = vcmp.eq.s32.totalorder %v2622, 1
        %v2624 = vsel %vm2623, %v2614, 0.0
        %2625 = vrot.lane.b32.xlu0 %v2499, 72
        %v2626 = vpop.permute.xlu0 %2625
        %2628 = vrot.lane.b32.xlu0 %v2499, 8
        %v2629 = vpop.permute.xlu0 %2628
        %vm2631 = vcmask 64512
        %v2632 = vsel %vm2631, %v2626, %v2629
        %v2633 = vsel %vm2615, 1, 0
        %v2634 = vlaneseq
        %v2635 = vshrl.u32 %v2634, 7
        %v2636 = vsub.s32 0, %v2635
        %v2637 = vrot.slane %v2633, %v2636
        %vm2638 = vcmp.eq.s32.totalorder %v2637, 1
        %v2639 = vsel %vm2638, %v2632, 0.0
        %2640 = vrot.lane.b32.xlu0 %v2499, 71
        %v2641 = vpop.permute.xlu0 %2640
        %2643 = vrot.lane.b32.xlu0 %v2499, 7
        %v2644 = vpop.permute.xlu0 %2643
        %vm2646 = vcmask 56320
        %v2647 = vsel %vm2646, %v2641, %v2644
        %vm2648 = vcmp.lt.s32.totalorder %v2503, 7
        %vm2649 = vmand %vm2615, %vm2648
        %v2650 = vsel %vm2649, 1, 0
        %v2651 = vlaneseq
        %v2652 = vshrl.u32 %v2651, 7
        %v2653 = vsub.s32 0, %v2652
        %v2654 = vrot.slane %v2650, %v2653
        %vm2655 = vcmp.eq.s32.totalorder %v2654, 1
        %v2656 = vsel %vm2655, %v2647, 0.0
        %2657 = vrot.lane.b32.xlu0 %v2499, 65
        %v2658 = vpop.permute.xlu0 %2657
        %2660 = vrot.lane.b32.xlu0 %v2499, 1
        %v2661 = vpop.permute.xlu0 %2660
        %v2663 = vsel %vm1945, %v2658, %v2661
        %v2664 = vsel %vm2616, 1, 0
        %v2665 = vlaneseq
        %v2666 = vshrl.u32 %v2665, 7
        %v2667 = vsub.s32 0, %v2666
        %v2668 = vrot.slane %v2664, %v2667
        %vm2669 = vcmp.eq.s32.totalorder %v2668, 1
        %v2670 = vsel %vm2669, %v2663, 0.0
        %2671 = vrot.lane.b32.xlu0 %v2499, 127
        %v2672 = vpop.permute.xlu0 %2671
        %2674 = vrot.lane.b32.xlu0 %v2499, 63
        %v2675 = vpop.permute.xlu0 %2674
        %vm2677 = vcmask 515072
        %v2678 = vsel %vm2677, %v2672, %v2675
        %v2679 = vsel %vm2648, 1, 0
        %v2680 = vlaneseq
        %v2681 = vshrl.u32 %v2680, 7
        %v2682 = vsub.s32 0, %v2681
        %v2683 = vrot.slane %v2679, %v2682
        %vm2684 = vcmp.eq.s32.totalorder %v2683, 1
        %v2685 = vsel %vm2684, %v2678, 0.0
        %2686 = vrot.lane.b32.xlu0 %v2499, 121
        %v2687 = vpop.permute.xlu0 %2686
        %2689 = vrot.lane.b32.xlu0 %v2499, 57
        %v2690 = vpop.permute.xlu0 %2689
        %vm2692 = vcmask 465920
        %v2693 = vsel %vm2692, %v2687, %v2690
        %vm2694 = vcmp.lt.s32.totalorder %v2502, 7
        %vm2695 = vmand %vm2694, %vm2616
        %v2696 = vsel %vm2695, 1, 0
        %v2697 = vlaneseq
        %v2698 = vshrl.u32 %v2697, 7
        %v2699 = vsub.s32 0, %v2698
        %v2700 = vrot.slane %v2696, %v2699
        %vm2701 = vcmp.eq.s32.totalorder %v2700, 1
        %v2702 = vsel %vm2701, %v2693, 0.0
        %2703 = vrot.lane.b32.xlu0 %v2499, 120
        %v2704 = vpop.permute.xlu0 %2703
        %2706 = vrot.lane.b32.xlu0 %v2499, 56
        %v2707 = vpop.permute.xlu0 %2706
        %vm2709 = vcmask 457728
        %v2710 = vsel %vm2709, %v2704, %v2707
        %v2711 = vsel %vm2694, 1, 0
        %v2712 = vlaneseq
        %v2713 = vshrl.u32 %v2712, 7
        %v2714 = vsub.s32 0, %v2713
        %v2715 = vrot.slane %v2711, %v2714
        %vm2716 = vcmp.eq.s32.totalorder %v2715, 1
        %v2717 = vsel %vm2716, %v2710, 0.0
        %2718 = vrot.lane.b32.xlu0 %v2499, 119
        %v2719 = vpop.permute.xlu0 %2718
        %2721 = vrot.lane.b32.xlu0 %v2499, 55
        %v2722 = vpop.permute.xlu0 %2721
        %vm2724 = vcmask 449536
        %v2725 = vsel %vm2724, %v2719, %v2722
        %vm2726 = vmand %vm2694, %vm2648
        %v2727 = vsel %vm2726, 1, 0
        %v2728 = vlaneseq
        %v2729 = vshrl.u32 %v2728, 7
        %v2730 = vsub.s32 0, %v2729
        %v2731 = vrot.slane %v2727, %v2730
        %vm2732 = vcmp.eq.s32.totalorder %v2731, 1
        %v2733 = vsel %vm2732, %v2725, 0.0
        %2735 = vrot.lane.b32.xlu0 %v2603, 73
        %v2736 = vpop.permute.xlu0 %2735
        %2738 = vrot.lane.b32.xlu0 %v2603, 9
        %v2739 = vpop.permute.xlu0 %2738
        %v2741 = vsel %vm2613, %v2736, %v2739
        %v2742 = vsel %vm2623, %v2741, 0.0
        %2743 = vrot.lane.b32.xlu0 %v2603, 72
        %v2744 = vpop.permute.xlu0 %2743
        %2746 = vrot.lane.b32.xlu0 %v2603, 8
        %v2747 = vpop.permute.xlu0 %2746
        %v2749 = vsel %vm2631, %v2744, %v2747
        %v2750 = vsel %vm2638, %v2749, 0.0
        %2751 = vrot.lane.b32.xlu0 %v2603, 71
        %v2752 = vpop.permute.xlu0 %2751
        %2754 = vrot.lane.b32.xlu0 %v2603, 7
        %v2755 = vpop.permute.xlu0 %2754
        %v2757 = vsel %vm2646, %v2752, %v2755
        %v2758 = vsel %vm2655, %v2757, 0.0
        %2759 = vrot.lane.b32.xlu0 %v2603, 65
        %v2760 = vpop.permute.xlu0 %2759
        %2762 = vrot.lane.b32.xlu0 %v2603, 1
        %v2763 = vpop.permute.xlu0 %2762
        %v2765 = vsel %vm1945, %v2760, %v2763
        %v2766 = vsel %vm2669, %v2765, 0.0
        %2767 = vrot.lane.b32.xlu0 %v2603, 127
        %v2768 = vpop.permute.xlu0 %2767
        %2770 = vrot.lane.b32.xlu0 %v2603, 63
        %v2771 = vpop.permute.xlu0 %2770
        %v2773 = vsel %vm2677, %v2768, %v2771
        %v2774 = vsel %vm2684, %v2773, 0.0
        %2775 = vrot.lane.b32.xlu0 %v2603, 121
        %v2776 = vpop.permute.xlu0 %2775
        %2778 = vrot.lane.b32.xlu0 %v2603, 57
        %v2779 = vpop.permute.xlu0 %2778
        %v2781 = vsel %vm2692, %v2776, %v2779
        %v2782 = vsel %vm2701, %v2781, 0.0
        %2783 = vrot.lane.b32.xlu0 %v2603, 120
        %v2784 = vpop.permute.xlu0 %2783
        %2786 = vrot.lane.b32.xlu0 %v2603, 56
        %v2787 = vpop.permute.xlu0 %2786
        %v2789 = vsel %vm2709, %v2784, %v2787
        %v2790 = vsel %vm2716, %v2789, 0.0
        %2791 = vrot.lane.b32.xlu0 %v2603, 119
        %v2792 = vpop.permute.xlu0 %2791
        %2794 = vrot.lane.b32.xlu0 %v2603, 55
        %v2795 = vpop.permute.xlu0 %2794
        %v2797 = vsel %vm2724, %v2792, %v2795
        %v2798 = vsel %vm2732, %v2797, 0.0
        %v2800 = vrot.slane %v2639, 4
        %v2803 = vrot.slane %v2670, 4
        %v2806 = vrot.slane %v2685, 4
        %v2809 = vrot.slane %v2717, 4
        %v2812 = vrot.slane %v2742, 4
        %v2815 = vrot.slane %v2758, 4
        %v2817 = vrot.slane %v2603, 4
        %v2820 = vrot.slane %v2782, 4
        %v2822 = vsel %vm1384, %v2624, %v2800
        %v2823 = vsel %vm1384, %v2656, %v2803
        %v2824 = vsel %vm1384, %v2499, %v2806
        %v2825 = vsel %vm1384, %v2702, %v2809
        %v2826 = vsel %vm1384, %v2733, %v2812
        %v2827 = vsel %vm1384, %v2750, %v2815
        %v2828 = vsel %vm1384, %v2766, %v2817
        %v2829 = vsel %vm1384, %v2774, %v2820
        %v2831 = vrot.slane %v2798, 4
        %v2833 = vsel %vm1384, %v2790, %v2831
        %v2834 = vld [vmem:[#allocation31] sm:$0xff]
        %v2835 = vld [vmem:[#allocation31 + $0x8] sm:$0xff]
        %v2836 = vld [vmem:[#allocation32] sm:$0xff]
        %v2837 = vld [vmem:[#allocation32 + $0x8] sm:$0xff]
        %2839 = vset.pattern.permute.xlu0 0
        %2840 = vperm.xlu0 %2839, %v2836
        %v2841 = vpop.permute.xlu0 %2840
        %2844 = vset.pattern.permute.xlu0 0
        %2845 = vperm.xlu0 %2844, %v2837
        %v2846 = vpop.permute.xlu0 %2845
        %v2849 = vsel %vm2131, %v2834, 0
        %v2852 = vsel %vm2131, %v2835, 0
        %2854 = vmatprep.subr.mxu0 0.0
        %2855 = vmatpush1.msra.mxu0 %v2822
        %2856 = vmatprep.subr.mxu0 0.0
        %2857 = vmatpush1.msra.mxu0 %v2823
        %2858 = vmatprep.subr.mxu0 0.0
        %2859 = vmatpush1.msra.mxu0 %v2824
        %2860 = vmatprep.subr.mxu0 0.0
        %2861 = vmatpush1.msra.mxu0 %v2825
        %2862 = vmatprep.subr.mxu0 0.0
        %2863 = vmatpush1.msra.mxu0 %v2826
        %2864 = vmatprep.subr.mxu0 0.0
        %2865 = vmatpush1.msra.mxu0 %v2827
        %2866 = vmatprep.subr.mxu0 0.0
        %2867 = vmatpush1.msra.mxu0 %v2828
        %2868 = vmatprep.subr.mxu0 0.0
        %2869 = vmatpush1.msra.mxu0 %v2829
        %2870 = vmatprep.subr.mxu0 0.0
        %2871 = vmatpush1.msra.mxu0 %v2833
        %2872 = vmatprep.subr.mxu0 0.0
        %2873 = vmatpush1.msra.mxu0 0.0
        %2874 = vmatprep.subr.mxu0 0.0
        %2875 = vmatpush1.msra.mxu0 0.0
        %2876 = vmatprep.subr.mxu0 0.0
        %2877 = vmatpush1.msra.mxu0 0.0
        %2878 = vmatprep.subr.mxu0 0.0
        %2879 = vmatpush1.msra.mxu0 0.0
        %2880 = vmatprep.subr.mxu0 0.0
        %2881 = vmatpush1.msra.mxu0 0.0
        %2882 = vmatprep.subr.mxu0 0.0
        %2883 = vmatpush1.msra.mxu0 0.0
        %2884 = vmatprep.subr.mxu0 0.0
        %2885 = vmatpush1.msra.mxu0 0.0
        %2886 = vmatprep.subr.mxu0 0.0
        %2887 = vmatpush1.msra.mxu0 0.0
        %2888 = vmatprep.subr.mxu0 0.0
        %2889 = vmatpush1.msra.mxu0 0.0
        %2890 = vmatprep.subr.mxu0 0.0
        %2891 = vmatpush1.msra.mxu0 0.0
        %2892 = vmatprep.subr.mxu0 0.0
        %2893 = vmatpush1.msra.mxu0 0.0
        %2894 = vmatprep.subr.mxu0 0.0
        %2895 = vmatpush1.msra.mxu0 0.0
        %2896 = vmatprep.subr.mxu0 0.0
        %2897 = vmatpush1.msra.mxu0 0.0
        %2898 = vmatprep.subr.mxu0 0.0
        %2899 = vmatpush1.msra.mxu0 0.0
        %2900 = vmatprep.subr.mxu0 0.0
        %2901 = vmatpush1.msra.mxu0 0.0
        %2902 = vmatprep.subr.mxu0 0.0
        %2903 = vmatpush1.msra.mxu0 0.0
        %2904 = vmatprep.subr.mxu0 0.0
        %2905 = vmatpush1.msra.mxu0 0.0
        %2906 = vmatprep.subr.mxu0 0.0
        %2907 = vmatpush1.msra.mxu0 0.0
        %2908 = vmatprep.subr.mxu0 0.0
        %2909 = vmatpush1.msra.mxu0 0.0
        %2910 = vmatprep.subr.mxu0 0.0
        %2911 = vmatpush1.msra.mxu0 0.0
        %2912 = vmatprep.subr.mxu0 0.0
        %2913 = vmatpush1.msra.mxu0 0.0
        %2914 = vmatprep.subr.mxu0 0.0
        %2915 = vmatpush1.msra.mxu0 0.0
        %2916 = vmatprep.subr.mxu0 0.0
        %2917 = vmatpush1.msra.mxu0 0.0
        %2918 = vmatprep.mubr.f32.mxu0 0.0
        %2919 = vmatmul.mubr.f32.gmra.mrb[0].mxu0 %v2849
        %v2920 = vpop.f32.mrb[0].mxu0
        %v2921 = vadd.f32 %v2841, %v2920
        %v2922 = vpop.f32.mrb[0].mxu0
        %2923 = vmatprep.mubr.f32.mxu0 0.0
        %2924 = vmatmul.mubr.f32.gmra.mrb[0].mxu0 %v2852
        %v2925 = vpop.f32.mrb[0].mxu0
        %v2926 = vadd.f32 %v2846, %v2925
        %v2927 = vpop.f32.mrb[0].mxu0
        %2928 = vdwg.mxu0
        %v2929 = vmax.f32 %v2921, 0.0
        %v2930 = vmax.f32 %v2926, 0.0
        %2933 = vrot.lane.b32.xlu0 %v2929, 73
        %v2934 = vpop.permute.xlu0 %2933
        %2935 = vrot.lane.b32.xlu0 %v2930, 73
        %v2936 = vpop.permute.xlu0 %2935
        %2939 = vrot.lane.b32.xlu0 %v2929, 9
        %v2940 = vpop.permute.xlu0 %2939
        %2941 = vrot.lane.b32.xlu0 %v2930, 9
        %v2942 = vpop.permute.xlu0 %2941
        %v2945 = vsel %vm2613, %v2934, %v2940
        %v2946 = vsel %vm2613, %v2936, %v2942
        %v2947 = vsel %vm2623, %v2945, 0.0
        %v2948 = vsel %vm2623, %v2946, 0.0
        %2949 = vrot.lane.b32.xlu0 %v2929, 72
        %v2950 = vpop.permute.xlu0 %2949
        %2951 = vrot.lane.b32.xlu0 %v2930, 72
        %v2952 = vpop.permute.xlu0 %2951
        %2955 = vrot.lane.b32.xlu0 %v2929, 8
        %v2956 = vpop.permute.xlu0 %2955
        %2957 = vrot.lane.b32.xlu0 %v2930, 8
        %v2958 = vpop.permute.xlu0 %2957
        %v2961 = vsel %vm2631, %v2950, %v2956
        %v2962 = vsel %vm2631, %v2952, %v2958
        %v2963 = vsel %vm2638, %v2961, 0.0
        %v2964 = vsel %vm2638, %v2962, 0.0
        %2965 = vrot.lane.b32.xlu0 %v2929, 71
        %v2966 = vpop.permute.xlu0 %2965
        %2967 = vrot.lane.b32.xlu0 %v2930, 71
        %v2968 = vpop.permute.xlu0 %2967
        %2971 = vrot.lane.b32.xlu0 %v2929, 7
        %v2972 = vpop.permute.xlu0 %2971
        %2973 = vrot.lane.b32.xlu0 %v2930, 7
        %v2974 = vpop.permute.xlu0 %2973
        %v2977 = vsel %vm2646, %v2966, %v2972
        %v2978 = vsel %vm2646, %v2968, %v2974
        %v2979 = vsel %vm2655, %v2977, 0.0
        %v2980 = vsel %vm2655, %v2978, 0.0
        %2981 = vrot.lane.b32.xlu0 %v2929, 65
        %v2982 = vpop.permute.xlu0 %2981
        %2983 = vrot.lane.b32.xlu0 %v2930, 65
        %v2984 = vpop.permute.xlu0 %2983
        %2987 = vrot.lane.b32.xlu0 %v2929, 1
        %v2988 = vpop.permute.xlu0 %2987
        %2989 = vrot.lane.b32.xlu0 %v2930, 1
        %v2990 = vpop.permute.xlu0 %2989
        %v2993 = vsel %vm1945, %v2982, %v2988
        %v2994 = vsel %vm1945, %v2984, %v2990
        %v2995 = vsel %vm2669, %v2993, 0.0
        %v2996 = vsel %vm2669, %v2994, 0.0
        %2997 = vrot.lane.b32.xlu0 %v2929, 127
        %v2998 = vpop.permute.xlu0 %2997
        %2999 = vrot.lane.b32.xlu0 %v2930, 127
        %v3000 = vpop.permute.xlu0 %2999
        %3003 = vrot.lane.b32.xlu0 %v2929, 63
        %v3004 = vpop.permute.xlu0 %3003
        %3005 = vrot.lane.b32.xlu0 %v2930, 63
        %v3006 = vpop.permute.xlu0 %3005
        %v3009 = vsel %vm2677, %v2998, %v3004
        %v3010 = vsel %vm2677, %v3000, %v3006
        %v3011 = vsel %vm2684, %v3009, 0.0
        %v3012 = vsel %vm2684, %v3010, 0.0
        %3013 = vrot.lane.b32.xlu0 %v2929, 121
        %v3014 = vpop.permute.xlu0 %3013
        %3015 = vrot.lane.b32.xlu0 %v2930, 121
        %v3016 = vpop.permute.xlu0 %3015
        %3019 = vrot.lane.b32.xlu0 %v2929, 57
        %v3020 = vpop.permute.xlu0 %3019
        %3021 = vrot.lane.b32.xlu0 %v2930, 57
        %v3022 = vpop.permute.xlu0 %3021
        %v3025 = vsel %vm2692, %v3014, %v3020
        %v3026 = vsel %vm2692, %v3016, %v3022
        %v3027 = vsel %vm2701, %v3025, 0.0
        %v3028 = vsel %vm2701, %v3026, 0.0
        %3029 = vrot.lane.b32.xlu0 %v2929, 120
        %v3030 = vpop.permute.xlu0 %3029
        %3031 = vrot.lane.b32.xlu0 %v2930, 120
        %v3032 = vpop.permute.xlu0 %3031
        %3035 = vrot.lane.b32.xlu0 %v2929, 56
        %v3036 = vpop.permute.xlu0 %3035
        %3037 = vrot.lane.b32.xlu0 %v2930, 56
        %v3038 = vpop.permute.xlu0 %3037
        %v3041 = vsel %vm2709, %v3030, %v3036
        %v3042 = vsel %vm2709, %v3032, %v3038
        %v3043 = vsel %vm2716, %v3041, 0.0
        %v3044 = vsel %vm2716, %v3042, 0.0
        %3045 = vrot.lane.b32.xlu0 %v2929, 119
        %v3046 = vpop.permute.xlu0 %3045
        %3047 = vrot.lane.b32.xlu0 %v2930, 119
        %v3048 = vpop.permute.xlu0 %3047
        %3051 = vrot.lane.b32.xlu0 %v2929, 55
        %v3052 = vpop.permute.xlu0 %3051
        %3053 = vrot.lane.b32.xlu0 %v2930, 55
        %v3054 = vpop.permute.xlu0 %3053
        %v3057 = vsel %vm2724, %v3046, %v3052
        %v3058 = vsel %vm2724, %v3048, %v3054
        %v3059 = vsel %vm2732, %v3057, 0.0
        %v3060 = vsel %vm2732, %v3058, 0.0
        %v3061 = vld [vmem:[#allocation34] sm:$0xff]
        %v3062 = vld [vmem:[#allocation35] sm:$0xf]
        %3064 = vset.pattern.permute.xlu0 0
        %3065 = vperm.xlu0 %3064, %v3062
        %v3066 = vpop.permute.xlu0 %3065
        %v3069 = vcombine.high %v3061, %v3061
        %v3070 = vsel %vm1638, %v3069, 0
        %3072 = vmatprep.subr.mxu0 0.0
        %3073 = vmatpush1.msra.mxu0 %v2947
        %3074 = vmatprep.subr.mxu0 0.0
        %3075 = vmatpush1.msra.mxu0 %v2948
        %3076 = vmatprep.subr.mxu0 0.0
        %3077 = vmatpush1.msra.mxu0 %v2963
        %3078 = vmatprep.subr.mxu0 0.0
        %3079 = vmatpush1.msra.mxu0 %v2964
        %3080 = vmatprep.subr.mxu0 0.0
        %3081 = vmatpush1.msra.mxu0 %v2979
        %3082 = vmatprep.subr.mxu0 0.0
        %3083 = vmatpush1.msra.mxu0 %v2980
        %3084 = vmatprep.subr.mxu0 0.0
        %3085 = vmatpush1.msra.mxu0 %v2995
        %3086 = vmatprep.subr.mxu0 0.0
        %3087 = vmatpush1.msra.mxu0 %v2996
        %3088 = vmatprep.subr.mxu0 0.0
        %3089 = vmatpush1.msra.mxu0 %v2929
        %3090 = vmatprep.subr.mxu0 0.0
        %3091 = vmatpush1.msra.mxu0 %v2930
        %3092 = vmatprep.subr.mxu0 0.0
        %3093 = vmatpush1.msra.mxu0 %v3011
        %3094 = vmatprep.subr.mxu0 0.0
        %3095 = vmatpush1.msra.mxu0 %v3012
        %3096 = vmatprep.subr.mxu0 0.0
        %3097 = vmatpush1.msra.mxu0 %v3027
        %3098 = vmatprep.subr.mxu0 0.0
        %3099 = vmatpush1.msra.mxu0 %v3028
        %3100 = vmatprep.subr.mxu0 0.0
        %3101 = vmatpush1.msra.mxu0 %v3043
        %3102 = vmatprep.subr.mxu0 0.0
        %3103 = vmatpush1.msra.mxu0 %v3044
        %3104 = vmatprep.subr.mxu0 0.0
        %3105 = vmatpush1.msra.mxu0 %v3059
        %3106 = vmatprep.subr.mxu0 0.0
        %3107 = vmatpush1.msra.mxu0 %v3060
        %3108 = vmatprep.subr.mxu0 0.0
        %3109 = vmatpush1.msra.mxu0 0.0
        %3110 = vmatprep.subr.mxu0 0.0
        %3111 = vmatpush1.msra.mxu0 0.0
        %3112 = vmatprep.subr.mxu0 0.0
        %3113 = vmatpush1.msra.mxu0 0.0
        %3114 = vmatprep.subr.mxu0 0.0
        %3115 = vmatpush1.msra.mxu0 0.0
        %3116 = vmatprep.subr.mxu0 0.0
        %3117 = vmatpush1.msra.mxu0 0.0
        %3118 = vmatprep.subr.mxu0 0.0
        %3119 = vmatpush1.msra.mxu0 0.0
        %3120 = vmatprep.subr.mxu0 0.0
        %3121 = vmatpush1.msra.mxu0 0.0
        %3122 = vmatprep.subr.mxu0 0.0
        %3123 = vmatpush1.msra.mxu0 0.0
        %3124 = vmatprep.subr.mxu0 0.0
        %3125 = vmatpush1.msra.mxu0 0.0
        %3126 = vmatprep.subr.mxu0 0.0
        %3127 = vmatpush1.msra.mxu0 0.0
        %3128 = vmatprep.subr.mxu0 0.0
        %3129 = vmatpush1.msra.mxu0 0.0
        %3130 = vmatprep.subr.mxu0 0.0
        %3131 = vmatpush1.msra.mxu0 0.0
        %3132 = vmatprep.subr.mxu0 0.0
        %3133 = vmatpush1.msra.mxu0 0.0
        %3134 = vmatprep.subr.mxu0 0.0
        %3135 = vmatpush1.msra.mxu0 0.0
        %3136 = vmatprep.mubr.f32.mxu0 %v3070
        %3137 = vmatmul.mubr.f32.gmra.mrb[0].mxu0 %v3061
        %v3138 = vpop.f32.mrb[0].mxu0
        %v3139 = vadd.f32 %v3066, %v3138
        %v3140 = vpop.f32.mrb[0].mxu0
        %3141 = vdwg.mxu0
        %v3142 = vmax.f32 %v3139, 0.0
        %v3143 = vld [vmem:[#allocation37] sm:$0xff]
        %v3144 = vld [vmem:[#allocation37 + $0x8] sm:$0xff]
        %v3145 = vld [vmem:[#allocation37 + $0x10] sm:$0xff]
        %v3146 = vld [vmem:[#allocation37 + $0x18] sm:$0xff]
        %v3147 = vld [vmem:[#allocation37 + $0x20] sm:$0xff]
        %v3148 = vld [vmem:[#allocation37 + $0x28] sm:$0xff]
        %v3149 = vld [vmem:[#allocation37 + $0x30] sm:$0xff]
        %v3150 = vld [vmem:[#allocation37 + $0x38] sm:$0xff]
        %v3151 = vld [vmem:[#allocation37 + $0x40] sm:$0xff]
        %v3152 = vld [vmem:[#allocation37 + $0x48] sm:$0xff]
        %v3153 = vld [vmem:[#allocation37 + $0x50] sm:$0xff]
        %v3154 = vld [vmem:[#allocation37 + $0x58] sm:$0xff]
        %v3155 = vld [vmem:[#allocation37 + $0x60] sm:$0xff]
        %v3156 = vld [vmem:[#allocation37 + $0x68] sm:$0xff]
        %v3157 = vld [vmem:[#allocation37 + $0x70] sm:$0xff]
        %v3158 = vld [vmem:[#allocation37 + $0x78] sm:$0xff]
        %vm3159 = vcmask 523264
        %v3161 = vsel %vm3159, %v3142, 0
        %3163 = vmatprep.subr.mxu0 %v3144
        %3164 = vmatpush1.msra.mxu0 %v3143
        %3165 = vmatprep.subr.mxu0 %v3146
        %3166 = vmatpush1.msra.mxu0 %v3145
        %3167 = vmatprep.subr.mxu0 %v3148
        %3168 = vmatpush1.msra.mxu0 %v3147
        %3169 = vmatprep.subr.mxu0 %v3150
        %3170 = vmatpush1.msra.mxu0 %v3149
        %3171 = vmatprep.subr.mxu0 %v3152
        %3172 = vmatpush1.msra.mxu0 %v3151
        %3173 = vmatprep.subr.mxu0 %v3154
        %3174 = vmatpush1.msra.mxu0 %v3153
        %3175 = vmatprep.subr.mxu0 %v3156
        %3176 = vmatpush1.msra.mxu0 %v3155
        %3177 = vmatprep.subr.mxu0 %v3158
        %3178 = vmatpush1.msra.mxu0 %v3157
        %3179 = vmatprep.subr.mxu0 0.0
        %3180 = vmatpush1.msra.mxu0 0.0
        %3181 = vmatprep.subr.mxu0 0.0
        %3182 = vmatpush1.msra.mxu0 0.0
        %3183 = vmatprep.subr.mxu0 0.0
        %3184 = vmatpush1.msra.mxu0 0.0
        %3185 = vmatprep.subr.mxu0 0.0
        %3186 = vmatpush1.msra.mxu0 0.0
        %3187 = vmatprep.subr.mxu0 0.0
        %3188 = vmatpush1.msra.mxu0 0.0
        %3189 = vmatprep.subr.mxu0 0.0
        %3190 = vmatpush1.msra.mxu0 0.0
        %3191 = vmatprep.subr.mxu0 0.0
        %3192 = vmatpush1.msra.mxu0 0.0
        %3193 = vmatprep.subr.mxu0 0.0
        %3194 = vmatpush1.msra.mxu0 0.0
        %3195 = vmatprep.subr.mxu0 0.0
        %3196 = vmatpush1.msra.mxu0 0.0
        %3197 = vmatprep.subr.mxu0 0.0
        %3198 = vmatpush1.msra.mxu0 0.0
        %3199 = vmatprep.subr.mxu0 0.0
        %3200 = vmatpush1.msra.mxu0 0.0
        %3201 = vmatprep.subr.mxu0 0.0
        %3202 = vmatpush1.msra.mxu0 0.0
        %3203 = vmatprep.subr.mxu0 0.0
        %3204 = vmatpush1.msra.mxu0 0.0
        %3205 = vmatprep.subr.mxu0 0.0
        %3206 = vmatpush1.msra.mxu0 0.0
        %3207 = vmatprep.subr.mxu0 0.0
        %3208 = vmatpush1.msra.mxu0 0.0
        %3209 = vmatprep.subr.mxu0 0.0
        %3210 = vmatpush1.msra.mxu0 0.0
        %3211 = vmatprep.subr.mxu0 0.0
        %3212 = vmatpush1.msra.mxu0 0.0
        %3213 = vmatprep.subr.mxu0 0.0
        %3214 = vmatpush1.msra.mxu0 0.0
        %3215 = vmatprep.subr.mxu0 0.0
        %3216 = vmatpush1.msra.mxu0 0.0
        %3217 = vmatprep.subr.mxu0 0.0
        %3218 = vmatpush1.msra.mxu0 0.0
        %3219 = vmatprep.subr.mxu0 0.0
        %3220 = vmatpush1.msra.mxu0 0.0
        %3221 = vmatprep.subr.mxu0 0.0
        %3222 = vmatpush1.msra.mxu0 0.0
        %3223 = vmatprep.subr.mxu0 0.0
        %3224 = vmatpush1.msra.mxu0 0.0
        %3225 = vmatprep.subr.mxu0 0.0
        %3226 = vmatpush1.msra.mxu0 0.0
        %3227 = vmatprep.mubr.f32.mxu0 0.0
        %3228 = vmatmul.mubr.f32.gmra.mrb[0].mxu0 %v3161
        %v3229 = vpop.f32.mrb[0].mxu0
        %v3230 = vadd.f32 0.0, %v3229
        %v3231 = vpop.f32.mrb[0].mxu0
        %v3232 = vadd.f32 0.0, %v3231
        %3233 = vdwg.mxu0
        %3234 = vrot.lane.b32.xlu0 %v3230, 17
        %v3235 = vpop.permute.xlu0 %3234
        %3236 = vrot.lane.b32.xlu0 %v3232, 17
        %v3237 = vpop.permute.xlu0 %3236
        %v3238 = vsel %vm1196, %v3235, %v3237
        %v3239 = vsel %vm1196, %v3237, %v3235
        %v3240 = vsel %vm1211, %v3239, 0.0
        %v3241 = vsel %vm1212, %v3238, 0.0
        %3242 = vrot.lane.b32.xlu0 %v3230, 16
        %v3243 = vpop.permute.xlu0 %3242
        %3244 = vrot.lane.b32.xlu0 %v3232, 16
        %v3245 = vpop.permute.xlu0 %3244
        %v3246 = vsel %vm1219, %v3243, %v3245
        %v3247 = vsel %vm1219, %v3245, %v3243
        %v3248 = vsel %vm1231, %v3247, 0.0
        %v3249 = vsel %vm1232, %v3246, 0.0
        %3250 = vrot.lane.b32.xlu0 %v3230, 15
        %v3251 = vpop.permute.xlu0 %3250
        %3252 = vrot.lane.b32.xlu0 %v3232, 15
        %v3253 = vpop.permute.xlu0 %3252
        %v3254 = vsel %vm1239, %v3251, %v3253
        %v3255 = vsel %vm1239, %v3253, %v3251
        %v3256 = vsel %vm1253, %v3255, 0.0
        %v3257 = vsel %vm1254, %v3254, 0.0
        %3258 = vrot.lane.b32.xlu0 %v3230, 1
        %v3259 = vpop.permute.xlu0 %3258
        %3260 = vrot.lane.b32.xlu0 %v3232, 1
        %v3261 = vpop.permute.xlu0 %3260
        %v3262 = vsel %vm1261, %v3259, %v3261
        %v3263 = vsel %vm1261, %v3261, %v3259
        %v3264 = vsel %vm1273, %v3263, 0.0
        %v3265 = vsel %vm1274, %v3262, 0.0
        %3266 = vrot.lane.b32.xlu0 %v3230, 127
        %v3267 = vpop.permute.xlu0 %3266
        %3268 = vrot.lane.b32.xlu0 %v3232, 127
        %v3269 = vpop.permute.xlu0 %3268
        %v3270 = vsel %vm1281, %v3267, %v3269
        %v3271 = vsel %vm1281, %v3269, %v3267
        %v3272 = vsel %vm1293, %v3270, 0.0
        %v3273 = vsel %vm1294, %v3271, 0.0
        %3274 = vrot.lane.b32.xlu0 %v3230, 113
        %v3275 = vpop.permute.xlu0 %3274
        %3276 = vrot.lane.b32.xlu0 %v3232, 113
        %v3277 = vpop.permute.xlu0 %3276
        %v3278 = vsel %vm1301, %v3275, %v3277
        %v3279 = vsel %vm1301, %v3277, %v3275
        %v3280 = vsel %vm1315, %v3278, 0.0
        %v3281 = vsel %vm1316, %v3279, 0.0
        %3282 = vrot.lane.b32.xlu0 %v3230, 112
        %v3283 = vpop.permute.xlu0 %3282
        %3284 = vrot.lane.b32.xlu0 %v3232, 112
        %v3285 = vpop.permute.xlu0 %3284
        %v3286 = vsel %vm1323, %v3283, %v3285
        %v3287 = vsel %vm1323, %v3285, %v3283
        %v3288 = vsel %vm1335, %v3286, 0.0
        %v3289 = vsel %vm1336, %v3287, 0.0
        %3290 = vrot.lane.b32.xlu0 %v3230, 111
        %v3291 = vpop.permute.xlu0 %3290
        %3292 = vrot.lane.b32.xlu0 %v3232, 111
        %v3293 = vpop.permute.xlu0 %3292
        %v3294 = vsel %vm1343, %v3291, %v3293
        %v3295 = vsel %vm1343, %v3293, %v3291
        %v3296 = vsel %vm1356, %v3294, 0.0
        %v3297 = vsel %vm1357, %v3295, 0.0
        %v3300 = vrot.slane %v3248, 4
        %v3301 = vrot.slane %v3249, 4
        %v3306 = vrot.slane %v3264, 4
        %v3307 = vrot.slane %v3265, 4
        %v3312 = vrot.slane %v3272, 4
        %v3313 = vrot.slane %v3273, 4
        %v3318 = vrot.slane %v3288, 4
        %v3319 = vrot.slane %v3289, 4
        %v3324 = vrot.slane %v1213, 4
        %v3325 = vrot.slane %v1214, 4
        %v3330 = vrot.slane %v1255, 4
        %v3331 = vrot.slane %v1256, 4
        %v3334 = vcombine.low %v1184, %v1184
        %v3338 = vrot.slane %v1317, 4
        %v3339 = vrot.slane %v1318, 4
        %v3342 = vsel %vm1384, %v3240, %v3300
        %v3343 = vsel %vm1384, %v3241, %v3301
        %v3344 = vsel %vm1384, %v3256, %v3306
        %v3345 = vsel %vm1384, %v3257, %v3307
        %v3346 = vsel %vm1384, %v3230, %v3312
        %v3347 = vsel %vm1384, %v3232, %v3313
        %v3348 = vsel %vm1384, %v3280, %v3318
        %v3349 = vsel %vm1384, %v3281, %v3319
        %v3350 = vsel %vm1384, %v3296, %v3324
        %v3351 = vsel %vm1384, %v3297, %v3325
        %v3352 = vsel %vm1384, %v1233, %v3330
        %v3353 = vsel %vm1384, %v1234, %v3331
        %v3354 = vsel %vm1384, %v1275, %v3334
        %v3355 = vsel %vm1384, %v1276, %v1184
        %v3356 = vsel %vm1384, %v1295, %v3338
        %v3357 = vsel %vm1384, %v1296, %v3339
        %v3358 = vrot.slane %v1358, 4
        %v3359 = vrot.slane %v1359, 4
        %v3362 = vsel %vm1384, %v1337, %v3358
        %v3363 = vsel %vm1384, %v1338, %v3359
        %v3364 = vld [vmem:[#allocation38] sm:$0xff]
        %v3365 = vld [vmem:[#allocation38 + $0x8] sm:$0xff]
        %v3366 = vld [vmem:[#allocation40] sm:$0xff]
        %v3367 = vld [vmem:[#allocation40 + $0x8] sm:$0xff]
        %3369 = vset.pattern.permute.xlu0 0
        %3370 = vperm.xlu0 %3369, %v3366
        %v3371 = vpop.permute.xlu0 %3370
        %3374 = vset.pattern.permute.xlu0 0
        %3375 = vperm.xlu0 %3374, %v3367
        %v3376 = vpop.permute.xlu0 %3375
        %v3379 = vsel %vm2131, %v3364, 0
        %v3382 = vsel %vm2131, %v3365, 0
        %3384 = vmatprep.subr.mxu0 %v3343
        %3385 = vmatpush1.msra.mxu0 %v3342
        %3386 = vmatprep.subr.mxu0 %v3345
        %3387 = vmatpush1.msra.mxu0 %v3344
        %3388 = vmatprep.subr.mxu0 %v3347
        %3389 = vmatpush1.msra.mxu0 %v3346
        %3390 = vmatprep.subr.mxu0 %v3349
        %3391 = vmatpush1.msra.mxu0 %v3348
        %3392 = vmatprep.subr.mxu0 %v3351
        %3393 = vmatpush1.msra.mxu0 %v3350
        %3394 = vmatprep.subr.mxu0 %v3353
        %3395 = vmatpush1.msra.mxu0 %v3352
        %3396 = vmatprep.subr.mxu0 %v3355
        %3397 = vmatpush1.msra.mxu0 %v3354
        %3398 = vmatprep.subr.mxu0 %v3357
        %3399 = vmatpush1.msra.mxu0 %v3356
        %3400 = vmatprep.subr.mxu0 %v3363
        %3401 = vmatpush1.msra.mxu0 %v3362
        %3402 = vmatprep.subr.mxu0 0.0
        %3403 = vmatpush1.msra.mxu0 0.0
        %3404 = vmatprep.subr.mxu0 0.0
        %3405 = vmatpush1.msra.mxu0 0.0
        %3406 = vmatprep.subr.mxu0 0.0
        %3407 = vmatpush1.msra.mxu0 0.0
        %3408 = vmatprep.subr.mxu0 0.0
        %3409 = vmatpush1.msra.mxu0 0.0
        %3410 = vmatprep.subr.mxu0 0.0
        %3411 = vmatpush1.msra.mxu0 0.0
        %3412 = vmatprep.subr.mxu0 0.0
        %3413 = vmatpush1.msra.mxu0 0.0
        %3414 = vmatprep.subr.mxu0 0.0
        %3415 = vmatpush1.msra.mxu0 0.0
        %3416 = vmatprep.subr.mxu0 0.0
        %3417 = vmatpush1.msra.mxu0 0.0
        %3418 = vmatprep.subr.mxu0 0.0
        %3419 = vmatpush1.msra.mxu0 0.0
        %3420 = vmatprep.subr.mxu0 0.0
        %3421 = vmatpush1.msra.mxu0 0.0
        %3422 = vmatprep.subr.mxu0 0.0
        %3423 = vmatpush1.msra.mxu0 0.0
        %3424 = vmatprep.subr.mxu0 0.0
        %3425 = vmatpush1.msra.mxu0 0.0
        %3426 = vmatprep.subr.mxu0 0.0
        %3427 = vmatpush1.msra.mxu0 0.0
        %3428 = vmatprep.subr.mxu0 0.0
        %3429 = vmatpush1.msra.mxu0 0.0
        %3430 = vmatprep.subr.mxu0 0.0
        %3431 = vmatpush1.msra.mxu0 0.0
        %3432 = vmatprep.subr.mxu0 0.0
        %3433 = vmatpush1.msra.mxu0 0.0
        %3434 = vmatprep.subr.mxu0 0.0
        %3435 = vmatpush1.msra.mxu0 0.0
        %3436 = vmatprep.subr.mxu0 0.0
        %3437 = vmatpush1.msra.mxu0 0.0
        %3438 = vmatprep.subr.mxu0 0.0
        %3439 = vmatpush1.msra.mxu0 0.0
        %3440 = vmatprep.subr.mxu0 0.0
        %3441 = vmatpush1.msra.mxu0 0.0
        %3442 = vmatprep.subr.mxu0 0.0
        %3443 = vmatpush1.msra.mxu0 0.0
        %3444 = vmatprep.subr.mxu0 0.0
        %3445 = vmatpush1.msra.mxu0 0.0
        %3446 = vmatprep.subr.mxu0 0.0
        %3447 = vmatpush1.msra.mxu0 0.0
        %3448 = vmatprep.mubr.f32.mxu0 0.0
        %3449 = vmatmul.mubr.f32.gmra.mrb[0].mxu0 %v3379
        %v3450 = vpop.f32.mrb[0].mxu0
        %v3451 = vadd.f32 %v3371, %v3450
        %v3452 = vpop.f32.mrb[0].mxu0
        %v3453 = vadd.f32 %v3371, %v3452
        %3454 = vmatprep.mubr.f32.mxu0 0.0
        %3455 = vmatmul.mubr.f32.gmra.mrb[0].mxu0 %v3382
        %v3456 = vpop.f32.mrb[0].mxu0
        %v3457 = vadd.f32 %v3376, %v3456
        %v3458 = vpop.f32.mrb[0].mxu0
        %v3459 = vadd.f32 %v3376, %v3458
        %3460 = vdwg.mxu0
        %v3461 = vmax.f32 %v3451, 0.0
        %v3462 = vmax.f32 %v3453, 0.0
        %v3463 = vmax.f32 %v3457, 0.0
        %v3464 = vmax.f32 %v3459, 0.0
        %3465 = vrot.lane.b32.xlu0 %v3461, 17
        %v3466 = vpop.permute.xlu0 %3465
        %3467 = vrot.lane.b32.xlu0 %v3463, 17
        %v3468 = vpop.permute.xlu0 %3467
        %3469 = vrot.lane.b32.xlu0 %v3462, 17
        %v3470 = vpop.permute.xlu0 %3469
        %3471 = vrot.lane.b32.xlu0 %v3464, 17
        %v3472 = vpop.permute.xlu0 %3471
        %v3473 = vsel %vm1196, %v3466, %v3470
        %v3474 = vsel %vm1196, %v3468, %v3472
        %v3475 = vsel %vm1196, %v3470, %v3466
        %v3476 = vsel %vm1196, %v3472, %v3468
        %v3477 = vsel %vm1211, %v3475, 0.0
        %v3478 = vsel %vm1212, %v3473, 0.0
        %v3479 = vsel %vm1211, %v3476, 0.0
        %v3480 = vsel %vm1212, %v3474, 0.0
        %3481 = vrot.lane.b32.xlu0 %v3461, 16
        %v3482 = vpop.permute.xlu0 %3481
        %3483 = vrot.lane.b32.xlu0 %v3463, 16
        %v3484 = vpop.permute.xlu0 %3483
        %3485 = vrot.lane.b32.xlu0 %v3462, 16
        %v3486 = vpop.permute.xlu0 %3485
        %3487 = vrot.lane.b32.xlu0 %v3464, 16
        %v3488 = vpop.permute.xlu0 %3487
        %v3489 = vsel %vm1219, %v3482, %v3486
        %v3490 = vsel %vm1219, %v3484, %v3488
        %v3491 = vsel %vm1219, %v3486, %v3482
        %v3492 = vsel %vm1219, %v3488, %v3484
        %v3493 = vsel %vm1231, %v3491, 0.0
        %v3494 = vsel %vm1232, %v3489, 0.0
        %v3495 = vsel %vm1231, %v3492, 0.0
        %v3496 = vsel %vm1232, %v3490, 0.0
        %3497 = vrot.lane.b32.xlu0 %v3461, 15
        %v3498 = vpop.permute.xlu0 %3497
        %3499 = vrot.lane.b32.xlu0 %v3463, 15
        %v3500 = vpop.permute.xlu0 %3499
        %3501 = vrot.lane.b32.xlu0 %v3462, 15
        %v3502 = vpop.permute.xlu0 %3501
        %3503 = vrot.lane.b32.xlu0 %v3464, 15
        %v3504 = vpop.permute.xlu0 %3503
        %v3505 = vsel %vm1239, %v3498, %v3502
        %v3506 = vsel %vm1239, %v3500, %v3504
        %v3507 = vsel %vm1239, %v3502, %v3498
        %v3508 = vsel %vm1239, %v3504, %v3500
        %v3509 = vsel %vm1253, %v3507, 0.0
        %v3510 = vsel %vm1254, %v3505, 0.0
        %v3511 = vsel %vm1253, %v3508, 0.0
        %v3512 = vsel %vm1254, %v3506, 0.0
        %3513 = vrot.lane.b32.xlu0 %v3461, 1
        %v3514 = vpop.permute.xlu0 %3513
        %3515 = vrot.lane.b32.xlu0 %v3463, 1
        %v3516 = vpop.permute.xlu0 %3515
        %3517 = vrot.lane.b32.xlu0 %v3462, 1
        %v3518 = vpop.permute.xlu0 %3517
        %3519 = vrot.lane.b32.xlu0 %v3464, 1
        %v3520 = vpop.permute.xlu0 %3519
        %v3521 = vsel %vm1261, %v3514, %v3518
        %v3522 = vsel %vm1261, %v3516, %v3520
        %v3523 = vsel %vm1261, %v3518, %v3514
        %v3524 = vsel %vm1261, %v3520, %v3516
        %v3525 = vsel %vm1273, %v3523, 0.0
        %v3526 = vsel %vm1274, %v3521, 0.0
        %v3527 = vsel %vm1273, %v3524, 0.0
        %v3528 = vsel %vm1274, %v3522, 0.0
        %3529 = vrot.lane.b32.xlu0 %v3461, 127
        %v3530 = vpop.permute.xlu0 %3529
        %3531 = vrot.lane.b32.xlu0 %v3463, 127
        %v3532 = vpop.permute.xlu0 %3531
        %3533 = vrot.lane.b32.xlu0 %v3462, 127
        %v3534 = vpop.permute.xlu0 %3533
        %3535 = vrot.lane.b32.xlu0 %v3464, 127
        %v3536 = vpop.permute.xlu0 %3535
        %v3537 = vsel %vm1281, %v3530, %v3534
        %v3538 = vsel %vm1281, %v3532, %v3536
        %v3539 = vsel %vm1281, %v3534, %v3530
        %v3540 = vsel %vm1281, %v3536, %v3532
        %v3541 = vsel %vm1293, %v3537, 0.0
        %v3542 = vsel %vm1294, %v3539, 0.0
        %v3543 = vsel %vm1293, %v3538, 0.0
        %v3544 = vsel %vm1294, %v3540, 0.0
        %3545 = vrot.lane.b32.xlu0 %v3461, 113
        %v3546 = vpop.permute.xlu0 %3545
        %3547 = vrot.lane.b32.xlu0 %v3463, 113
        %v3548 = vpop.permute.xlu0 %3547
        %3549 = vrot.lane.b32.xlu0 %v3462, 113
        %v3550 = vpop.permute.xlu0 %3549
        %3551 = vrot.lane.b32.xlu0 %v3464, 113
        %v3552 = vpop.permute.xlu0 %3551
        %v3553 = vsel %vm1301, %v3546, %v3550
        %v3554 = vsel %vm1301, %v3548, %v3552
        %v3555 = vsel %vm1301, %v3550, %v3546
        %v3556 = vsel %vm1301, %v3552, %v3548
        %v3557 = vsel %vm1315, %v3553, 0.0
        %v3558 = vsel %vm1316, %v3555, 0.0
        %v3559 = vsel %vm1315, %v3554, 0.0
        %v3560 = vsel %vm1316, %v3556, 0.0
        %3561 = vrot.lane.b32.xlu0 %v3461, 112
        %v3562 = vpop.permute.xlu0 %3561
        %3563 = vrot.lane.b32.xlu0 %v3463, 112
        %v3564 = vpop.permute.xlu0 %3563
        %3565 = vrot.lane.b32.xlu0 %v3462, 112
        %v3566 = vpop.permute.xlu0 %3565
        %3567 = vrot.lane.b32.xlu0 %v3464, 112
        %v3568 = vpop.permute.xlu0 %3567
        %v3569 = vsel %vm1323, %v3562, %v3566
        %v3570 = vsel %vm1323, %v3564, %v3568
        %v3571 = vsel %vm1323, %v3566, %v3562
        %v3572 = vsel %vm1323, %v3568, %v3564
        %v3573 = vsel %vm1335, %v3569, 0.0
        %v3574 = vsel %vm1336, %v3571, 0.0
        %v3575 = vsel %vm1335, %v3570, 0.0
        %v3576 = vsel %vm1336, %v3572, 0.0
        %3577 = vrot.lane.b32.xlu0 %v3461, 111
        %v3578 = vpop.permute.xlu0 %3577
        %3579 = vrot.lane.b32.xlu0 %v3463, 111
        %v3580 = vpop.permute.xlu0 %3579
        %3581 = vrot.lane.b32.xlu0 %v3462, 111
        %v3582 = vpop.permute.xlu0 %3581
        %3583 = vrot.lane.b32.xlu0 %v3464, 111
        %v3584 = vpop.permute.xlu0 %3583
        %v3585 = vsel %vm1343, %v3578, %v3582
        %v3586 = vsel %vm1343, %v3580, %v3584
        %v3587 = vsel %vm1343, %v3582, %v3578
        %v3588 = vsel %vm1343, %v3584, %v3580
        %v3589 = vsel %vm1356, %v3585, 0.0
        %v3590 = vsel %vm1357, %v3587, 0.0
        %v3591 = vsel %vm1356, %v3586, 0.0
        %v3592 = vsel %vm1357, %v3588, 0.0
        %v3593 = vld [vmem:[#allocation41] sm:$0xff]
        %v3594 = vld [vmem:[#allocation43] sm:$0xf]
        %3596 = vset.pattern.permute.xlu0 0
        %3597 = vperm.xlu0 %3596, %v3594
        %v3598 = vpop.permute.xlu0 %3597
        %v3601 = vcombine.high %v3593, %v3593
        %v3602 = vsel %vm1638, %v3601, 0
        %3604 = vmatprep.subr.mxu0 %v3478
        %3605 = vmatpush1.msra.mxu0 %v3477
        %3606 = vmatprep.subr.mxu0 %v3480
        %3607 = vmatpush1.msra.mxu0 %v3479
        %3608 = vmatprep.subr.mxu0 %v3494
        %3609 = vmatpush1.msra.mxu0 %v3493
        %3610 = vmatprep.subr.mxu0 %v3496
        %3611 = vmatpush1.msra.mxu0 %v3495
        %3612 = vmatprep.subr.mxu0 %v3510
        %3613 = vmatpush1.msra.mxu0 %v3509
        %3614 = vmatprep.subr.mxu0 %v3512
        %3615 = vmatpush1.msra.mxu0 %v3511
        %3616 = vmatprep.subr.mxu0 %v3526
        %3617 = vmatpush1.msra.mxu0 %v3525
        %3618 = vmatprep.subr.mxu0 %v3528
        %3619 = vmatpush1.msra.mxu0 %v3527
        %3620 = vmatprep.subr.mxu0 %v3462
        %3621 = vmatpush1.msra.mxu0 %v3461
        %3622 = vmatprep.subr.mxu0 %v3464
        %3623 = vmatpush1.msra.mxu0 %v3463
        %3624 = vmatprep.subr.mxu0 %v3542
        %3625 = vmatpush1.msra.mxu0 %v3541
        %3626 = vmatprep.subr.mxu0 %v3544
        %3627 = vmatpush1.msra.mxu0 %v3543
        %3628 = vmatprep.subr.mxu0 %v3558
        %3629 = vmatpush1.msra.mxu0 %v3557
        %3630 = vmatprep.subr.mxu0 %v3560
        %3631 = vmatpush1.msra.mxu0 %v3559
        %3632 = vmatprep.subr.mxu0 %v3574
        %3633 = vmatpush1.msra.mxu0 %v3573
        %3634 = vmatprep.subr.mxu0 %v3576
        %3635 = vmatpush1.msra.mxu0 %v3575
        %3636 = vmatprep.subr.mxu0 %v3590
        %3637 = vmatpush1.msra.mxu0 %v3589
        %3638 = vmatprep.subr.mxu0 %v3592
        %3639 = vmatpush1.msra.mxu0 %v3591
        %3640 = vmatprep.subr.mxu0 0.0
        %3641 = vmatpush1.msra.mxu0 0.0
        %3642 = vmatprep.subr.mxu0 0.0
        %3643 = vmatpush1.msra.mxu0 0.0
        %3644 = vmatprep.subr.mxu0 0.0
        %3645 = vmatpush1.msra.mxu0 0.0
        %3646 = vmatprep.subr.mxu0 0.0
        %3647 = vmatpush1.msra.mxu0 0.0
        %3648 = vmatprep.subr.mxu0 0.0
        %3649 = vmatpush1.msra.mxu0 0.0
        %3650 = vmatprep.subr.mxu0 0.0
        %3651 = vmatpush1.msra.mxu0 0.0
        %3652 = vmatprep.subr.mxu0 0.0
        %3653 = vmatpush1.msra.mxu0 0.0
        %3654 = vmatprep.subr.mxu0 0.0
        %3655 = vmatpush1.msra.mxu0 0.0
        %3656 = vmatprep.subr.mxu0 0.0
        %3657 = vmatpush1.msra.mxu0 0.0
        %3658 = vmatprep.subr.mxu0 0.0
        %3659 = vmatpush1.msra.mxu0 0.0
        %3660 = vmatprep.subr.mxu0 0.0
        %3661 = vmatpush1.msra.mxu0 0.0
        %3662 = vmatprep.subr.mxu0 0.0
        %3663 = vmatpush1.msra.mxu0 0.0
        %3664 = vmatprep.subr.mxu0 0.0
        %3665 = vmatpush1.msra.mxu0 0.0
        %3666 = vmatprep.subr.mxu0 0.0
        %3667 = vmatpush1.msra.mxu0 0.0
        %3668 = vmatprep.mubr.f32.mxu0 %v3602
        %3669 = vmatmul.mubr.f32.gmra.mrb[0].mxu0 %v3593
        %v3670 = vpop.f32.mrb[0].mxu0
        %v3671 = vadd.f32 %v3598, %v3670
        %v3672 = vpop.f32.mrb[0].mxu0
        %v3673 = vadd.f32 %v3598, %v3672
        %3674 = vdwg.mxu0
        %v3677 = vcombine.low %v3671, %v3673
        %3679 = vst [vmem:[%s1183] sm:$0xff] %v3677
        %s3680 = sand.u32 %s637, 1
        %s3681 = scalar_lea.sflag [#allocation4], %s3680
        %s3682 = sand.u32 %s637, 1
        %s3683 = smul.addr %s3682, 8
        %s3684 = scalar_lea.vmem [#allocation44], %s3683
        // Predicated region
        $region237: #{_lambda_.1} parent=127 // pred_check
          %p3685 = pneg %p647
        $region238: #{_lambda_.1} parent=127 // pred_check_branch
          %3687 = sbr.rel (%p3685) target = $region240
        $region239: #{_lambda_.1} parent=127 // pred_region
          %s3689 = ssub.s32 128, 128
          %3690 = vsyncadd %s3681, %s3689
          %s3691 = smul.addr %s57, 2
          %s3692 = smul.addr %s3691, 64
          %s3693 = scalar_lea.hbm %s27, %s3692
          %s3695 = sshll.u32 %s3684, 4
          %s3696 = int_to_ptr.vmem [resolvable:$true] %s3695
          %3698 = dma.vmem_to_hbm [thread:$0]  %s3696, 128, %s3693, %s3681
        $region240: #{_lambda_.1} parent=127 // pred_fallthru
          _
      $region128: #{_lambda_.1} parent=5 // pred_fallthru
        _
      %p3699 = scmp.le.s32.totalorder 2, %s52
      // Predicated region
      $region241: #{_lambda_.1} parent=5 // pred_check
        %p3700 = pneg %p3699
      $region242: #{_lambda_.1} parent=5 // pred_check_branch
        %3702 = sbr.rel (%p3700) target = $region244
      $region243: #{_lambda_.1} parent=5 // pred_region
        %s3703 = ssub.s32 %s52, 2
        // Predicated region
        $region245: #{_lambda_.1} parent=243 // pred_check
          %p3704 = pneg %p653
        $region246: #{_lambda_.1} parent=243 // pred_check_branch
          %3706 = sbr.rel (%p3704) target = $region248
        $region247: #{_lambda_.1} parent=243 // pred_region
          %s3707 = sand.u32 %s638, 1
          %s3708 = scalar_lea.sflag [#allocation4], %s3707
          %s3709 = sand.u32 %s638, 1
          %s3710 = smul.addr %s3709, 8
          %s3711 = scalar_lea.vmem [#allocation44], %s3710
          %3712 = dma.done %s3708, 128
        $region248: #{_lambda_.1} parent=243 // pred_fallthru
          _
      $region244: #{_lambda_.1} parent=5 // pred_fallthru
        _
    $region6: #{_lambda_.1} parent=1 // loop_footer
      %s56 = sadd.s32 1, %s52
    $region7: #{_lambda_.1} parent=1 // loop_footer_branch
      %51 = sbr.rel target = $region3
    $region8: #{_lambda_.1} parent=1 // loop_exit
      _
    %3713 = vsyncpa [#allocation3], 1
    %s3714 = scalar_lea.sflag [#allocation3], 1
    %3715 = vsyncpa %s3714, 1
    %3716 = vsyncpa [#allocation6], 1
    %3717 = vsyncpa [#allocation9], 1
    %3718 = vsyncpa [#allocation12], 1
    %3719 = vsyncpa [#allocation15], 1
    %3720 = vsyncpa [#allocation18], 1
    %3721 = vsyncpa [#allocation21], 1
    %3722 = vsyncpa [#allocation24], 1
    %3723 = vsyncpa [#allocation27], 1
    %3724 = vsyncpa [#allocation30], 1
    %3725 = vsyncpa [#allocation33], 1
    %3726 = vsyncpa [#allocation36], 1
    %3727 = vsyncpa [#allocation39], 1
    %3728 = vsyncpa [#allocation42], 1
    %3729 = vsyncpa [#allocation4], 1
    %s3730 = scalar_lea.sflag [#allocation4], 1
    %3731 = vsyncpa %s3730, 1

</llo_original>
